<compile_context>
chip_gen: v5e
topology: v5e:2x2
jax: 0.10.0
libtpu: 0.0.40
codegen_flags: <defaults>
</compile_context>

<pallas_src>
import math
from functools import partial, lru_cache

import jax
import jax.numpy as jnp
from jax.experimental import pallas as pl
from jax.experimental.pallas import tpu as pltpu


ACT_DTYPE = jnp.bfloat16      # activations / MXU operands
PARAM_DTYPE = jnp.bfloat16    # weights (biases / LN params stay fp32)


# ---------------------------------------------------------------------------
# helpers
# ---------------------------------------------------------------------------
def _round_up(x, m):
    return ((x + m - 1) // m) * m


@lru_cache(maxsize=None)
def _vmem_capacity_bytes():
    try:
        return int(pltpu.get_tpu_info().vmem_capacity_bytes)
    except Exception:
        return 64 * 1024 * 1024          # conservative: v7x physical VMEM


def _vmem_limit_bytes():
    # ~100 MiB on 128-MiB parts (v5e/v6e), ~48 MiB on v7x, with headroom.
    return int(min(_vmem_capacity_bytes() - 16 * 1024 * 1024, 100 * 1024 * 1024))


def _tile_caps():
    # Generation-specific tile caps (tm, tn, tk).
    if _vmem_capacity_bytes() >= 96 * 1024 * 1024:
        return 512, 512, 1024
    return 512, 512, 512


def _choose_tile(dim, align, max_tile):
    """Return (tile, padded_dim).  Single full-extent tile if it fits (always legal),
    else the largest align-multiple <= max_tile dividing round_up(dim, align)."""
    if dim <= max_tile:
        return dim, dim
    d = _round_up(dim, align)
    t = (max_tile // align) * align
    while t >= align:
        if d % t == 0:
            return t, d
        t -= align
    t = (max_tile // align) * align
    return t, _round_up(d, t)


# ---------------------------------------------------------------------------
# Tiled linear (matmul + bias [+ GELU] [+ residual]) with K-reduction grid
# ---------------------------------------------------------------------------
def _linear_kernel(*refs, activation, has_residual):
    if has_residual:
        x_ref, w_ref, b_ref, r_ref, o_ref, acc_ref = refs
    else:
        x_ref, w_ref, b_ref, o_ref, acc_ref = refs
        r_ref = None
    k = pl.program_id(2)

    @pl.when(k == 0)
    def _():
        acc_ref[...] = jnp.zeros_like(acc_ref)

    acc_ref[...] += jnp.dot(x_ref[...].astype(jnp.bfloat16),
                            w_ref[...].astype(jnp.bfloat16),
                            preferred_element_type=jnp.float32)

    @pl.when(k == pl.num_programs(2) - 1)
    def _():
        y = acc_ref[...] + b_ref[...].astype(jnp.float32)
        if activation == "gelu":
            # TODO(synk): PyTorch nn.GELU default is exact erf; tanh approx used here.
            y = jax.nn.gelu(y, approximate=True)
        if r_ref is not None:
            y = y + r_ref[...].astype(jnp.float32)
        o_ref[...] = y.astype(o_ref.dtype)


def pallas_linear(x, w, b, activation=None, residual=None, out_dtype=None):
    """y = x @ w + b (+ residual), tiled over (M, N, K), fp32 accumulation."""
    M, K = x.shape
    N = w.shape[1]
    out_dtype = out_dtype or x.dtype
    TM, TN, TK = _tile_caps()
    tm, M_pad = _choose_tile(M, 8, TM)
    tn, N_pad = _choose_tile(N, 128, TN)
    tk, K_pad = _choose_tile(K, 128, TK)

    xp = x if (M_pad == M and K_pad == K) else jnp.pad(
        x, ((0, M_pad - M), (0, K_pad - K)))
    wp = w if (K_pad == K and N_pad == N) else jnp.pad(
        w, ((0, K_pad - K), (0, N_pad - N)))
    bp = (b if N_pad == N else jnp.pad(b, (0, N_pad - N))).reshape(1, N_pad)

    in_specs = [
        pl.BlockSpec((tm, tk), lambda i, j, k: (i, k)),
        pl.BlockSpec((tk, tn), lambda i, j, k: (k, j)),
        pl.BlockSpec((1, tn), lambda i, j, k: (0, j)),
    ]
    args = [xp, wp, bp]
    if residual is not None:
        rp = residual if (M_pad == M and N_pad == N) else jnp.pad(
            residual, ((0, M_pad - M), (0, N_pad - N)))
        in_specs.append(pl.BlockSpec((tm, tn), lambda i, j, k: (i, j)))
        args.append(rp)

    out = pl.pallas_call(
        partial(_linear_kernel, activation=activation,
                has_residual=residual is not None),
        out_shape=jax.ShapeDtypeStruct((M_pad, N_pad), out_dtype),
        grid=(M_pad // tm, N_pad // tn, K_pad // tk),
        in_specs=in_specs,
        out_specs=pl.BlockSpec((tm, tn), lambda i, j, k: (i, j)),
        scratch_shapes=[pltpu.VMEM((tm, tn), jnp.float32)],
        compiler_params=pltpu.CompilerParams(
            dimension_semantics=("parallel", "parallel", "arbitrary"),
            vmem_limit_bytes=_vmem_limit_bytes()),
    )(*args)
    if M_pad != M or N_pad != N:
        out = out[:M, :N]
    return out


# ---------------------------------------------------------------------------
# Fused LayerNorm + linear (+ GELU): LN computed once per M tile (scratch reuse)
# ---------------------------------------------------------------------------
def _ln_linear_kernel(x_ref, g_ref, b_ref, w_ref, bias_ref, o_ref, xn_ref,
                      *, activation, eps):
    j = pl.program_id(1)

    @pl.when(j == 0)   # LN only once per M tile; reused for all N tiles
    def _():
        x = x_ref[...].astype(jnp.float32)
        mu = jnp.mean(x, axis=-1, keepdims=True)
        xc = x - mu
        var = jnp.mean(xc * xc, axis=-1, keepdims=True)
        y = xc * jax.lax.rsqrt(var + eps)
        y = y * g_ref[...].astype(jnp.float32) + b_ref[...].astype(jnp.float32)
        xn_ref[...] = y.astype(xn_ref.dtype)

    acc = jnp.dot(xn_ref[...], w_ref[...].astype(jnp.bfloat16),
                  preferred_element_type=jnp.float32)
    acc = acc + bias_ref[...].astype(jnp.float32)
    if activation == "gelu":
        # TODO(synk): PyTorch nn.GELU default is exact erf; tanh approx used here.
        acc = jax.nn.gelu(acc, approximate=True)
    o_ref[...] = acc.astype(o_ref.dtype)


def pallas_ln_linear(x, g, beta, w, bias, activation=None, out_dtype=None):
    M, K = x.shape
    N = w.shape[1]
    out_dtype = out_dtype or x.dtype
    TM, TN, _ = _tile_caps()
    tm, M_pad = _choose_tile(M, 8, TM)
    tn, N_pad = _choose_tile(N, 128, TN)

    xp = x if M_pad == M else jnp.pad(x, ((0, M_pad - M), (0, 0)))
    wp = w if N_pad == N else jnp.pad(w, ((0, 0), (0, N_pad - N)))
    bp = (bias if N_pad == N else jnp.pad(bias, (0, N_pad - N))).reshape(1, N_pad)

    out = pl.pallas_call(
        partial(_ln_linear_kernel, activation=activation, eps=1e-5),
        out_shape=jax.ShapeDtypeStruct((M_pad, N_pad), out_dtype),
        grid=(M_pad // tm, N_pad // tn),
        in_specs=[
            pl.BlockSpec((tm, K), lambda i, j: (i, 0)),
            pl.BlockSpec((1, K), lambda i, j: (0, 0)),
            pl.BlockSpec((1, K), lambda i, j: (0, 0)),
            pl.BlockSpec((K, tn), lambda i, j: (0, j)),
            pl.BlockSpec((1, tn), lambda i, j: (0, j)),
        ],
        out_specs=pl.BlockSpec((tm, tn), lambda i, j: (i, j)),
        scratch_shapes=[pltpu.VMEM((tm, K), jnp.bfloat16)],
        compiler_params=pltpu.CompilerParams(
            dimension_semantics=("parallel", "arbitrary"),
            vmem_limit_bytes=_vmem_limit_bytes()),
    )(xp, g.reshape(1, K), beta.reshape(1, K), wp, bp)
    if M_pad != M or N_pad != N:
        out = out[:M, :N]
    return out


# ---------------------------------------------------------------------------
# Standalone row-tiled LayerNorm (final LN)
# ---------------------------------------------------------------------------
def _layernorm_kernel(x_ref, g_ref, b_ref, o_ref, *, eps):
    x = x_ref[...].astype(jnp.float32)
    mu = jnp.mean(x, axis=-1, keepdims=True)
    xc = x - mu
    var = jnp.mean(xc * xc, axis=-1, keepdims=True)
    y = xc * jax.lax.rsqrt(var + eps)
    y = y * g_ref[...].astype(jnp.float32) + b_ref[...].astype(jnp.float32)
    o_ref[...] = y.astype(o_ref.dtype)


def pallas_layernorm(x, g, b):
    M, D = x.shape
    TM, _, _ = _tile_caps()
    tm, M_pad = _choose_tile(M, 8, TM)
    xp = x if M_pad == M else jnp.pad(x, ((0, M_pad - M), (0, 0)))
    out = pl.pallas_call(
        partial(_layernorm_kernel, eps=1e-5),
        out_shape=jax.ShapeDtypeStruct((M_pad, D), x.dtype),
        grid=(M_pad // tm,),
        in_specs=[pl.BlockSpec((tm, D), lambda i: (i, 0)),
                  pl.BlockSpec((1, D), lambda i: (0, 0)),
                  pl.BlockSpec((1, D), lambda i: (0, 0))],
        out_specs=pl.BlockSpec((tm, D), lambda i: (i, 0)),
        compiler_params=pltpu.CompilerParams(
            dimension_semantics=("parallel",),
            vmem_limit_bytes=_vmem_limit_bytes()),
    )(xp, g.reshape(1, D), b.reshape(1, D))
    return out if M_pad == M else out[:M]


# ---------------------------------------------------------------------------
# Flash attention: heads batched inside the kernel, lane-dense (tq, E) store
#   q/k/v : (B, Hn, S_pad, Dh)   out : (B, S_pad, Hn*Dh)
# ---------------------------------------------------------------------------
def _flash_attn_kernel(q_ref, k_ref, v_ref, o_ref, m_sc, l_sc, acc_sc,
                       *, scale, seq_len, kv_tile, num_heads, mask_needed):
    ki = pl.program_id(2)

    @pl.when(ki == 0)
    def _():
        m_sc[...] = jnp.full_like(m_sc, -jnp.inf)
        l_sc[...] = jnp.zeros_like(l_sc)
        acc_sc[...] = jnp.zeros_like(acc_sc)

    q = q_ref[0] * scale              # (Hn, tq, Dh) bf16
    k = k_ref[0]                      # (Hn, tkv, Dh) bf16
    v = v_ref[0]

    # Batched over heads; fp32 accumulation on the MXU.
    s = jnp.einsum("hqd,hkd->hqk", q, k, preferred_element_type=jnp.float32)

    if mask_needed:                   # mask padded key columns (sequence padding)
        col = jax.lax.broadcasted_iota(jnp.int32, (1, 1, kv_tile), 2) + ki * kv_tile
        s = jnp.where(col < seq_len, s, jnp.float32(-1e30))

    m_prev = m_sc[...]                                        # (Hn, tq, 1) fp32
    m_new = jnp.maximum(m_prev, jnp.max(s, axis=-1, keepdims=True))
    alpha = jnp.exp(m_prev - m_new)
    p = jnp.exp(s - m_new)
    l_sc[...] = alpha * l_sc[...] + jnp.sum(p, axis=-1, keepdims=True)
    pv = jnp.einsum("hqk,hkd->hqd", p.astype(v.dtype), v,
                    preferred_element_type=jnp.float32)
    acc_sc[...] = alpha * acc_sc[...] + pv
    m_sc[...] = m_new

    @pl.when(ki == pl.num_programs(2) - 1)
    def _():
        inv = pl.reciprocal(l_sc[...], approx=False)   # exact; finalize-only cost
        out = acc_sc[...] * inv                        # (Hn, tq, Dh) fp32
        # Lane-dense (tq, Hn*Dh) slab -> single unmasked store path.
        slab = jnp.concatenate([out[h] for h in range(num_heads)], axis=-1)
        o_ref[0] = slab.astype(o_ref.dtype)


def _attn_seq_pad(S):
    return _round_up(S, 8) if S <= 128 else _round_up(S, 128)


def _attn_tiles(S_pad):
    if S_pad <= 256:
        return S_pad, S_pad
    tq = 256 if S_pad % 256 == 0 else 128
    return tq, 128


def pallas_flash_attention(q, k, v, seq_len):
    """q/k/v: (B, Hn, S_pad, Dh). Returns (B, S_pad, Hn*Dh)."""
    B, Hn, S_pad, Dh = q.shape
    E = Hn * Dh
    scale = 1.0 / math.sqrt(Dh)
    tq, tkv = _attn_tiles(S_pad)

    q_spec = pl.BlockSpec((1, Hn, tq, Dh), lambda b, qi, ki: (b, 0, qi, 0))
    kv_spec = pl.BlockSpec((1, Hn, tkv, Dh), lambda b, qi, ki: (b, 0, ki, 0))
    o_spec = pl.BlockSpec((1, tq, E), lambda b, qi, ki: (b, qi, 0))

    return pl.pallas_call(
        partial(_flash_attn_kernel, scale=scale, seq_len=seq_len, kv_tile=tkv,
                num_heads=Hn, mask_needed=(S_pad != seq_len)),
        out_shape=jax.ShapeDtypeStruct((B, S_pad, E), q.dtype),
        grid=(B, S_pad // tq, S_pad // tkv),
        in_specs=[q_spec, kv_spec, kv_spec],
        out_specs=o_spec,
        scratch_shapes=[
            pltpu.VMEM((Hn, tq, 1), jnp.float32),    # running max m
            pltpu.VMEM((Hn, tq, 1), jnp.float32),    # running sum l
            pltpu.VMEM((Hn, tq, Dh), jnp.float32),   # output accumulator
        ],
        compiler_params=pltpu.CompilerParams(
            dimension_semantics=("parallel", "parallel", "arbitrary"),
            vmem_limit_bytes=_vmem_limit_bytes()),
    )(q, k, v)


# ---------------------------------------------------------------------------
# Glue: patch extraction, parameters, full forward
# ---------------------------------------------------------------------------
def extract_tubelets(x, p):
    """(B,C,T,H,W) -> (B, Nt*Nh*Nw, C*p^3), matching Conv3d(k=s=p) flattening."""
    B, C, T, H, W = x.shape
    x = x.reshape(B, C, T // p, p, H // p, p, W // p, p)
    x = x.transpose(0, 2, 4, 6, 1, 3, 5, 7)        # (B, Nt, Nh, Nw, C, p, p, p)
    return x.reshape(B, (T // p) * (H // p) * (W // p), C * p * p * p)


def init_params(key, cfg):
    C, E, P = cfg["in_channels"], cfg["embed_dim"], cfg["patch_size"]
    Mh, L = cfg["mlp_size"], cfg["num_layers"]
    n_space = (cfg["image_size"] // P) ** 2
    n_time = cfg["clip_size"] // P
    S = n_space * n_time + 1

    def nrm(k, shape, std=0.02, dtype=PARAM_DTYPE):
        return (std * jax.random.normal(k, shape, dtype=jnp.float32)).astype(dtype)

    keys = iter(jax.random.split(key, 4 + 6 * L))
    params = {
        "embed_w": nrm(next(keys), (C * P * P * P, E)),
        "embed_b": jnp.zeros((E,), jnp.float32),
        "cls_token": nrm(next(keys), (1, 1, E), dtype=ACT_DTYPE),
        "pos_embed": nrm(next(keys), (1, S, E), dtype=ACT_DTYPE),
        "ln_f_g": jnp.ones((E,), jnp.float32),
        "ln_f_b": jnp.zeros((E,), jnp.float32),
        "head_w": nrm(next(keys), (E, cfg["num_classes"])),
        "head_b": jnp.zeros((cfg["num_classes"],), jnp.float32),
        "layers": [],
    }
    for _ in range(L):
        kq, kk, kv, ko, k1, k2 = (next(keys) for _ in range(6))
        # Pre-concatenated Q|K|V projection weights (no per-forward concat).
        wqkv = jnp.concatenate([nrm(kq, (E, E)), nrm(kk, (E, E)), nrm(kv, (E, E))],
                               axis=1)
        lyr = {
            "ln1_g": jnp.ones((E,), jnp.float32), "ln1_b": jnp.zeros((E,), jnp.float32),
            "wqkv": wqkv, "bqkv": jnp.zeros((3 * E,), jnp.float32),
            "wo": nrm(ko, (E, E)), "bo": jnp.zeros((E,), jnp.float32),
            "ln2_g": jnp.ones((E,), jnp.float32), "ln2_b": jnp.zeros((E,), jnp.float32),
            "w1": nrm(k1, (E, Mh)), "b1": jnp.zeros((Mh,), jnp.float32),
            "w2": nrm(k2, (Mh, E)), "b2": jnp.zeros((E,), jnp.float32),
        }
        params["layers"].append(lyr)
    return params


def vivit_forward(params, x, cfg):
    B = x.shape[0]
    P, E, Hn = cfg["patch_size"], cfg["embed_dim"], cfg["num_heads"]
    Dh = E // Hn

    # --- Embedding: tubelet embedding (Conv3d k=s=P) as patches @ W ---
    patches = extract_tubelets(x.astype(ACT_DTYPE), P)           # (B, N, C*P^3)
    Np = patches.shape[1]
    tok = pallas_linear(patches.reshape(B * Np, -1), params["embed_w"],
                        params["embed_b"], out_dtype=ACT_DTYPE).reshape(B, Np, E)
    # TODO(synk): nn.Dropout is identity at inference.

    # --- Encoder: cls token + positional embedding, pad sequence ONCE ---
    cls = jnp.broadcast_to(params["cls_token"], (B, 1, E)).astype(ACT_DTYPE)
    h = jnp.concatenate([cls, tok], axis=1) + params["pos_embed"]  # (B, S, E)
    S = Np + 1
    S_pad = _attn_seq_pad(S)
    if S_pad != S:   # padded rows carried through; masked as keys in attention
        h = jnp.pad(h, ((0, 0), (0, S_pad - S), (0, 0)))
    hf = h.reshape(B * S_pad, E)

    for lyr in params["layers"]:
        # Fused LN1 + QKV projection (pre-concatenated weights, one matmul).
        qkv = pallas_ln_linear(hf, lyr["ln1_g"], lyr["ln1_b"],
                               lyr["wqkv"], lyr["bqkv"])           # (B*S_pad, 3E)
        # One fused reshape+transpose -> head-major (3, B, Hn, S_pad, Dh).
        qkv = qkv.reshape(B, S_pad, 3, Hn, Dh).transpose(2, 0, 3, 1, 4)
        o = pallas_flash_attention(qkv[0], qkv[1], qkv[2], S)      # (B, S_pad, E)

        # Output projection with fused residual add.
        hf = pallas_linear(o.reshape(B * S_pad, E), lyr["wo"], lyr["bo"],
                           residual=hf)

        # Fused LN2 + MLP up-proj (+GELU), then down-proj with fused residual.
        m = pallas_ln_linear(hf, lyr["ln2_g"], lyr["ln2_b"],
                             lyr["w1"], lyr["b1"], activation="gelu")
        hf = pallas_linear(m, lyr["w2"], lyr["b2"], residual=hf)

    hf = pallas_layernorm(hf, params["ln_f_g"], params["ln_f_b"])
    h = hf.reshape(B, S_pad, E)

    # --- Classifier on the cls token ---
    logits = pallas_linear(h[:, 0], params["head_w"], params["head_b"],
                           out_dtype=jnp.float32)
    return logits


if __name__ == "__main__":
    cfg = dict(
        in_channels=4, image_size=16, clip_size=8, num_classes=10,
        embed_dim=32, patch_size=4, mlp_size=64, num_heads=4,
        num_layers=2, dropout=0.0,
    )
    key = jax.random.PRNGKey(0)
    kp, kx = jax.random.split(key)
    params = init_params(kp, cfg)
    # x: (B, C, T, H, W)
    x = jax.random.normal(kx, (2, cfg["in_channels"], cfg["clip_size"],
                               cfg["image_size"], cfg["image_size"]),
                          dtype=jnp.float32)

    fwd = jax.jit(partial(vivit_forward, cfg=cfg))
    logits = fwd(params, x)
    jax.block_until_ready(logits)
    assert logits.shape == (2, cfg["num_classes"])
    assert bool(jnp.all(jnp.isfinite(logits)))
    print("KERNEL_OK")
</pallas_src>

<mosaic_0001>
module attributes {stable_mosaic.version = 11 : i64} {
  func.func @_linear_kernel(%arg0: i32, %arg1: i32, %arg2: i32, %arg3: memref<64x256xbf16, #tpu.memory_space<vmem>>, %arg4: memref<256x32xbf16, #tpu.memory_space<vmem>>, %arg5: memref<1x32xf32, #tpu.memory_space<vmem>>, %arg6: memref<64x32xbf16, #tpu.memory_space<vmem>>, %arg7: memref<64x32xf32, #tpu.memory_space<vmem>>) attributes {dimension_semantics = [#tpu.dimension_semantics<parallel>, #tpu.dimension_semantics<parallel>, #tpu.dimension_semantics<arbitrary>], iteration_bounds = array<i64: 1, 1, 1>, scalar_prefetch = 0 : i64, scratch_operands = 1 : i64, tpu.core_type = #tpu.core_type<tc>, window_params = [{transform_indices = @transform_0, window_bounds = array<i64: 64, 256>}, {transform_indices = @transform_1, window_bounds = array<i64: 256, 32>}, {transform_indices = @transform_2, window_bounds = array<i64: 1, 32>}, {transform_indices = @transform_3, window_bounds = array<i64: 64, 32>}]} {
    %c0_i32 = arith.constant 0 : i32
    %0 = arith.cmpi eq, %arg2, %c0_i32 : i32
    %1 = arith.extui %0 : i1 to i32
    %c0_i32_0 = arith.constant 0 : i32
    %2 = arith.cmpi ne, %1, %c0_i32_0 : i32
    scf.if %2 {
      %cst_10 = arith.constant 0.000000e+00 : f32
      %12 = vector.broadcast %cst_10 : f32 to vector<64x32xf32>
      %c0_11 = arith.constant 0 : index
      %c0_12 = arith.constant 0 : index
      %13 = vector.load %arg7[%c0_11, %c0_12] : memref<64x32xf32, #tpu.memory_space<vmem>>, vector<64x32xf32>
      tpu.vector_store %arg7[%c0_11, %c0_12], %12 {strides = array<i32>} : memref<64x32xf32, #tpu.memory_space<vmem>>, vector<64x32xf32>,
    } else {
    }
    %c0 = arith.constant 0 : index
    %c0_1 = arith.constant 0 : index
    %3 = vector.load %arg7[%c0, %c0_1] : memref<64x32xf32, #tpu.memory_space<vmem>>, vector<64x32xf32>
    %c0_2 = arith.constant 0 : index
    %c0_3 = arith.constant 0 : index
    %4 = vector.load %arg3[%c0_2, %c0_3] : memref<64x256xbf16, #tpu.memory_space<vmem>>, vector<64x256xbf16>
    %c0_4 = arith.constant 0 : index
    %c0_5 = arith.constant 0 : index
    %5 = vector.load %arg4[%c0_4, %c0_5] : memref<256x32xbf16, #tpu.memory_space<vmem>>, vector<256x32xbf16>
    %cst = arith.constant dense<0.000000e+00> : vector<64x32xf32>
    %6 = tpu.matmul %4, %5, %cst {dimension_numbers = #tpu.dot_dimension_numbers<[1], [0], [0], [1], [0, 0, 1, 1], [], []>} : vector<64x256xbf16>, vector<256x32xbf16>, vector<64x32xf32> -> vector<64x32xf32>
    %7 = arith.addf %3, %6 : vector<64x32xf32>
    %c0_6 = arith.constant 0 : index
    %c0_7 = arith.constant 0 : index
    %8 = vector.load %arg7[%c0_6, %c0_7] : memref<64x32xf32, #tpu.memory_space<vmem>>, vector<64x32xf32>
    tpu.vector_store %arg7[%c0_6, %c0_7], %7 {strides = array<i32>} : memref<64x32xf32, #tpu.memory_space<vmem>>, vector<64x32xf32>,
    %c0_i32_8 = arith.constant 0 : i32
    %9 = arith.cmpi eq, %arg2, %c0_i32_8 : i32
    %10 = arith.extui %9 : i1 to i32
    %c0_i32_9 = arith.constant 0 : i32
    %11 = arith.cmpi ne, %10, %c0_i32_9 : i32
    scf.if %11 {
      %c0_10 = arith.constant 0 : index
      %c0_11 = arith.constant 0 : index
      %12 = vector.load %arg7[%c0_10, %c0_11] : memref<64x32xf32, #tpu.memory_space<vmem>>, vector<64x32xf32>
      %c0_12 = arith.constant 0 : index
      %c0_13 = arith.constant 0 : index
      %13 = vector.load %arg5[%c0_12, %c0_13] : memref<1x32xf32, #tpu.memory_space<vmem>>, vector<1x32xf32>
      %14 = vector.broadcast %13 : vector<1x32xf32> to vector<64x32xf32>
      %15 = arith.addf %12, %14 : vector<64x32xf32>
      %16 = arith.truncf %15 : vector<64x32xf32> to vector<64x32xbf16>
      %c0_14 = arith.constant 0 : index
      %c0_15 = arith.constant 0 : index
      %17 = vector.load %arg6[%c0_14, %c0_15] : memref<64x32xbf16, #tpu.memory_space<vmem>>, vector<64x32xbf16>
      tpu.vector_store %arg6[%c0_14, %c0_15], %16 {strides = array<i32>} : memref<64x32xbf16, #tpu.memory_space<vmem>>, vector<64x32xbf16>,
    } else {
    }
    return
  }
  func.func @transform_0(%arg0: i32, %arg1: i32, %arg2: i32) -> (i32, i32) {
    %c0_i32 = arith.constant 0 : i32
    return %arg0, %arg2 : i32, i32
  }
  func.func @transform_1(%arg0: i32, %arg1: i32, %arg2: i32) -> (i32, i32) {
    %c0_i32 = arith.constant 0 : i32
    return %arg2, %arg1 : i32, i32
  }
  func.func @transform_2(%arg0: i32, %arg1: i32, %arg2: i32) -> (i32, i32) {
    %c0_i32 = arith.constant 0 : i32
    %c0_i32_0 = arith.constant 0 : i32
    return %c0_i32, %arg1 : i32, i32
  }
  func.func @transform_3(%arg0: i32, %arg1: i32, %arg2: i32) -> (i32, i32) {
    %c0_i32 = arith.constant 0 : i32
    return %arg0, %arg1 : i32, i32
  }
}

module attributes {stable_mosaic.version = 11 : i64} {
  func.func @_ln_linear_kernel(%arg0: i32, %arg1: i32, %arg2: memref<80x32xbf16, #tpu.memory_space<vmem>>, %arg3: memref<1x32xf32, #tpu.memory_space<vmem>>, %arg4: memref<1x32xf32, #tpu.memory_space<vmem>>, %arg5: memref<32x96xbf16, #tpu.memory_space<vmem>>, %arg6: memref<1x96xf32, #tpu.memory_space<vmem>>, %arg7: memref<80x96xbf16, #tpu.memory_space<vmem>>, %arg8: memref<80x32xbf16, #tpu.memory_space<vmem>>) attributes {dimension_semantics = [#tpu.dimension_semantics<parallel>, #tpu.dimension_semantics<arbitrary>], iteration_bounds = array<i64: 1, 1>, scalar_prefetch = 0 : i64, scratch_operands = 1 : i64, tpu.core_type = #tpu.core_type<tc>, window_params = [{transform_indices = @transform_0, window_bounds = array<i64: 80, 32>}, {pipeline_mode = #tpu.pipeline_mode<synchronous>, transform_indices = @transform_1, window_bounds = array<i64: 1, 32>}, {pipeline_mode = #tpu.pipeline_mode<synchronous>, transform_indices = @transform_2, window_bounds = array<i64: 1, 32>}, {transform_indices = @transform_3, window_bounds = array<i64: 32, 96>}, {transform_indices = @transform_4, window_bounds = array<i64: 1, 96>}, {transform_indices = @transform_5, window_bounds = array<i64: 80, 96>}]} {
    %c0_i32 = arith.constant 0 : i32
    %0 = arith.cmpi eq, %arg1, %c0_i32 : i32
    %1 = arith.extui %0 : i1 to i32
    %c0_i32_0 = arith.constant 0 : i32
    %2 = arith.cmpi ne, %1, %c0_i32_0 : i32
    scf.if %2 {
      %c0_8 = arith.constant 0 : index
      %c0_9 = arith.constant 0 : index
      %11 = vector.load %arg2[%c0_8, %c0_9] : memref<80x32xbf16, #tpu.memory_space<vmem>>, vector<80x32xbf16>
      %12 = arith.extf %11 : vector<80x32xbf16> to vector<80x32xf32>
      %cst_10 = arith.constant dense<0.000000e+00> : vector<80xf32>
      %13 = vector.multi_reduction <add>, %12, %cst_10 [1] : vector<80x32xf32> to vector<80xf32>
      %14 = vector.shape_cast %13 : vector<80xf32> to vector<80x1xf32>
      %cst_11 = arith.constant 3.200000e+01 : f32
      %15 = vector.broadcast %cst_11 : f32 to vector<80x1xf32>
      %16 = arith.divf %14, %15 : vector<80x1xf32>
      %17 = vector.broadcast %16 : vector<80x1xf32> to vector<80x32xf32>
      %18 = arith.subf %12, %17 : vector<80x32xf32>
      %19 = arith.mulf %18, %18 : vector<80x32xf32>
      %cst_12 = arith.constant dense<0.000000e+00> : vector<80xf32>
      %20 = vector.multi_reduction <add>, %19, %cst_12 [1] : vector<80x32xf32> to vector<80xf32>
      %21 = vector.shape_cast %20 : vector<80xf32> to vector<80x1xf32>
      %cst_13 = arith.constant 3.200000e+01 : f32
      %22 = vector.broadcast %cst_13 : f32 to vector<80x1xf32>
      %23 = arith.divf %21, %22 : vector<80x1xf32>
      %cst_14 = arith.constant 9.99999974E-6 : f32
      %24 = vector.broadcast %cst_14 : f32 to vector<80x1xf32>
      %25 = arith.addf %23, %24 : vector<80x1xf32>
      %26 = math.rsqrt %25 : vector<80x1xf32>
      %27 = vector.broadcast %26 : vector<80x1xf32> to vector<80x32xf32>
      %28 = arith.mulf %18, %27 : vector<80x32xf32>
      %c0_15 = arith.constant 0 : index
      %c0_16 = arith.constant 0 : index
      %29 = vector.load %arg3[%c0_15, %c0_16] : memref<1x32xf32, #tpu.memory_space<vmem>>, vector<1x32xf32>
      %30 = vector.broadcast %29 : vector<1x32xf32> to vector<80x32xf32>
      %31 = arith.mulf %28, %30 : vector<80x32xf32>
      %c0_17 = arith.constant 0 : index
      %c0_18 = arith.constant 0 : index
      %32 = vector.load %arg4[%c0_17, %c0_18] : memref<1x32xf32, #tpu.memory_space<vmem>>, vector<1x32xf32>
      %33 = vector.broadcast %32 : vector<1x32xf32> to vector<80x32xf32>
      %34 = arith.addf %31, %33 : vector<80x32xf32>
      %35 = arith.truncf %34 : vector<80x32xf32> to vector<80x32xbf16>
      %c0_19 = arith.constant 0 : index
      %c0_20 = arith.constant 0 : index
      %36 = vector.load %arg8[%c0_19, %c0_20] : memref<80x32xbf16, #tpu.memory_space<vmem>>, vector<80x32xbf16>
      tpu.vector_store %arg8[%c0_19, %c0_20], %35 {strides = array<i32>} : memref<80x32xbf16, #tpu.memory_space<vmem>>, vector<80x32xbf16>,
    } else {
    }
    %c0 = arith.constant 0 : index
    %c0_1 = arith.constant 0 : index
    %3 = vector.load %arg8[%c0, %c0_1] : memref<80x32xbf16, #tpu.memory_space<vmem>>, vector<80x32xbf16>
    %c0_2 = arith.constant 0 : index
    %c0_3 = arith.constant 0 : index
    %4 = vector.load %arg5[%c0_2, %c0_3] : memref<32x96xbf16, #tpu.memory_space<vmem>>, vector<32x96xbf16>
    %cst = arith.constant dense<0.000000e+00> : vector<80x96xf32>
    %5 = tpu.matmul %3, %4, %cst {dimension_numbers = #tpu.dot_dimension_numbers<[1], [0], [0], [1], [0, 0, 1, 1], [], []>} : vector<80x32xbf16>, vector<32x96xbf16>, vector<80x96xf32> -> vector<80x96xf32>
    %c0_4 = arith.constant 0 : index
    %c0_5 = arith.constant 0 : index
    %6 = vector.load %arg6[%c0_4, %c0_5] : memref<1x96xf32, #tpu.memory_space<vmem>>, vector<1x96xf32>
    %7 = vector.broadcast %6 : vector<1x96xf32> to vector<80x96xf32>
    %8 = arith.addf %5, %7 : vector<80x96xf32>
    %9 = arith.truncf %8 : vector<80x96xf32> to vector<80x96xbf16>
    %c0_6 = arith.constant 0 : index
    %c0_7 = arith.constant 0 : index
    %10 = vector.load %arg7[%c0_6, %c0_7] : memref<80x96xbf16, #tpu.memory_space<vmem>>, vector<80x96xbf16>
    tpu.vector_store %arg7[%c0_6, %c0_7], %9 {strides = array<i32>} : memref<80x96xbf16, #tpu.memory_space<vmem>>, vector<80x96xbf16>,
    return
  }
  func.func @transform_0(%arg0: i32, %arg1: i32) -> (i32, i32) {
    %c0_i32 = arith.constant 0 : i32
    %c0_i32_0 = arith.constant 0 : i32
    return %arg0, %c0_i32 : i32, i32
  }
  func.func @transform_1(%arg0: i32, %arg1: i32) -> (i32, i32) {
    %c0_i32 = arith.constant 0 : i32
    %c0_i32_0 = arith.constant 0 : i32
    %c0_i32_1 = arith.constant 0 : i32
    return %c0_i32, %c0_i32_0 : i32, i32
  }
  func.func @transform_2(%arg0: i32, %arg1: i32) -> (i32, i32) {
    %c0_i32 = arith.constant 0 : i32
    %c0_i32_0 = arith.constant 0 : i32
    %c0_i32_1 = arith.constant 0 : i32
    return %c0_i32, %c0_i32_0 : i32, i32
  }
  func.func @transform_3(%arg0: i32, %arg1: i32) -> (i32, i32) {
    %c0_i32 = arith.constant 0 : i32
    %c0_i32_0 = arith.constant 0 : i32
    return %c0_i32, %arg1 : i32, i32
  }
  func.func @transform_4(%arg0: i32, %arg1: i32) -> (i32, i32) {
    %c0_i32 = arith.constant 0 : i32
    %c0_i32_0 = arith.constant 0 : i32
    return %c0_i32, %arg1 : i32, i32
  }
  func.func @transform_5(%arg0: i32, %arg1: i32) -> (i32, i32) {
    %c0_i32 = arith.constant 0 : i32
    return %arg0, %arg1 : i32, i32
  }
}

module attributes {stable_mosaic.version = 11 : i64} {
  func.func @_flash_attn_kernel(%arg0: i32, %arg1: i32, %arg2: i32, %arg3: memref<1x4x40x8xbf16, #tpu.memory_space<vmem>>, %arg4: memref<1x4x40x8xbf16, #tpu.memory_space<vmem>>, %arg5: memref<1x4x40x8xbf16, #tpu.memory_space<vmem>>, %arg6: memref<1x40x32xbf16, #tpu.memory_space<vmem>>, %arg7: memref<4x40x1xf32, #tpu.memory_space<vmem>>, %arg8: memref<4x40x1xf32, #tpu.memory_space<vmem>>, %arg9: memref<4x40x8xf32, #tpu.memory_space<vmem>>) attributes {dimension_semantics = [#tpu.dimension_semantics<parallel>, #tpu.dimension_semantics<parallel>, #tpu.dimension_semantics<arbitrary>], iteration_bounds = array<i64: 2, 1, 1>, scalar_prefetch = 0 : i64, scratch_operands = 3 : i64, tpu.core_type = #tpu.core_type<tc>, window_params = [{transform_indices = @transform_0, window_bounds = array<i64: 1, 4, 40, 8>}, {transform_indices = @transform_1, window_bounds = array<i64: 1, 4, 40, 8>}, {transform_indices = @transform_2, window_bounds = array<i64: 1, 4, 40, 8>}, {transform_indices = @transform_3, window_bounds = array<i64: 1, 40, 32>}]} {
    %c0_i32 = arith.constant 0 : i32
    %0 = arith.cmpi eq, %arg2, %c0_i32 : i32
    %1 = arith.extui %0 : i1 to i32
    %c0_i32_0 = arith.constant 0 : i32
    %2 = arith.cmpi ne, %1, %c0_i32_0 : i32
    scf.if %2 {
      %cst_37 = arith.constant 0xFF800000 : f32
      %48 = vector.broadcast %cst_37 : f32 to vector<4x40x1xf32>
      %c0_38 = arith.constant 0 : index
      %c0_39 = arith.constant 0 : index
      %c0_40 = arith.constant 0 : index
      %49 = vector.load %arg7[%c0_38, %c0_39, %c0_40] : memref<4x40x1xf32, #tpu.memory_space<vmem>>, vector<4x40x1xf32>
      tpu.vector_store %arg7[%c0_38, %c0_39, %c0_40], %48 {strides = array<i32>} : memref<4x40x1xf32, #tpu.memory_space<vmem>>, vector<4x40x1xf32>,
      %cst_41 = arith.constant 0.000000e+00 : f32
      %50 = vector.broadcast %cst_41 : f32 to vector<4x40x1xf32>
      %c0_42 = arith.constant 0 : index
      %c0_43 = arith.constant 0 : index
      %c0_44 = arith.constant 0 : index
      %51 = vector.load %arg8[%c0_42, %c0_43, %c0_44] : memref<4x40x1xf32, #tpu.memory_space<vmem>>, vector<4x40x1xf32>
      tpu.vector_store %arg8[%c0_42, %c0_43, %c0_44], %50 {strides = array<i32>} : memref<4x40x1xf32, #tpu.memory_space<vmem>>, vector<4x40x1xf32>,
      %cst_45 = arith.constant 0.000000e+00 : f32
      %52 = vector.broadcast %cst_45 : f32 to vector<4x40x8xf32>
      %c0_46 = arith.constant 0 : index
      %c0_47 = arith.constant 0 : index
      %c0_48 = arith.constant 0 : index
      %53 = vector.load %arg9[%c0_46, %c0_47, %c0_48] : memref<4x40x8xf32, #tpu.memory_space<vmem>>, vector<4x40x8xf32>
      tpu.vector_store %arg9[%c0_46, %c0_47, %c0_48], %52 {strides = array<i32>} : memref<4x40x8xf32, #tpu.memory_space<vmem>>, vector<4x40x8xf32>,
    } else {
    }
    %c0 = arith.constant 0 : index
    %c0_1 = arith.constant 0 : index
    %c0_2 = arith.constant 0 : index
    %c0_3 = arith.constant 0 : index
    %3 = vector.load %arg3[%c0, %c0_1, %c0_2, %c0_3] : memref<1x4x40x8xbf16, #tpu.memory_space<vmem>>, vector<1x4x40x8xbf16>
    %4 = vector.shape_cast %3 : vector<1x4x40x8xbf16> to vector<4x40x8xbf16>
    %cst = arith.constant 3.535160e-01 : bf16
    %5 = vector.broadcast %cst : bf16 to vector<4x40x8xbf16>
    %6 = arith.mulf %4, %5 : vector<4x40x8xbf16>
    %c0_4 = arith.constant 0 : index
    %c0_5 = arith.constant 0 : index
    %c0_6 = arith.constant 0 : index
    %c0_7 = arith.constant 0 : index
    %7 = vector.load %arg4[%c0_4, %c0_5, %c0_6, %c0_7] : memref<1x4x40x8xbf16, #tpu.memory_space<vmem>>, vector<1x4x40x8xbf16>
    %8 = vector.shape_cast %7 : vector<1x4x40x8xbf16> to vector<4x40x8xbf16>
    %c0_8 = arith.constant 0 : index
    %c0_9 = arith.constant 0 : index
    %c0_10 = arith.constant 0 : index
    %c0_11 = arith.constant 0 : index
    %9 = vector.load %arg5[%c0_8, %c0_9, %c0_10, %c0_11] : memref<1x4x40x8xbf16, #tpu.memory_space<vmem>>, vector<1x4x40x8xbf16>
    %10 = vector.shape_cast %9 : vector<1x4x40x8xbf16> to vector<4x40x8xbf16>
    "tpu.trace_start"() <{level = 10 : i32, message = "hqd,hkd->hqk"}> : () -> ()
    %cst_12 = arith.constant dense<0.000000e+00> : vector<4x40x40xf32>
    %11 = tpu.matmul %6, %8, %cst_12 {dimension_numbers = #tpu.dot_dimension_numbers<[2], [2], [1], [1], [0, 0, 0, 1, 1, 1], [0], [0]>} : vector<4x40x8xbf16>, vector<4x40x8xbf16>, vector<4x40x40xf32> -> vector<4x40x40xf32>
    "tpu.trace_stop"() : () -> ()
    %12 = tpu.iota {dimensions = array<i32: 2>} : vector<1x1x40xi32>
    %c40_i32 = arith.constant 40 : i32
    %13 = arith.muli %arg2, %c40_i32 : i32
    %14 = vector.broadcast %13 : i32 to vector<1x1x40xi32>
    %15 = arith.addi %12, %14 : vector<1x1x40xi32>
    %c33_i32 = arith.constant 33 : i32
    %16 = vector.broadcast %c33_i32 : i32 to vector<1x1x40xi32>
    %17 = arith.cmpi slt, %15, %16 : vector<1x1x40xi32>
    %cst_13 = arith.constant -1.000000e+30 : f32
    %18 = vector.shape_cast %17 : vector<1x1x40xi1> to vector<1x1x40xi1>
    %19 = vector.broadcast %18 : vector<1x1x40xi1> to vector<4x40x40xi1>
    %20 = vector.broadcast %cst_13 : f32 to vector<4x40x40xf32>
    %21 = arith.select %19, %11, %20 : vector<4x40x40xi1>, vector<4x40x40xf32>
    %c0_14 = arith.constant 0 : index
    %c0_15 = arith.constant 0 : index
    %c0_16 = arith.constant 0 : index
    %22 = vector.load %arg7[%c0_14, %c0_15, %c0_16] : memref<4x40x1xf32, #tpu.memory_space<vmem>>, vector<4x40x1xf32>
    %cst_17 = arith.constant dense<0xFF800000> : vector<4x40xf32>
    %23 = vector.multi_reduction <maximumf>, %21, %cst_17 [2] : vector<4x40x40xf32> to vector<4x40xf32>
    %24 = vector.shape_cast %23 : vector<4x40xf32> to vector<4x40x1xf32>
    %25 = arith.maximumf %22, %24 : vector<4x40x1xf32>
    %26 = arith.subf %22, %25 : vector<4x40x1xf32>
    %27 = math.exp %26 : vector<4x40x1xf32>
    %28 = vector.broadcast %25 : vector<4x40x1xf32> to vector<4x40x40xf32>
    %29 = arith.subf %21, %28 : vector<4x40x40xf32>
    %30 = math.exp %29 : vector<4x40x40xf32>
    %c0_18 = arith.constant 0 : index
    %c0_19 = arith.constant 0 : index
    %c0_20 = arith.constant 0 : index
    %31 = vector.load %arg8[%c0_18, %c0_19, %c0_20] : memref<4x40x1xf32, #tpu.memory_space<vmem>>, vector<4x40x1xf32>
    %32 = arith.mulf %27, %31 : vector<4x40x1xf32>
    %cst_21 = arith.constant dense<0.000000e+00> : vector<4x40xf32>
    %33 = vector.multi_reduction <add>, %30, %cst_21 [2] : vector<4x40x40xf32> to vector<4x40xf32>
    %34 = vector.shape_cast %33 : vector<4x40xf32> to vector<4x40x1xf32>
    %35 = arith.addf %32, %34 : vector<4x40x1xf32>
    %c0_22 = arith.constant 0 : index
    %c0_23 = arith.constant 0 : index
    %c0_24 = arith.constant 0 : index
    %36 = vector.load %arg8[%c0_22, %c0_23, %c0_24] : memref<4x40x1xf32, #tpu.memory_space<vmem>>, vector<4x40x1xf32>
    tpu.vector_store %arg8[%c0_22, %c0_23, %c0_24], %35 {strides = array<i32>} : memref<4x40x1xf32, #tpu.memory_space<vmem>>, vector<4x40x1xf32>,
    %37 = arith.truncf %30 : vector<4x40x40xf32> to vector<4x40x40xbf16>
    "tpu.trace_start"() <{level = 10 : i32, message = "hqk,hkd->hqd"}> : () -> ()
    %cst_25 = arith.constant dense<0.000000e+00> : vector<4x40x8xf32>
    %38 = tpu.matmul %37, %10, %cst_25 {dimension_numbers = #tpu.dot_dimension_numbers<[2], [1], [1], [2], [0, 0, 0, 1, 1, 2], [0], [0]>} : vector<4x40x40xbf16>, vector<4x40x8xbf16>, vector<4x40x8xf32> -> vector<4x40x8xf32>
    "tpu.trace_stop"() : () -> ()
    %c0_26 = arith.constant 0 : index
    %c0_27 = arith.constant 0 : index
    %c0_28 = arith.constant 0 : index
    %39 = vector.load %arg9[%c0_26, %c0_27, %c0_28] : memref<4x40x8xf32, #tpu.memory_space<vmem>>, vector<4x40x8xf32>
    %40 = vector.broadcast %27 : vector<4x40x1xf32> to vector<4x40x8xf32>
    %41 = arith.mulf %40, %39 : vector<4x40x8xf32>
    %42 = arith.addf %41, %38 : vector<4x40x8xf32>
    %c0_29 = arith.constant 0 : index
    %c0_30 = arith.constant 0 : index
    %c0_31 = arith.constant 0 : index
    %43 = vector.load %arg9[%c0_29, %c0_30, %c0_31] : memref<4x40x8xf32, #tpu.memory_space<vmem>>, vector<4x40x8xf32>
    tpu.vector_store %arg9[%c0_29, %c0_30, %c0_31], %42 {strides = array<i32>} : memref<4x40x8xf32, #tpu.memory_space<vmem>>, vector<4x40x8xf32>,
    %c0_32 = arith.constant 0 : index
    %c0_33 = arith.constant 0 : index
    %c0_34 = arith.constant 0 : index
    %44 = vector.load %arg7[%c0_32, %c0_33, %c0_34] : memref<4x40x1xf32, #tpu.memory_space<vmem>>, vector<4x40x1xf32>
    tpu.vector_store %arg7[%c0_32, %c0_33, %c0_34], %25 {strides = array<i32>} : memref<4x40x1xf32, #tpu.memory_space<vmem>>, vector<4x40x1xf32>,
    %c0_i32_35 = arith.constant 0 : i32
    %45 = arith.cmpi eq, %arg2, %c0_i32_35 : i32
    %46 = arith.extui %45 : i1 to i32
    %c0_i32_36 = arith.constant 0 : i32
    %47 = arith.cmpi ne, %46, %c0_i32_36 : i32
    scf.if %47 {
      %c0_37 = arith.constant 0 : index
      %c0_38 = arith.constant 0 : index
      %c0_39 = arith.constant 0 : index
      %48 = vector.load %arg8[%c0_37, %c0_38, %c0_39] : memref<4x40x1xf32, #tpu.memory_space<vmem>>, vector<4x40x1xf32>
      %49 = tpu.reciprocal %48 : vector<4x40x1xf32> -> vector<4x40x1xf32>
      %c0_40 = arith.constant 0 : index
      %c0_41 = arith.constant 0 : index
      %c0_42 = arith.constant 0 : index
      %50 = vector.load %arg9[%c0_40, %c0_41, %c0_42] : memref<4x40x8xf32, #tpu.memory_space<vmem>>, vector<4x40x8xf32>
      %51 = vector.broadcast %49 : vector<4x40x1xf32> to vector<4x40x8xf32>
      %52 = arith.mulf %50, %51 : vector<4x40x8xf32>
      %53 = vector.extract_strided_slice %52 {offsets = [0, 0, 0], sizes = [1, 40, 8], strides = [1, 1, 1]} : vector<4x40x8xf32> to vector<1x40x8xf32>
      %54 = vector.shape_cast %53 : vector<1x40x8xf32> to vector<40x8xf32>
      %55 = vector.extract_strided_slice %52 {offsets = [1, 0, 0], sizes = [1, 40, 8], strides = [1, 1, 1]} : vector<4x40x8xf32> to vector<1x40x8xf32>
      %56 = vector.shape_cast %55 : vector<1x40x8xf32> to vector<40x8xf32>
      %57 = vector.extract_strided_slice %52 {offsets = [2, 0, 0], sizes = [1, 40, 8], strides = [1, 1, 1]} : vector<4x40x8xf32> to vector<1x40x8xf32>
      %58 = vector.shape_cast %57 : vector<1x40x8xf32> to vector<40x8xf32>
      %59 = vector.extract_strided_slice %52 {offsets = [3, 0, 0], sizes = [1, 40, 8], strides = [1, 1, 1]} : vector<4x40x8xf32> to vector<1x40x8xf32>
      %60 = vector.shape_cast %59 : vector<1x40x8xf32> to vector<40x8xf32>
      %61 = tpu.concatenate %54, %56, %58, %60 in 1 : vector<40x8xf32>, vector<40x8xf32>, vector<40x8xf32>, vector<40x8xf32> -> vector<40x32xf32>
      %62 = arith.truncf %61 : vector<40x32xf32> to vector<40x32xbf16>
      %c0_43 = arith.constant 0 : index
      %c0_44 = arith.constant 0 : index
      %c0_45 = arith.constant 0 : index
      %63 = vector.load %arg6[%c0_43, %c0_44, %c0_45] : memref<1x40x32xbf16, #tpu.memory_space<vmem>>, vector<1x40x32xbf16>
      %64 = vector.shape_cast %63 : vector<1x40x32xbf16> to vector<40x32xbf16>
      %65 = vector.shape_cast %62 : vector<40x32xbf16> to vector<1x40x32xbf16>
      tpu.vector_store %arg6[%c0_43, %c0_44, %c0_45], %65 {strides = array<i32>} : memref<1x40x32xbf16, #tpu.memory_space<vmem>>, vector<1x40x32xbf16>,
    } else {
    }
    return
  }
  func.func @transform_0(%arg0: i32, %arg1: i32, %arg2: i32) -> (i32, i32, i32, i32) {
    %c0_i32 = arith.constant 0 : i32
    %c0_i32_0 = arith.constant 0 : i32
    %c0_i32_1 = arith.constant 0 : i32
    return %arg0, %c0_i32, %arg1, %c0_i32_0 : i32, i32, i32, i32
  }
  func.func @transform_1(%arg0: i32, %arg1: i32, %arg2: i32) -> (i32, i32, i32, i32) {
    %c0_i32 = arith.constant 0 : i32
    %c0_i32_0 = arith.constant 0 : i32
    %c0_i32_1 = arith.constant 0 : i32
    return %arg0, %c0_i32, %arg2, %c0_i32_0 : i32, i32, i32, i32
  }
  func.func @transform_2(%arg0: i32, %arg1: i32, %arg2: i32) -> (i32, i32, i32, i32) {
    %c0_i32 = arith.constant 0 : i32
    %c0_i32_0 = arith.constant 0 : i32
    %c0_i32_1 = arith.constant 0 : i32
    return %arg0, %c0_i32, %arg2, %c0_i32_0 : i32, i32, i32, i32
  }
  func.func @transform_3(%arg0: i32, %arg1: i32, %arg2: i32) -> (i32, i32, i32) {
    %c0_i32 = arith.constant 0 : i32
    %c0_i32_0 = arith.constant 0 : i32
    return %arg0, %arg1, %c0_i32 : i32, i32, i32
  }
}

module attributes {stable_mosaic.version = 11 : i64} {
  func.func @_linear_kernel(%arg0: i32, %arg1: i32, %arg2: i32, %arg3: memref<80x32xbf16, #tpu.memory_space<vmem>>, %arg4: memref<32x32xbf16, #tpu.memory_space<vmem>>, %arg5: memref<1x32xf32, #tpu.memory_space<vmem>>, %arg6: memref<80x32xbf16, #tpu.memory_space<vmem>>, %arg7: memref<80x32xbf16, #tpu.memory_space<vmem>>, %arg8: memref<80x32xf32, #tpu.memory_space<vmem>>) attributes {dimension_semantics = [#tpu.dimension_semantics<parallel>, #tpu.dimension_semantics<parallel>, #tpu.dimension_semantics<arbitrary>], iteration_bounds = array<i64: 1, 1, 1>, scalar_prefetch = 0 : i64, scratch_operands = 1 : i64, tpu.core_type = #tpu.core_type<tc>, window_params = [{transform_indices = @transform_0, window_bounds = array<i64: 80, 32>}, {transform_indices = @transform_1, window_bounds = array<i64: 32, 32>}, {transform_indices = @transform_2, window_bounds = array<i64: 1, 32>}, {transform_indices = @transform_3, window_bounds = array<i64: 80, 32>}, {transform_indices = @transform_4, window_bounds = array<i64: 80, 32>}]} {
    %c0_i32 = arith.constant 0 : i32
    %0 = arith.cmpi eq, %arg2, %c0_i32 : i32
    %1 = arith.extui %0 : i1 to i32
    %c0_i32_0 = arith.constant 0 : i32
    %2 = arith.cmpi ne, %1, %c0_i32_0 : i32
    scf.if %2 {
      %cst_10 = arith.constant 0.000000e+00 : f32
      %12 = vector.broadcast %cst_10 : f32 to vector<80x32xf32>
      %c0_11 = arith.constant 0 : index
      %c0_12 = arith.constant 0 : index
      %13 = vector.load %arg8[%c0_11, %c0_12] : memref<80x32xf32, #tpu.memory_space<vmem>>, vector<80x32xf32>
      tpu.vector_store %arg8[%c0_11, %c0_12], %12 {strides = array<i32>} : memref<80x32xf32, #tpu.memory_space<vmem>>, vector<80x32xf32>,
    } else {
    }
    %c0 = arith.constant 0 : index
    %c0_1 = arith.constant 0 : index
    %3 = vector.load %arg8[%c0, %c0_1] : memref<80x32xf32, #tpu.memory_space<vmem>>, vector<80x32xf32>
    %c0_2 = arith.constant 0 : index
    %c0_3 = arith.constant 0 : index
    %4 = vector.load %arg3[%c0_2, %c0_3] : memref<80x32xbf16, #tpu.memory_space<vmem>>, vector<80x32xbf16>
    %c0_4 = arith.constant 0 : index
    %c0_5 = arith.constant 0 : index
    %5 = vector.load %arg4[%c0_4, %c0_5] : memref<32x32xbf16, #tpu.memory_space<vmem>>, vector<32x32xbf16>
    %cst = arith.constant dense<0.000000e+00> : vector<80x32xf32>
    %6 = tpu.matmul %4, %5, %cst {dimension_numbers = #tpu.dot_dimension_numbers<[1], [0], [0], [1], [0, 0, 1, 1], [], []>} : vector<80x32xbf16>, vector<32x32xbf16>, vector<80x32xf32> -> vector<80x32xf32>
    %7 = arith.addf %3, %6 : vector<80x32xf32>
    %c0_6 = arith.constant 0 : index
    %c0_7 = arith.constant 0 : index
    %8 = vector.load %arg8[%c0_6, %c0_7] : memref<80x32xf32, #tpu.memory_space<vmem>>, vector<80x32xf32>
    tpu.vector_store %arg8[%c0_6, %c0_7], %7 {strides = array<i32>} : memref<80x32xf32, #tpu.memory_space<vmem>>, vector<80x32xf32>,
    %c0_i32_8 = arith.constant 0 : i32
    %9 = arith.cmpi eq, %arg2, %c0_i32_8 : i32
    %10 = arith.extui %9 : i1 to i32
    %c0_i32_9 = arith.constant 0 : i32
    %11 = arith.cmpi ne, %10, %c0_i32_9 : i32
    scf.if %11 {
      %c0_10 = arith.constant 0 : index
      %c0_11 = arith.constant 0 : index
      %12 = vector.load %arg8[%c0_10, %c0_11] : memref<80x32xf32, #tpu.memory_space<vmem>>, vector<80x32xf32>
      %c0_12 = arith.constant 0 : index
      %c0_13 = arith.constant 0 : index
      %13 = vector.load %arg5[%c0_12, %c0_13] : memref<1x32xf32, #tpu.memory_space<vmem>>, vector<1x32xf32>
      %14 = vector.broadcast %13 : vector<1x32xf32> to vector<80x32xf32>
      %15 = arith.addf %12, %14 : vector<80x32xf32>
      %c0_14 = arith.constant 0 : index
      %c0_15 = arith.constant 0 : index
      %16 = vector.load %arg6[%c0_14, %c0_15] : memref<80x32xbf16, #tpu.memory_space<vmem>>, vector<80x32xbf16>
      %17 = arith.extf %16 : vector<80x32xbf16> to vector<80x32xf32>
      %18 = arith.addf %15, %17 : vector<80x32xf32>
      %19 = arith.truncf %18 : vector<80x32xf32> to vector<80x32xbf16>
      %c0_16 = arith.constant 0 : index
      %c0_17 = arith.constant 0 : index
      %20 = vector.load %arg7[%c0_16, %c0_17] : memref<80x32xbf16, #tpu.memory_space<vmem>>, vector<80x32xbf16>
      tpu.vector_store %arg7[%c0_16, %c0_17], %19 {strides = array<i32>} : memref<80x32xbf16, #tpu.memory_space<vmem>>, vector<80x32xbf16>,
    } else {
    }
    return
  }
  func.func @transform_0(%arg0: i32, %arg1: i32, %arg2: i32) -> (i32, i32) {
    %c0_i32 = arith.constant 0 : i32
    return %arg0, %arg2 : i32, i32
  }
  func.func @transform_1(%arg0: i32, %arg1: i32, %arg2: i32) -> (i32, i32) {
    %c0_i32 = arith.constant 0 : i32
    return %arg2, %arg1 : i32, i32
  }
  func.func @transform_2(%arg0: i32, %arg1: i32, %arg2: i32) -> (i32, i32) {
    %c0_i32 = arith.constant 0 : i32
    %c0_i32_0 = arith.constant 0 : i32
    return %c0_i32, %arg1 : i32, i32
  }
  func.func @transform_3(%arg0: i32, %arg1: i32, %arg2: i32) -> (i32, i32) {
    %c0_i32 = arith.constant 0 : i32
    return %arg0, %arg1 : i32, i32
  }
  func.func @transform_4(%arg0: i32, %arg1: i32, %arg2: i32) -> (i32, i32) {
    %c0_i32 = arith.constant 0 : i32
    return %arg0, %arg1 : i32, i32
  }
}

module attributes {stable_mosaic.version = 11 : i64} {
  func.func @_ln_linear_kernel(%arg0: i32, %arg1: i32, %arg2: memref<80x32xbf16, #tpu.memory_space<vmem>>, %arg3: memref<1x32xf32, #tpu.memory_space<vmem>>, %arg4: memref<1x32xf32, #tpu.memory_space<vmem>>, %arg5: memref<32x64xbf16, #tpu.memory_space<vmem>>, %arg6: memref<1x64xf32, #tpu.memory_space<vmem>>, %arg7: memref<80x64xbf16, #tpu.memory_space<vmem>>, %arg8: memref<80x32xbf16, #tpu.memory_space<vmem>>) attributes {dimension_semantics = [#tpu.dimension_semantics<parallel>, #tpu.dimension_semantics<arbitrary>], iteration_bounds = array<i64: 1, 1>, scalar_prefetch = 0 : i64, scratch_operands = 1 : i64, tpu.core_type = #tpu.core_type<tc>, window_params = [{transform_indices = @transform_0, window_bounds = array<i64: 80, 32>}, {pipeline_mode = #tpu.pipeline_mode<synchronous>, transform_indices = @transform_1, window_bounds = array<i64: 1, 32>}, {pipeline_mode = #tpu.pipeline_mode<synchronous>, transform_indices = @transform_2, window_bounds = array<i64: 1, 32>}, {transform_indices = @transform_3, window_bounds = array<i64: 32, 64>}, {transform_indices = @transform_4, window_bounds = array<i64: 1, 64>}, {transform_indices = @transform_5, window_bounds = array<i64: 80, 64>}]} {
    %c0_i32 = arith.constant 0 : i32
    %0 = arith.cmpi eq, %arg1, %c0_i32 : i32
    %1 = arith.extui %0 : i1 to i32
    %c0_i32_0 = arith.constant 0 : i32
    %2 = arith.cmpi ne, %1, %c0_i32_0 : i32
    scf.if %2 {
      %c0_12 = arith.constant 0 : index
      %c0_13 = arith.constant 0 : index
      %24 = vector.load %arg2[%c0_12, %c0_13] : memref<80x32xbf16, #tpu.memory_space<vmem>>, vector<80x32xbf16>
      %25 = arith.extf %24 : vector<80x32xbf16> to vector<80x32xf32>
      %cst_14 = arith.constant dense<0.000000e+00> : vector<80xf32>
      %26 = vector.multi_reduction <add>, %25, %cst_14 [1] : vector<80x32xf32> to vector<80xf32>
      %27 = vector.shape_cast %26 : vector<80xf32> to vector<80x1xf32>
      %cst_15 = arith.constant 3.200000e+01 : f32
      %28 = vector.broadcast %cst_15 : f32 to vector<80x1xf32>
      %29 = arith.divf %27, %28 : vector<80x1xf32>
      %30 = vector.broadcast %29 : vector<80x1xf32> to vector<80x32xf32>
      %31 = arith.subf %25, %30 : vector<80x32xf32>
      %32 = arith.mulf %31, %31 : vector<80x32xf32>
      %cst_16 = arith.constant dense<0.000000e+00> : vector<80xf32>
      %33 = vector.multi_reduction <add>, %32, %cst_16 [1] : vector<80x32xf32> to vector<80xf32>
      %34 = vector.shape_cast %33 : vector<80xf32> to vector<80x1xf32>
      %cst_17 = arith.constant 3.200000e+01 : f32
      %35 = vector.broadcast %cst_17 : f32 to vector<80x1xf32>
      %36 = arith.divf %34, %35 : vector<80x1xf32>
      %cst_18 = arith.constant 9.99999974E-6 : f32
      %37 = vector.broadcast %cst_18 : f32 to vector<80x1xf32>
      %38 = arith.addf %36, %37 : vector<80x1xf32>
      %39 = math.rsqrt %38 : vector<80x1xf32>
      %40 = vector.broadcast %39 : vector<80x1xf32> to vector<80x32xf32>
      %41 = arith.mulf %31, %40 : vector<80x32xf32>
      %c0_19 = arith.constant 0 : index
      %c0_20 = arith.constant 0 : index
      %42 = vector.load %arg3[%c0_19, %c0_20] : memref<1x32xf32, #tpu.memory_space<vmem>>, vector<1x32xf32>
      %43 = vector.broadcast %42 : vector<1x32xf32> to vector<80x32xf32>
      %44 = arith.mulf %41, %43 : vector<80x32xf32>
      %c0_21 = arith.constant 0 : index
      %c0_22 = arith.constant 0 : index
      %45 = vector.load %arg4[%c0_21, %c0_22] : memref<1x32xf32, #tpu.memory_space<vmem>>, vector<1x32xf32>
      %46 = vector.broadcast %45 : vector<1x32xf32> to vector<80x32xf32>
      %47 = arith.addf %44, %46 : vector<80x32xf32>
      %48 = arith.truncf %47 : vector<80x32xf32> to vector<80x32xbf16>
      %c0_23 = arith.constant 0 : index
      %c0_24 = arith.constant 0 : index
      %49 = vector.load %arg8[%c0_23, %c0_24] : memref<80x32xbf16, #tpu.memory_space<vmem>>, vector<80x32xbf16>
      tpu.vector_store %arg8[%c0_23, %c0_24], %48 {strides = array<i32>} : memref<80x32xbf16, #tpu.memory_space<vmem>>, vector<80x32xbf16>,
    } else {
    }
    %c0 = arith.constant 0 : index
    %c0_1 = arith.constant 0 : index
    %3 = vector.load %arg8[%c0, %c0_1] : memref<80x32xbf16, #tpu.memory_space<vmem>>, vector<80x32xbf16>
    %c0_2 = arith.constant 0 : index
    %c0_3 = arith.constant 0 : index
    %4 = vector.load %arg5[%c0_2, %c0_3] : memref<32x64xbf16, #tpu.memory_space<vmem>>, vector<32x64xbf16>
    %cst = arith.constant dense<0.000000e+00> : vector<80x64xf32>
    %5 = tpu.matmul %3, %4, %cst {dimension_numbers = #tpu.dot_dimension_numbers<[1], [0], [0], [1], [0, 0, 1, 1], [], []>} : vector<80x32xbf16>, vector<32x64xbf16>, vector<80x64xf32> -> vector<80x64xf32>
    %c0_4 = arith.constant 0 : index
    %c0_5 = arith.constant 0 : index
    %6 = vector.load %arg6[%c0_4, %c0_5] : memref<1x64xf32, #tpu.memory_space<vmem>>, vector<1x64xf32>
    %7 = vector.broadcast %6 : vector<1x64xf32> to vector<80x64xf32>
    %8 = arith.addf %5, %7 : vector<80x64xf32>
    %9 = arith.mulf %8, %8 : vector<80x64xf32>
    %10 = arith.mulf %8, %9 : vector<80x64xf32>
    %cst_6 = arith.constant 4.471500e-02 : f32
    %11 = vector.broadcast %cst_6 : f32 to vector<80x64xf32>
    %12 = arith.mulf %11, %10 : vector<80x64xf32>
    %13 = arith.addf %8, %12 : vector<80x64xf32>
    %cst_7 = arith.constant 0.797884583 : f32
    %14 = vector.broadcast %cst_7 : f32 to vector<80x64xf32>
    %15 = arith.mulf %14, %13 : vector<80x64xf32>
    %16 = math.tanh %15 : vector<80x64xf32>
    %cst_8 = arith.constant 1.000000e+00 : f32
    %17 = vector.broadcast %cst_8 : f32 to vector<80x64xf32>
    %18 = arith.addf %17, %16 : vector<80x64xf32>
    %cst_9 = arith.constant 5.000000e-01 : f32
    %19 = vector.broadcast %cst_9 : f32 to vector<80x64xf32>
    %20 = arith.mulf %19, %18 : vector<80x64xf32>
    %21 = arith.mulf %8, %20 : vector<80x64xf32>
    %22 = arith.truncf %21 : vector<80x64xf32> to vector<80x64xbf16>
    %c0_10 = arith.constant 0 : index
    %c0_11 = arith.constant 0 : index
    %23 = vector.load %arg7[%c0_10, %c0_11] : memref<80x64xbf16, #tpu.memory_space<vmem>>, vector<80x64xbf16>
    tpu.vector_store %arg7[%c0_10, %c0_11], %22 {strides = array<i32>} : memref<80x64xbf16, #tpu.memory_space<vmem>>, vector<80x64xbf16>,
    return
  }
  func.func @transform_0(%arg0: i32, %arg1: i32) -> (i32, i32) {
    %c0_i32 = arith.constant 0 : i32
    %c0_i32_0 = arith.constant 0 : i32
    return %arg0, %c0_i32 : i32, i32
  }
  func.func @transform_1(%arg0: i32, %arg1: i32) -> (i32, i32) {
    %c0_i32 = arith.constant 0 : i32
    %c0_i32_0 = arith.constant 0 : i32
    %c0_i32_1 = arith.constant 0 : i32
    return %c0_i32, %c0_i32_0 : i32, i32
  }
  func.func @transform_2(%arg0: i32, %arg1: i32) -> (i32, i32) {
    %c0_i32 = arith.constant 0 : i32
    %c0_i32_0 = arith.constant 0 : i32
    %c0_i32_1 = arith.constant 0 : i32
    return %c0_i32, %c0_i32_0 : i32, i32
  }
  func.func @transform_3(%arg0: i32, %arg1: i32) -> (i32, i32) {
    %c0_i32 = arith.constant 0 : i32
    %c0_i32_0 = arith.constant 0 : i32
    return %c0_i32, %arg1 : i32, i32
  }
  func.func @transform_4(%arg0: i32, %arg1: i32) -> (i32, i32) {
    %c0_i32 = arith.constant 0 : i32
    %c0_i32_0 = arith.constant 0 : i32
    return %c0_i32, %arg1 : i32, i32
  }
  func.func @transform_5(%arg0: i32, %arg1: i32) -> (i32, i32) {
    %c0_i32 = arith.constant 0 : i32
    return %arg0, %arg1 : i32, i32
  }
}

module attributes {stable_mosaic.version = 11 : i64} {
  func.func @_linear_kernel(%arg0: i32, %arg1: i32, %arg2: i32, %arg3: memref<80x64xbf16, #tpu.memory_space<vmem>>, %arg4: memref<64x32xbf16, #tpu.memory_space<vmem>>, %arg5: memref<1x32xf32, #tpu.memory_space<vmem>>, %arg6: memref<80x32xbf16, #tpu.memory_space<vmem>>, %arg7: memref<80x32xbf16, #tpu.memory_space<vmem>>, %arg8: memref<80x32xf32, #tpu.memory_space<vmem>>) attributes {dimension_semantics = [#tpu.dimension_semantics<parallel>, #tpu.dimension_semantics<parallel>, #tpu.dimension_semantics<arbitrary>], iteration_bounds = array<i64: 1, 1, 1>, scalar_prefetch = 0 : i64, scratch_operands = 1 : i64, tpu.core_type = #tpu.core_type<tc>, window_params = [{transform_indices = @transform_0, window_bounds = array<i64: 80, 64>}, {transform_indices = @transform_1, window_bounds = array<i64: 64, 32>}, {transform_indices = @transform_2, window_bounds = array<i64: 1, 32>}, {transform_indices = @transform_3, window_bounds = array<i64: 80, 32>}, {transform_indices = @transform_4, window_bounds = array<i64: 80, 32>}]} {
    %c0_i32 = arith.constant 0 : i32
    %0 = arith.cmpi eq, %arg2, %c0_i32 : i32
    %1 = arith.extui %0 : i1 to i32
    %c0_i32_0 = arith.constant 0 : i32
    %2 = arith.cmpi ne, %1, %c0_i32_0 : i32
    scf.if %2 {
      %cst_10 = arith.constant 0.000000e+00 : f32
      %12 = vector.broadcast %cst_10 : f32 to vector<80x32xf32>
      %c0_11 = arith.constant 0 : index
      %c0_12 = arith.constant 0 : index
      %13 = vector.load %arg8[%c0_11, %c0_12] : memref<80x32xf32, #tpu.memory_space<vmem>>, vector<80x32xf32>
      tpu.vector_store %arg8[%c0_11, %c0_12], %12 {strides = array<i32>} : memref<80x32xf32, #tpu.memory_space<vmem>>, vector<80x32xf32>,
    } else {
    }
    %c0 = arith.constant 0 : index
    %c0_1 = arith.constant 0 : index
    %3 = vector.load %arg8[%c0, %c0_1] : memref<80x32xf32, #tpu.memory_space<vmem>>, vector<80x32xf32>
    %c0_2 = arith.constant 0 : index
    %c0_3 = arith.constant 0 : index
    %4 = vector.load %arg3[%c0_2, %c0_3] : memref<80x64xbf16, #tpu.memory_space<vmem>>, vector<80x64xbf16>
    %c0_4 = arith.constant 0 : index
    %c0_5 = arith.constant 0 : index
    %5 = vector.load %arg4[%c0_4, %c0_5] : memref<64x32xbf16, #tpu.memory_space<vmem>>, vector<64x32xbf16>
    %cst = arith.constant dense<0.000000e+00> : vector<80x32xf32>
    %6 = tpu.matmul %4, %5, %cst {dimension_numbers = #tpu.dot_dimension_numbers<[1], [0], [0], [1], [0, 0, 1, 1], [], []>} : vector<80x64xbf16>, vector<64x32xbf16>, vector<80x32xf32> -> vector<80x32xf32>
    %7 = arith.addf %3, %6 : vector<80x32xf32>
    %c0_6 = arith.constant 0 : index
    %c0_7 = arith.constant 0 : index
    %8 = vector.load %arg8[%c0_6, %c0_7] : memref<80x32xf32, #tpu.memory_space<vmem>>, vector<80x32xf32>
    tpu.vector_store %arg8[%c0_6, %c0_7], %7 {strides = array<i32>} : memref<80x32xf32, #tpu.memory_space<vmem>>, vector<80x32xf32>,
    %c0_i32_8 = arith.constant 0 : i32
    %9 = arith.cmpi eq, %arg2, %c0_i32_8 : i32
    %10 = arith.extui %9 : i1 to i32
    %c0_i32_9 = arith.constant 0 : i32
    %11 = arith.cmpi ne, %10, %c0_i32_9 : i32
    scf.if %11 {
      %c0_10 = arith.constant 0 : index
      %c0_11 = arith.constant 0 : index
      %12 = vector.load %arg8[%c0_10, %c0_11] : memref<80x32xf32, #tpu.memory_space<vmem>>, vector<80x32xf32>
      %c0_12 = arith.constant 0 : index
      %c0_13 = arith.constant 0 : index
      %13 = vector.load %arg5[%c0_12, %c0_13] : memref<1x32xf32, #tpu.memory_space<vmem>>, vector<1x32xf32>
      %14 = vector.broadcast %13 : vector<1x32xf32> to vector<80x32xf32>
      %15 = arith.addf %12, %14 : vector<80x32xf32>
      %c0_14 = arith.constant 0 : index
      %c0_15 = arith.constant 0 : index
      %16 = vector.load %arg6[%c0_14, %c0_15] : memref<80x32xbf16, #tpu.memory_space<vmem>>, vector<80x32xbf16>
      %17 = arith.extf %16 : vector<80x32xbf16> to vector<80x32xf32>
      %18 = arith.addf %15, %17 : vector<80x32xf32>
      %19 = arith.truncf %18 : vector<80x32xf32> to vector<80x32xbf16>
      %c0_16 = arith.constant 0 : index
      %c0_17 = arith.constant 0 : index
      %20 = vector.load %arg7[%c0_16, %c0_17] : memref<80x32xbf16, #tpu.memory_space<vmem>>, vector<80x32xbf16>
      tpu.vector_store %arg7[%c0_16, %c0_17], %19 {strides = array<i32>} : memref<80x32xbf16, #tpu.memory_space<vmem>>, vector<80x32xbf16>,
    } else {
    }
    return
  }
  func.func @transform_0(%arg0: i32, %arg1: i32, %arg2: i32) -> (i32, i32) {
    %c0_i32 = arith.constant 0 : i32
    return %arg0, %arg2 : i32, i32
  }
  func.func @transform_1(%arg0: i32, %arg1: i32, %arg2: i32) -> (i32, i32) {
    %c0_i32 = arith.constant 0 : i32
    return %arg2, %arg1 : i32, i32
  }
  func.func @transform_2(%arg0: i32, %arg1: i32, %arg2: i32) -> (i32, i32) {
    %c0_i32 = arith.constant 0 : i32
    %c0_i32_0 = arith.constant 0 : i32
    return %c0_i32, %arg1 : i32, i32
  }
  func.func @transform_3(%arg0: i32, %arg1: i32, %arg2: i32) -> (i32, i32) {
    %c0_i32 = arith.constant 0 : i32
    return %arg0, %arg1 : i32, i32
  }
  func.func @transform_4(%arg0: i32, %arg1: i32, %arg2: i32) -> (i32, i32) {
    %c0_i32 = arith.constant 0 : i32
    return %arg0, %arg1 : i32, i32
  }
}

module attributes {stable_mosaic.version = 11 : i64} {
  func.func @_layernorm_kernel(%arg0: i32, %arg1: memref<80x32xbf16, #tpu.memory_space<vmem>>, %arg2: memref<1x32xf32, #tpu.memory_space<vmem>>, %arg3: memref<1x32xf32, #tpu.memory_space<vmem>>, %arg4: memref<80x32xbf16, #tpu.memory_space<vmem>>) attributes {dimension_semantics = [#tpu.dimension_semantics<parallel>], iteration_bounds = array<i64: 1>, scalar_prefetch = 0 : i64, scratch_operands = 0 : i64, tpu.core_type = #tpu.core_type<tc>, window_params = [{transform_indices = @transform_0, window_bounds = array<i64: 80, 32>}, {pipeline_mode = #tpu.pipeline_mode<synchronous>, transform_indices = @transform_1, window_bounds = array<i64: 1, 32>}, {pipeline_mode = #tpu.pipeline_mode<synchronous>, transform_indices = @transform_2, window_bounds = array<i64: 1, 32>}, {transform_indices = @transform_3, window_bounds = array<i64: 80, 32>}]} {
    %c0 = arith.constant 0 : index
    %c0_0 = arith.constant 0 : index
    %0 = vector.load %arg1[%c0, %c0_0] : memref<80x32xbf16, #tpu.memory_space<vmem>>, vector<80x32xbf16>
    %1 = arith.extf %0 : vector<80x32xbf16> to vector<80x32xf32>
    %cst = arith.constant dense<0.000000e+00> : vector<80xf32>
    %2 = vector.multi_reduction <add>, %1, %cst [1] : vector<80x32xf32> to vector<80xf32>
    %3 = vector.shape_cast %2 : vector<80xf32> to vector<80x1xf32>
    %cst_1 = arith.constant 3.200000e+01 : f32
    %4 = vector.broadcast %cst_1 : f32 to vector<80x1xf32>
    %5 = arith.divf %3, %4 : vector<80x1xf32>
    %6 = vector.broadcast %5 : vector<80x1xf32> to vector<80x32xf32>
    %7 = arith.subf %1, %6 : vector<80x32xf32>
    %8 = arith.mulf %7, %7 : vector<80x32xf32>
    %cst_2 = arith.constant dense<0.000000e+00> : vector<80xf32>
    %9 = vector.multi_reduction <add>, %8, %cst_2 [1] : vector<80x32xf32> to vector<80xf32>
    %10 = vector.shape_cast %9 : vector<80xf32> to vector<80x1xf32>
    %cst_3 = arith.constant 3.200000e+01 : f32
    %11 = vector.broadcast %cst_3 : f32 to vector<80x1xf32>
    %12 = arith.divf %10, %11 : vector<80x1xf32>
    %cst_4 = arith.constant 9.99999974E-6 : f32
    %13 = vector.broadcast %cst_4 : f32 to vector<80x1xf32>
    %14 = arith.addf %12, %13 : vector<80x1xf32>
    %15 = math.rsqrt %14 : vector<80x1xf32>
    %16 = vector.broadcast %15 : vector<80x1xf32> to vector<80x32xf32>
    %17 = arith.mulf %7, %16 : vector<80x32xf32>
    %c0_5 = arith.constant 0 : index
    %c0_6 = arith.constant 0 : index
    %18 = vector.load %arg2[%c0_5, %c0_6] : memref<1x32xf32, #tpu.memory_space<vmem>>, vector<1x32xf32>
    %19 = vector.broadcast %18 : vector<1x32xf32> to vector<80x32xf32>
    %20 = arith.mulf %17, %19 : vector<80x32xf32>
    %c0_7 = arith.constant 0 : index
    %c0_8 = arith.constant 0 : index
    %21 = vector.load %arg3[%c0_7, %c0_8] : memref<1x32xf32, #tpu.memory_space<vmem>>, vector<1x32xf32>
    %22 = vector.broadcast %21 : vector<1x32xf32> to vector<80x32xf32>
    %23 = arith.addf %20, %22 : vector<80x32xf32>
    %24 = arith.truncf %23 : vector<80x32xf32> to vector<80x32xbf16>
    %c0_9 = arith.constant 0 : index
    %c0_10 = arith.constant 0 : index
    %25 = vector.load %arg4[%c0_9, %c0_10] : memref<80x32xbf16, #tpu.memory_space<vmem>>, vector<80x32xbf16>
    tpu.vector_store %arg4[%c0_9, %c0_10], %24 {strides = array<i32>} : memref<80x32xbf16, #tpu.memory_space<vmem>>, vector<80x32xbf16>,
    return
  }
  func.func @transform_0(%arg0: i32) -> (i32, i32) {
    %c0_i32 = arith.constant 0 : i32
    %c0_i32_0 = arith.constant 0 : i32
    return %arg0, %c0_i32 : i32, i32
  }
  func.func @transform_1(%arg0: i32) -> (i32, i32) {
    %c0_i32 = arith.constant 0 : i32
    %c0_i32_0 = arith.constant 0 : i32
    %c0_i32_1 = arith.constant 0 : i32
    return %c0_i32, %c0_i32_0 : i32, i32
  }
  func.func @transform_2(%arg0: i32) -> (i32, i32) {
    %c0_i32 = arith.constant 0 : i32
    %c0_i32_0 = arith.constant 0 : i32
    %c0_i32_1 = arith.constant 0 : i32
    return %c0_i32, %c0_i32_0 : i32, i32
  }
  func.func @transform_3(%arg0: i32) -> (i32, i32) {
    %c0_i32 = arith.constant 0 : i32
    %c0_i32_0 = arith.constant 0 : i32
    return %arg0, %c0_i32 : i32, i32
  }
}

module attributes {stable_mosaic.version = 11 : i64} {
  func.func @_linear_kernel(%arg0: i32, %arg1: i32, %arg2: i32, %arg3: memref<2x32xbf16, #tpu.memory_space<vmem>>, %arg4: memref<32x10xbf16, #tpu.memory_space<vmem>>, %arg5: memref<1x10xf32, #tpu.memory_space<vmem>>, %arg6: memref<2x10xf32, #tpu.memory_space<vmem>>, %arg7: memref<2x10xf32, #tpu.memory_space<vmem>>) attributes {dimension_semantics = [#tpu.dimension_semantics<parallel>, #tpu.dimension_semantics<parallel>, #tpu.dimension_semantics<arbitrary>], iteration_bounds = array<i64: 1, 1, 1>, scalar_prefetch = 0 : i64, scratch_operands = 1 : i64, tpu.core_type = #tpu.core_type<tc>, window_params = [{transform_indices = @transform_0, window_bounds = array<i64: 2, 32>}, {transform_indices = @transform_1, window_bounds = array<i64: 32, 10>}, {transform_indices = @transform_2, window_bounds = array<i64: 1, 10>}, {transform_indices = @transform_3, window_bounds = array<i64: 2, 10>}]} {
    %c0_i32 = arith.constant 0 : i32
    %0 = arith.cmpi eq, %arg2, %c0_i32 : i32
    %1 = arith.extui %0 : i1 to i32
    %c0_i32_0 = arith.constant 0 : i32
    %2 = arith.cmpi ne, %1, %c0_i32_0 : i32
    scf.if %2 {
      %cst_10 = arith.constant 0.000000e+00 : f32
      %12 = vector.broadcast %cst_10 : f32 to vector<2x10xf32>
      %c0_11 = arith.constant 0 : index
      %c0_12 = arith.constant 0 : index
      %13 = vector.load %arg7[%c0_11, %c0_12] : memref<2x10xf32, #tpu.memory_space<vmem>>, vector<2x10xf32>
      tpu.vector_store %arg7[%c0_11, %c0_12], %12 {strides = array<i32>} : memref<2x10xf32, #tpu.memory_space<vmem>>, vector<2x10xf32>,
    } else {
    }
    %c0 = arith.constant 0 : index
    %c0_1 = arith.constant 0 : index
    %3 = vector.load %arg7[%c0, %c0_1] : memref<2x10xf32, #tpu.memory_space<vmem>>, vector<2x10xf32>
    %c0_2 = arith.constant 0 : index
    %c0_3 = arith.constant 0 : index
    %4 = vector.load %arg3[%c0_2, %c0_3] : memref<2x32xbf16, #tpu.memory_space<vmem>>, vector<2x32xbf16>
    %c0_4 = arith.constant 0 : index
    %c0_5 = arith.constant 0 : index
    %5 = vector.load %arg4[%c0_4, %c0_5] : memref<32x10xbf16, #tpu.memory_space<vmem>>, vector<32x10xbf16>
    %cst = arith.constant dense<0.000000e+00> : vector<2x10xf32>
    %6 = tpu.matmul %4, %5, %cst {dimension_numbers = #tpu.dot_dimension_numbers<[1], [0], [0], [1], [0, 0, 1, 1], [], []>} : vector<2x32xbf16>, vector<32x10xbf16>, vector<2x10xf32> -> vector<2x10xf32>
    %7 = arith.addf %3, %6 : vector<2x10xf32>
    %c0_6 = arith.constant 0 : index
    %c0_7 = arith.constant 0 : index
    %8 = vector.load %arg7[%c0_6, %c0_7] : memref<2x10xf32, #tpu.memory_space<vmem>>, vector<2x10xf32>
    tpu.vector_store %arg7[%c0_6, %c0_7], %7 {strides = array<i32>} : memref<2x10xf32, #tpu.memory_space<vmem>>, vector<2x10xf32>,
    %c0_i32_8 = arith.constant 0 : i32
    %9 = arith.cmpi eq, %arg2, %c0_i32_8 : i32
    %10 = arith.extui %9 : i1 to i32
    %c0_i32_9 = arith.constant 0 : i32
    %11 = arith.cmpi ne, %10, %c0_i32_9 : i32
    scf.if %11 {
      %c0_10 = arith.constant 0 : index
      %c0_11 = arith.constant 0 : index
      %12 = vector.load %arg7[%c0_10, %c0_11] : memref<2x10xf32, #tpu.memory_space<vmem>>, vector<2x10xf32>
      %c0_12 = arith.constant 0 : index
      %c0_13 = arith.constant 0 : index
      %13 = vector.load %arg5[%c0_12, %c0_13] : memref<1x10xf32, #tpu.memory_space<vmem>>, vector<1x10xf32>
      %14 = vector.broadcast %13 : vector<1x10xf32> to vector<2x10xf32>
      %15 = arith.addf %12, %14 : vector<2x10xf32>
      %c0_14 = arith.constant 0 : index
      %c0_15 = arith.constant 0 : index
      %16 = vector.load %arg6[%c0_14, %c0_15] : memref<2x10xf32, #tpu.memory_space<vmem>>, vector<2x10xf32>
      tpu.vector_store %arg6[%c0_14, %c0_15], %15 {strides = array<i32>} : memref<2x10xf32, #tpu.memory_space<vmem>>, vector<2x10xf32>,
    } else {
    }
    return
  }
  func.func @transform_0(%arg0: i32, %arg1: i32, %arg2: i32) -> (i32, i32) {
    %c0_i32 = arith.constant 0 : i32
    return %arg0, %arg2 : i32, i32
  }
  func.func @transform_1(%arg0: i32, %arg1: i32, %arg2: i32) -> (i32, i32) {
    %c0_i32 = arith.constant 0 : i32
    return %arg2, %arg1 : i32, i32
  }
  func.func @transform_2(%arg0: i32, %arg1: i32, %arg2: i32) -> (i32, i32) {
    %c0_i32 = arith.constant 0 : i32
    %c0_i32_0 = arith.constant 0 : i32
    return %c0_i32, %arg1 : i32, i32
  }
  func.func @transform_3(%arg0: i32, %arg1: i32, %arg2: i32) -> (i32, i32) {
    %c0_i32 = arith.constant 0 : i32
    return %arg0, %arg1 : i32, i32
  }
}

</mosaic_0001>

<llo_original>
// kernel: vivit_forward.13
$region0: #{vivit_forward.13}
  #allocation0 [shape = 'u32[]', space=smem, size = 0x4, offset = 0x4, fixed_abs, tag = 'smem constant byte address 0x4 - core index']
  #allocation1 [shape = 'u32[72,128]{1,0:T(1,128)}', space=vmem, size = 0x9000, scoped, tag = 'internal scratch']
  #allocation2 [shape = 'f32[64,32]{1,0:T(8,128)}', space=vmem, size = 0x8000, scoped, tag = 'scratch operand']
  %s0 = inlined_call_operand.vmem [shape: bf16[64,256], index: 0, kind: input, shape index: {}]
  %s1 = inlined_call_operand.vmem [shape: bf16[256,32], index: 1, kind: input, shape index: {}]
  %s2 = inlined_call_operand.vmem [shape: f32[1,32], index: 2, kind: input, shape index: {}]
  %s3 = inlined_call_operand.vmem [shape: bf16[64,32], index: 3, kind: output, shape index: {}]
  %s4 = sld [smem:[#allocation0]]
  $region30: #{vivit_forward.13} parent=0
    _
  %s6 = ssub.s32 1, %s4
  %s7 = scalar_select 0, %s6, %s4
  // Predicated region
  $region2: #{vivit_forward.13} parent=0 // pred_check
    _
  $region3: #{vivit_forward.13} parent=0 // pred_check_branch
    %9 = sbr.rel (0) target = $region5
  $region4: #{vivit_forward.13} parent=0 // pred_region
    _
  $region5: #{vivit_forward.13} parent=0 // pred_fallthru
    _
  // Predicated region
  $region6: #{vivit_forward.13} parent=0 // pred_check
    _
  $region7: #{vivit_forward.13} parent=0 // pred_check_branch
    %11 = sbr.rel (0) target = $region9
  $region8: #{vivit_forward.13} parent=0 // pred_region
    _
  $region9: #{vivit_forward.13} parent=0 // pred_fallthru
    _
  // Predicated region
  $region10: #{vivit_forward.13} parent=0 // pred_check
    _
  $region11: #{vivit_forward.13} parent=0 // pred_check_branch
    %13 = sbr.rel (0) target = $region13
  $region12: #{vivit_forward.13} parent=0 // pred_region
    _
  $region13: #{vivit_forward.13} parent=0 // pred_fallthru
    _
  %p14 = scmp.eq.s32.totalorder 0, 0
  // Predicated region
  $region14: #{vivit_forward.13} parent=0 // pred_check
    %p15 = pneg %p14
  $region15: #{vivit_forward.13} parent=0 // pred_check_branch
    %17 = sbr.rel (%p15) target = $region17
  $region16: #{vivit_forward.13} parent=0 // pred_region
    %vm18 = vcmask 261120
    %19 = vst.msk [vmem:[#allocation2] sm:$0xff] %vm18, 0.0
    %20 = vst.msk [vmem:[#allocation2 + $0x8] sm:$0xff] %vm18, 0.0
    %21 = vst.msk [vmem:[#allocation2 + $0x10] sm:$0xff] %vm18, 0.0
    %22 = vst.msk [vmem:[#allocation2 + $0x18] sm:$0xff] %vm18, 0.0
    %23 = vst.msk [vmem:[#allocation2 + $0x20] sm:$0xff] %vm18, 0.0
    %24 = vst.msk [vmem:[#allocation2 + $0x28] sm:$0xff] %vm18, 0.0
    %25 = vst.msk [vmem:[#allocation2 + $0x30] sm:$0xff] %vm18, 0.0
    %26 = vst.msk [vmem:[#allocation2 + $0x38] sm:$0xff] %vm18, 0.0
  $region17: #{vivit_forward.13} parent=0 // pred_fallthru
    _
  %v27 = vld [vmem:[#allocation2] sm:$0xff]
  %v28 = vld [vmem:[#allocation2 + $0x8] sm:$0xff]
  %v29 = vld [vmem:[#allocation2 + $0x10] sm:$0xff]
  %v30 = vld [vmem:[#allocation2 + $0x18] sm:$0xff]
  %v31 = vld [vmem:[#allocation2 + $0x20] sm:$0xff]
  %v32 = vld [vmem:[#allocation2 + $0x28] sm:$0xff]
  %v33 = vld [vmem:[#allocation2 + $0x30] sm:$0xff]
  %v34 = vld [vmem:[#allocation2 + $0x38] sm:$0xff]
  %v35 = vld [vmem:[%s0] sm:$0xff]
  %v36 = vld [vmem:[%s0 + $0x8] sm:$0xff]
  %v37 = vld [vmem:[%s0 + $0x10] sm:$0xff]
  %v38 = vld [vmem:[%s0 + $0x18] sm:$0xff]
  %v39 = vld [vmem:[%s0 + $0x20] sm:$0xff]
  %v40 = vld [vmem:[%s0 + $0x28] sm:$0xff]
  %v41 = vld [vmem:[%s0 + $0x30] sm:$0xff]
  %v42 = vld [vmem:[%s0 + $0x38] sm:$0xff]
  %v43 = vld [vmem:[%s1] sm:$0xf]
  %v44 = vld [vmem:[%s1 + $0x4] sm:$0xf]
  %v45 = vld [vmem:[%s1 + $0x8] sm:$0xf]
  %v46 = vld [vmem:[%s1 + $0xc] sm:$0xf]
  %v47 = vld [vmem:[%s1 + $0x10] sm:$0xf]
  %v48 = vld [vmem:[%s1 + $0x14] sm:$0xf]
  %v49 = vld [vmem:[%s1 + $0x18] sm:$0xf]
  %v50 = vld [vmem:[%s1 + $0x1c] sm:$0xf]
  %v51 = vld [vmem:[%s1 + $0x20] sm:$0xf]
  %v52 = vld [vmem:[%s1 + $0x24] sm:$0xf]
  %v53 = vld [vmem:[%s1 + $0x28] sm:$0xf]
  %v54 = vld [vmem:[%s1 + $0x2c] sm:$0xf]
  %v55 = vld [vmem:[%s1 + $0x30] sm:$0xf]
  %v56 = vld [vmem:[%s1 + $0x34] sm:$0xf]
  %v57 = vld [vmem:[%s1 + $0x38] sm:$0xf]
  %v58 = vld [vmem:[%s1 + $0x3c] sm:$0xf]
  %v59 = vld [vmem:[%s1 + $0x40] sm:$0xf]
  %v60 = vld [vmem:[%s1 + $0x44] sm:$0xf]
  %v61 = vld [vmem:[%s1 + $0x48] sm:$0xf]
  %v62 = vld [vmem:[%s1 + $0x4c] sm:$0xf]
  %v63 = vld [vmem:[%s1 + $0x50] sm:$0xf]
  %v64 = vld [vmem:[%s1 + $0x54] sm:$0xf]
  %v65 = vld [vmem:[%s1 + $0x58] sm:$0xf]
  %v66 = vld [vmem:[%s1 + $0x5c] sm:$0xf]
  %v67 = vld [vmem:[%s1 + $0x60] sm:$0xf]
  %v68 = vld [vmem:[%s1 + $0x64] sm:$0xf]
  %v69 = vld [vmem:[%s1 + $0x68] sm:$0xf]
  %v70 = vld [vmem:[%s1 + $0x6c] sm:$0xf]
  %v71 = vld [vmem:[%s1 + $0x70] sm:$0xf]
  %v72 = vld [vmem:[%s1 + $0x74] sm:$0xf]
  %v73 = vld [vmem:[%s1 + $0x78] sm:$0xf]
  %v74 = vld [vmem:[%s1 + $0x7c] sm:$0xf]
  %v83 = vunpack.c.l.b16 %v35
  %v84 = vunpack.c.h.b16 %v35
  %v85 = vunpack.c.l.b16 %v36
  %v86 = vunpack.c.h.b16 %v36
  %v87 = vunpack.c.l.b16 %v37
  %v88 = vunpack.c.h.b16 %v37
  %v89 = vunpack.c.l.b16 %v38
  %v90 = vunpack.c.h.b16 %v38
  %v91 = vunpack.c.l.b16 %v39
  %v92 = vunpack.c.h.b16 %v39
  %v93 = vunpack.c.l.b16 %v40
  %v94 = vunpack.c.h.b16 %v40
  %v95 = vunpack.c.l.b16 %v41
  %v96 = vunpack.c.h.b16 %v41
  %v97 = vunpack.c.l.b16 %v42
  %v98 = vunpack.c.h.b16 %v42
  %v99 = vpack.c.b16 %v85, %v83
  %v100 = vpack.c.b16 %v86, %v84
  %v101 = vpack.c.b16 %v89, %v87
  %v102 = vpack.c.b16 %v90, %v88
  %v103 = vpack.c.b16 %v93, %v91
  %v104 = vpack.c.b16 %v94, %v92
  %v105 = vpack.c.b16 %v97, %v95
  %v106 = vpack.c.b16 %v98, %v96
  %v147 = vunpack.c.l.b16 %v43
  %v148 = vunpack.c.l.b16 %v44
  %v149 = vunpack.c.l.b16 %v45
  %v150 = vunpack.c.l.b16 %v46
  %v151 = vunpack.c.l.b16 %v47
  %v152 = vunpack.c.l.b16 %v48
  %v153 = vunpack.c.l.b16 %v49
  %v154 = vunpack.c.l.b16 %v50
  %v155 = vunpack.c.l.b16 %v51
  %v156 = vunpack.c.l.b16 %v52
  %v157 = vunpack.c.l.b16 %v53
  %v158 = vunpack.c.l.b16 %v54
  %v159 = vunpack.c.l.b16 %v55
  %v160 = vunpack.c.l.b16 %v56
  %v161 = vunpack.c.l.b16 %v57
  %v162 = vunpack.c.l.b16 %v58
  %v163 = vunpack.c.l.b16 %v59
  %v164 = vunpack.c.l.b16 %v60
  %v165 = vunpack.c.l.b16 %v61
  %v166 = vunpack.c.l.b16 %v62
  %v167 = vunpack.c.l.b16 %v63
  %v168 = vunpack.c.l.b16 %v64
  %v169 = vunpack.c.l.b16 %v65
  %v170 = vunpack.c.l.b16 %v66
  %v171 = vunpack.c.l.b16 %v67
  %v172 = vunpack.c.l.b16 %v68
  %v173 = vunpack.c.l.b16 %v69
  %v174 = vunpack.c.l.b16 %v70
  %v175 = vunpack.c.l.b16 %v71
  %v176 = vunpack.c.l.b16 %v72
  %v177 = vunpack.c.l.b16 %v73
  %v178 = vunpack.c.l.b16 %v74
  %v179 = vpack.c.b16 %v148, %v147
  %v180 = vpack.c.b16 %v150, %v149
  %v181 = vpack.c.b16 %v152, %v151
  %v182 = vpack.c.b16 %v154, %v153
  %v183 = vpack.c.b16 %v156, %v155
  %v184 = vpack.c.b16 %v158, %v157
  %v185 = vpack.c.b16 %v160, %v159
  %v186 = vpack.c.b16 %v162, %v161
  %v187 = vpack.c.b16 %v164, %v163
  %v188 = vpack.c.b16 %v166, %v165
  %v189 = vpack.c.b16 %v168, %v167
  %v190 = vpack.c.b16 %v170, %v169
  %v191 = vpack.c.b16 %v172, %v171
  %v192 = vpack.c.b16 %v174, %v173
  %v193 = vpack.c.b16 %v176, %v175
  %v194 = vpack.c.b16 %v178, %v177
  %211 = vmatpush.bf16.msra.mxu0 %v186
  %212 = vmatpush.bf16.msra.mxu0 %v185
  %213 = vmatpush.bf16.msra.mxu0 %v184
  %214 = vmatpush.bf16.msra.mxu0 %v183
  %215 = vmatpush.bf16.msra.mxu0 %v182
  %216 = vmatpush.bf16.msra.mxu0 %v181
  %217 = vmatpush.bf16.msra.mxu0 %v180
  %218 = vmatpush.bf16.msra.mxu0 %v179
  %219 = vmatmul.bf16.gmra.mxu0 %v99
  %v220 = vpop.f32.mrf.mxu0
  %v221 = vadd.f32 0.0, %v220
  %v222 = vpop.f32.mrf.mxu0
  %v223 = vadd.f32 0.0, %v222
  %224 = vmatmul.bf16.gmra.mxu0 %v101
  %v225 = vpop.f32.mrf.mxu0
  %v226 = vadd.f32 0.0, %v225
  %v227 = vpop.f32.mrf.mxu0
  %v228 = vadd.f32 0.0, %v227
  %229 = vmatmul.bf16.gmra.mxu0 %v103
  %v230 = vpop.f32.mrf.mxu0
  %v231 = vadd.f32 0.0, %v230
  %v232 = vpop.f32.mrf.mxu0
  %v233 = vadd.f32 0.0, %v232
  %234 = vmatmul.bf16.gmra.mxu0 %v105
  %v235 = vpop.f32.mrf.mxu0
  %v236 = vadd.f32 0.0, %v235
  %v237 = vpop.f32.mrf.mxu0
  %v238 = vadd.f32 0.0, %v237
  %239 = vdwg.mxu0
  %240 = vmatpush.bf16.msra.mxu0 %v194
  %241 = vmatpush.bf16.msra.mxu0 %v193
  %242 = vmatpush.bf16.msra.mxu0 %v192
  %243 = vmatpush.bf16.msra.mxu0 %v191
  %244 = vmatpush.bf16.msra.mxu0 %v190
  %245 = vmatpush.bf16.msra.mxu0 %v189
  %246 = vmatpush.bf16.msra.mxu0 %v188
  %247 = vmatpush.bf16.msra.mxu0 %v187
  %248 = vmatmul.bf16.gmra.mxu0 %v100
  %v249 = vpop.f32.mrf.mxu0
  %v250 = vadd.f32 %v221, %v249
  %v251 = vpop.f32.mrf.mxu0
  %v252 = vadd.f32 %v223, %v251
  %253 = vmatmul.bf16.gmra.mxu0 %v102
  %v254 = vpop.f32.mrf.mxu0
  %v255 = vadd.f32 %v226, %v254
  %v256 = vpop.f32.mrf.mxu0
  %v257 = vadd.f32 %v228, %v256
  %258 = vmatmul.bf16.gmra.mxu0 %v104
  %v259 = vpop.f32.mrf.mxu0
  %v260 = vadd.f32 %v231, %v259
  %v261 = vpop.f32.mrf.mxu0
  %v262 = vadd.f32 %v233, %v261
  %263 = vmatmul.bf16.gmra.mxu0 %v106
  %v264 = vpop.f32.mrf.mxu0
  %v265 = vadd.f32 %v236, %v264
  %v266 = vpop.f32.mrf.mxu0
  %v267 = vadd.f32 %v238, %v266
  %268 = vdwg.mxu0
  %v269 = vadd.f32 %v27, %v250
  %v270 = vadd.f32 %v28, %v252
  %v271 = vadd.f32 %v29, %v255
  %v272 = vadd.f32 %v30, %v257
  %v273 = vadd.f32 %v31, %v260
  %v274 = vadd.f32 %v32, %v262
  %v275 = vadd.f32 %v33, %v265
  %v276 = vadd.f32 %v34, %v267
  %vm277 = vcmask 261120
  %278 = vst.msk [vmem:[#allocation2] sm:$0xff] %vm277, %v269
  %279 = vst.msk [vmem:[#allocation2 + $0x8] sm:$0xff] %vm277, %v270
  %280 = vst.msk [vmem:[#allocation2 + $0x10] sm:$0xff] %vm277, %v271
  %281 = vst.msk [vmem:[#allocation2 + $0x18] sm:$0xff] %vm277, %v272
  %282 = vst.msk [vmem:[#allocation2 + $0x20] sm:$0xff] %vm277, %v273
  %283 = vst.msk [vmem:[#allocation2 + $0x28] sm:$0xff] %vm277, %v274
  %284 = vst.msk [vmem:[#allocation2 + $0x30] sm:$0xff] %vm277, %v275
  %285 = vst.msk [vmem:[#allocation2 + $0x38] sm:$0xff] %vm277, %v276
  // Predicated region
  $region18: #{vivit_forward.13} parent=0 // pred_check
    %p286 = pneg %p14
  $region19: #{vivit_forward.13} parent=0 // pred_check_branch
    %288 = sbr.rel (%p286) target = $region21
  $region20: #{vivit_forward.13} parent=0 // pred_region
    %v289 = vld [vmem:[#allocation2] sm:$0xff]
    %v290 = vld [vmem:[#allocation2 + $0x8] sm:$0xff]
    %v291 = vld [vmem:[#allocation2 + $0x10] sm:$0xff]
    %v292 = vld [vmem:[#allocation2 + $0x18] sm:$0xff]
    %v293 = vld [vmem:[#allocation2 + $0x20] sm:$0xff]
    %v294 = vld [vmem:[#allocation2 + $0x28] sm:$0xff]
    %v295 = vld [vmem:[#allocation2 + $0x30] sm:$0xff]
    %v296 = vld [vmem:[#allocation2 + $0x38] sm:$0xff]
    %v297 = vld [vmem:[%s2] sm:$0x1]
    %v299 = vperm.slane %v297, 0
    %v301 = vadd.f32 %v289, %v299
    %v302 = vadd.f32 %v290, %v299
    %v303 = vadd.f32 %v291, %v299
    %v304 = vadd.f32 %v292, %v299
    %v305 = vadd.f32 %v293, %v299
    %v306 = vadd.f32 %v294, %v299
    %v307 = vadd.f32 %v295, %v299
    %v308 = vadd.f32 %v296, %v299
    %v309 = vpack.c.bf16 %v301, %v301
    %v310 = vpack.c.bf16 %v302, %v302
    %v311 = vpack.c.bf16 %v303, %v303
    %v312 = vpack.c.bf16 %v304, %v304
    %v313 = vpack.c.bf16 %v305, %v305
    %v314 = vpack.c.bf16 %v306, %v306
    %v315 = vpack.c.bf16 %v307, %v307
    %v316 = vpack.c.bf16 %v308, %v308
    %vm317 = vcmask 257024
    %318 = vst.msk [vmem:[%s3] sm:$0xf] %vm317, %v309
    %319 = vst.msk [vmem:[%s3 + $0x4] sm:$0xf] %vm317, %v310
    %320 = vst.msk [vmem:[%s3 + $0x8] sm:$0xf] %vm317, %v311
    %321 = vst.msk [vmem:[%s3 + $0xc] sm:$0xf] %vm317, %v312
    %322 = vst.msk [vmem:[%s3 + $0x10] sm:$0xf] %vm317, %v313
    %323 = vst.msk [vmem:[%s3 + $0x14] sm:$0xf] %vm317, %v314
    %324 = vst.msk [vmem:[%s3 + $0x18] sm:$0xf] %vm317, %v315
    %325 = vst.msk [vmem:[%s3 + $0x1c] sm:$0xf] %vm317, %v316
  $region21: #{vivit_forward.13} parent=0 // pred_fallthru
    _
  // Predicated region
  $region22: #{vivit_forward.13} parent=0 // pred_check
    _
  $region23: #{vivit_forward.13} parent=0 // pred_check_branch
    %327 = sbr.rel (0) target = $region25
  $region24: #{vivit_forward.13} parent=0 // pred_region
    _
  $region25: #{vivit_forward.13} parent=0 // pred_fallthru
    _
  // Predicated region
  $region26: #{vivit_forward.13} parent=0 // pred_check
    _
  $region27: #{vivit_forward.13} parent=0 // pred_check_branch
    %329 = sbr.rel (0) target = $region29
  $region28: #{vivit_forward.13} parent=0 // pred_region
    _
  $region29: #{vivit_forward.13} parent=0 // pred_fallthru
    _

// kernel: vivit_forward.14
$region0: #{vivit_forward.14}
  #allocation0 [shape = 'u32[]', space=smem, size = 0x4, offset = 0x4, fixed_abs, tag = 'smem constant byte address 0x4 - core index']
  #allocation1 [shape = 'u32[72,128]{1,0:T(1,128)}', space=vmem, size = 0x9000, scoped, tag = 'internal scratch']
  #allocation2 [shape = 'bf16[80,32]{1,0:T(8,128)(2,1)}', space=vmem, size = 0x5000, scoped, tag = 'scratch operand']
  %s0 = inlined_call_operand.vmem [shape: bf16[80,32], index: 0, kind: input, shape index: {}]
  %s1 = inlined_call_operand.vmem [shape: f32[1,32], index: 1, kind: input, shape index: {}]
  %s2 = inlined_call_operand.vmem [shape: f32[1,32], index: 2, kind: input, shape index: {}]
  %s3 = inlined_call_operand.vmem [shape: bf16[32,96], index: 3, kind: input, shape index: {}]
  %s4 = inlined_call_operand.vmem [shape: f32[1,96], index: 4, kind: input, shape index: {}]
  %s5 = inlined_call_operand.vmem [shape: bf16[80,96], index: 5, kind: output, shape index: {}]
  %s6 = sld [smem:[#allocation0]]
  $region34: #{vivit_forward.14} parent=0
    _
  %s8 = ssub.s32 1, %s6
  %s9 = scalar_select 0, %s8, %s6
  // Predicated region
  $region2: #{vivit_forward.14} parent=0 // pred_check
    _
  $region3: #{vivit_forward.14} parent=0 // pred_check_branch
    %11 = sbr.rel (0) target = $region5
  $region4: #{vivit_forward.14} parent=0 // pred_region
    _
  $region5: #{vivit_forward.14} parent=0 // pred_fallthru
    _
  // Predicated region
  $region6: #{vivit_forward.14} parent=0 // pred_check
    _
  $region7: #{vivit_forward.14} parent=0 // pred_check_branch
    %13 = sbr.rel (0) target = $region9
  $region8: #{vivit_forward.14} parent=0 // pred_region
    _
  $region9: #{vivit_forward.14} parent=0 // pred_fallthru
    _
  // Predicated region
  $region10: #{vivit_forward.14} parent=0 // pred_check
    _
  $region11: #{vivit_forward.14} parent=0 // pred_check_branch
    %15 = sbr.rel (0) target = $region13
  $region12: #{vivit_forward.14} parent=0 // pred_region
    _
  $region13: #{vivit_forward.14} parent=0 // pred_fallthru
    _
  // Predicated region
  $region14: #{vivit_forward.14} parent=0 // pred_check
    _
  $region15: #{vivit_forward.14} parent=0 // pred_check_branch
    %17 = sbr.rel (0) target = $region17
  $region16: #{vivit_forward.14} parent=0 // pred_region
    _
  $region17: #{vivit_forward.14} parent=0 // pred_fallthru
    _
  // Predicated region
  $region18: #{vivit_forward.14} parent=0 // pred_check
    _
  $region19: #{vivit_forward.14} parent=0 // pred_check_branch
    %19 = sbr.rel (0) target = $region21
  $region20: #{vivit_forward.14} parent=0 // pred_region
    _
  $region21: #{vivit_forward.14} parent=0 // pred_fallthru
    _
  %p21 = scmp.eq.s32.totalorder 0, 0
  // Predicated region
  $region22: #{vivit_forward.14} parent=0 // pred_check
    %p22 = pneg %p21
  $region23: #{vivit_forward.14} parent=0 // pred_check_branch
    %24 = sbr.rel (%p22) target = $region25
  $region24: #{vivit_forward.14} parent=0 // pred_region
    %v25 = vld [vmem:[%s0] sm:$0xf]
    %v26 = vld [vmem:[%s0 + $0x4] sm:$0xf]
    %v27 = vld [vmem:[%s0 + $0x8] sm:$0xf]
    %v28 = vld [vmem:[%s0 + $0xc] sm:$0xf]
    %v29 = vld [vmem:[%s0 + $0x10] sm:$0xf]
    %v30 = vld [vmem:[%s0 + $0x14] sm:$0xf]
    %v31 = vld [vmem:[%s0 + $0x18] sm:$0xf]
    %v32 = vld [vmem:[%s0 + $0x1c] sm:$0xf]
    %v33 = vld [vmem:[%s0 + $0x20] sm:$0xf]
    %v34 = vld [vmem:[%s0 + $0x24] sm:$0xf]
    %v35 = vunpack.c.l.bf16 %v25
    %v36 = vunpack.c.l.bf16 %v26
    %v37 = vunpack.c.l.bf16 %v27
    %v38 = vunpack.c.l.bf16 %v28
    %v39 = vunpack.c.l.bf16 %v29
    %v40 = vunpack.c.l.bf16 %v30
    %v41 = vunpack.c.l.bf16 %v31
    %v42 = vunpack.c.l.bf16 %v32
    %v43 = vunpack.c.l.bf16 %v33
    %v44 = vunpack.c.l.bf16 %v34
    %vm45 = vcmask 261120
    %v46 = vsel %vm45, %v35, 0.0
    %47 = vadd.xlane.f32.xlu0 %v46
    %v48 = vpop.xlane.xlu0 %47
    %v49 = vsel %vm45, %v36, 0.0
    %50 = vadd.xlane.f32.xlu0 %v49
    %v51 = vpop.xlane.xlu0 %50
    %v52 = vsel %vm45, %v37, 0.0
    %53 = vadd.xlane.f32.xlu0 %v52
    %v54 = vpop.xlane.xlu0 %53
    %v55 = vsel %vm45, %v38, 0.0
    %56 = vadd.xlane.f32.xlu0 %v55
    %v57 = vpop.xlane.xlu0 %56
    %v58 = vsel %vm45, %v39, 0.0
    %59 = vadd.xlane.f32.xlu0 %v58
    %v60 = vpop.xlane.xlu0 %59
    %v61 = vsel %vm45, %v40, 0.0
    %62 = vadd.xlane.f32.xlu0 %v61
    %v63 = vpop.xlane.xlu0 %62
    %v64 = vsel %vm45, %v41, 0.0
    %65 = vadd.xlane.f32.xlu0 %v64
    %v66 = vpop.xlane.xlu0 %65
    %v67 = vsel %vm45, %v42, 0.0
    %68 = vadd.xlane.f32.xlu0 %v67
    %v69 = vpop.xlane.xlu0 %68
    %v70 = vsel %vm45, %v43, 0.0
    %71 = vadd.xlane.f32.xlu0 %v70
    %v72 = vpop.xlane.xlu0 %71
    %v73 = vsel %vm45, %v44, 0.0
    %74 = vadd.xlane.f32.xlu0 %v73
    %v75 = vpop.xlane.xlu0 %74
    %v76 = vrcp.pop 32.0
    %v77 = vmul.f32 32.0, %v76
    %v78 = vsub.f32 1.0, %v77
    %v79 = vmul.f32 %v76, %v78
    %v80 = vadd.f32 %v76, %v79
    %vm81 = vweird.f32 %v76
    %v82 = vsel %vm81, %v76, %v80
    %v83 = vmul.f32 %v48, %v82
    %v84 = vmul.f32 %v51, %v82
    %v85 = vmul.f32 %v54, %v82
    %v86 = vmul.f32 %v57, %v82
    %v87 = vmul.f32 %v60, %v82
    %v88 = vmul.f32 %v63, %v82
    %v89 = vmul.f32 %v66, %v82
    %v90 = vmul.f32 %v69, %v82
    %v91 = vmul.f32 %v72, %v82
    %v92 = vmul.f32 %v75, %v82
    %v93 = vsub.f32 %v35, %v83
    %v94 = vsub.f32 %v36, %v84
    %v95 = vsub.f32 %v37, %v85
    %v96 = vsub.f32 %v38, %v86
    %v97 = vsub.f32 %v39, %v87
    %v98 = vsub.f32 %v40, %v88
    %v99 = vsub.f32 %v41, %v89
    %v100 = vsub.f32 %v42, %v90
    %v101 = vsub.f32 %v43, %v91
    %v102 = vsub.f32 %v44, %v92
    %v103 = vmul.f32 %v93, %v93
    %v104 = vmul.f32 %v94, %v94
    %v105 = vmul.f32 %v95, %v95
    %v106 = vmul.f32 %v96, %v96
    %v107 = vmul.f32 %v97, %v97
    %v108 = vmul.f32 %v98, %v98
    %v109 = vmul.f32 %v99, %v99
    %v110 = vmul.f32 %v100, %v100
    %v111 = vmul.f32 %v101, %v101
    %v112 = vmul.f32 %v102, %v102
    %v113 = vsel %vm45, %v103, 0.0
    %114 = vadd.xlane.f32.xlu0 %v113
    %v115 = vpop.xlane.xlu0 %114
    %v116 = vsel %vm45, %v104, 0.0
    %117 = vadd.xlane.f32.xlu0 %v116
    %v118 = vpop.xlane.xlu0 %117
    %v119 = vsel %vm45, %v105, 0.0
    %120 = vadd.xlane.f32.xlu0 %v119
    %v121 = vpop.xlane.xlu0 %120
    %v122 = vsel %vm45, %v106, 0.0
    %123 = vadd.xlane.f32.xlu0 %v122
    %v124 = vpop.xlane.xlu0 %123
    %v125 = vsel %vm45, %v107, 0.0
    %126 = vadd.xlane.f32.xlu0 %v125
    %v127 = vpop.xlane.xlu0 %126
    %v128 = vsel %vm45, %v108, 0.0
    %129 = vadd.xlane.f32.xlu0 %v128
    %v130 = vpop.xlane.xlu0 %129
    %v131 = vsel %vm45, %v109, 0.0
    %132 = vadd.xlane.f32.xlu0 %v131
    %v133 = vpop.xlane.xlu0 %132
    %v134 = vsel %vm45, %v110, 0.0
    %135 = vadd.xlane.f32.xlu0 %v134
    %v136 = vpop.xlane.xlu0 %135
    %v137 = vsel %vm45, %v111, 0.0
    %138 = vadd.xlane.f32.xlu0 %v137
    %v139 = vpop.xlane.xlu0 %138
    %v140 = vsel %vm45, %v112, 0.0
    %141 = vadd.xlane.f32.xlu0 %v140
    %v142 = vpop.xlane.xlu0 %141
    %v143 = vmul.f32 %v115, %v82
    %v144 = vmul.f32 %v118, %v82
    %v145 = vmul.f32 %v121, %v82
    %v146 = vmul.f32 %v124, %v82
    %v147 = vmul.f32 %v127, %v82
    %v148 = vmul.f32 %v130, %v82
    %v149 = vmul.f32 %v133, %v82
    %v150 = vmul.f32 %v136, %v82
    %v151 = vmul.f32 %v139, %v82
    %v152 = vmul.f32 %v142, %v82
    %v153 = vadd.f32 %v143, 1e-05
    %v154 = vadd.f32 %v144, 1e-05
    %v155 = vadd.f32 %v145, 1e-05
    %v156 = vadd.f32 %v146, 1e-05
    %v157 = vadd.f32 %v147, 1e-05
    %v158 = vadd.f32 %v148, 1e-05
    %v159 = vadd.f32 %v149, 1e-05
    %v160 = vadd.f32 %v150, 1e-05
    %v161 = vadd.f32 %v151, 1e-05
    %v162 = vadd.f32 %v152, 1e-05
    %v163 = vrsqrt.pop %v153
    %v164 = vmul.f32 %v163, %v153
    %v165 = vmul.f32 %v164, %v163
    %v166 = vmul.f32 0.5, %v165
    %v167 = vsub.f32 1.5, %v166
    %v168 = vmul.f32 %v163, %v167
    %vm169 = vweird.f32 %v153
    %vm170 = vweird.f32 %v163
    %vm171 = vmor %vm169, %vm170
    %v172 = vsel %vm171, %v163, %v168
    %v173 = vrsqrt.pop %v154
    %v174 = vmul.f32 %v173, %v154
    %v175 = vmul.f32 %v174, %v173
    %v176 = vmul.f32 0.5, %v175
    %v177 = vsub.f32 1.5, %v176
    %v178 = vmul.f32 %v173, %v177
    %vm179 = vweird.f32 %v154
    %vm180 = vweird.f32 %v173
    %vm181 = vmor %vm179, %vm180
    %v182 = vsel %vm181, %v173, %v178
    %v183 = vrsqrt.pop %v155
    %v184 = vmul.f32 %v183, %v155
    %v185 = vmul.f32 %v184, %v183
    %v186 = vmul.f32 0.5, %v185
    %v187 = vsub.f32 1.5, %v186
    %v188 = vmul.f32 %v183, %v187
    %vm189 = vweird.f32 %v155
    %vm190 = vweird.f32 %v183
    %vm191 = vmor %vm189, %vm190
    %v192 = vsel %vm191, %v183, %v188
    %v193 = vrsqrt.pop %v156
    %v194 = vmul.f32 %v193, %v156
    %v195 = vmul.f32 %v194, %v193
    %v196 = vmul.f32 0.5, %v195
    %v197 = vsub.f32 1.5, %v196
    %v198 = vmul.f32 %v193, %v197
    %vm199 = vweird.f32 %v156
    %vm200 = vweird.f32 %v193
    %vm201 = vmor %vm199, %vm200
    %v202 = vsel %vm201, %v193, %v198
    %v203 = vrsqrt.pop %v157
    %v204 = vmul.f32 %v203, %v157
    %v205 = vmul.f32 %v204, %v203
    %v206 = vmul.f32 0.5, %v205
    %v207 = vsub.f32 1.5, %v206
    %v208 = vmul.f32 %v203, %v207
    %vm209 = vweird.f32 %v157
    %vm210 = vweird.f32 %v203
    %vm211 = vmor %vm209, %vm210
    %v212 = vsel %vm211, %v203, %v208
    %v213 = vrsqrt.pop %v158
    %v214 = vmul.f32 %v213, %v158
    %v215 = vmul.f32 %v214, %v213
    %v216 = vmul.f32 0.5, %v215
    %v217 = vsub.f32 1.5, %v216
    %v218 = vmul.f32 %v213, %v217
    %vm219 = vweird.f32 %v158
    %vm220 = vweird.f32 %v213
    %vm221 = vmor %vm219, %vm220
    %v222 = vsel %vm221, %v213, %v218
    %v223 = vrsqrt.pop %v159
    %v224 = vmul.f32 %v223, %v159
    %v225 = vmul.f32 %v224, %v223
    %v226 = vmul.f32 0.5, %v225
    %v227 = vsub.f32 1.5, %v226
    %v228 = vmul.f32 %v223, %v227
    %vm229 = vweird.f32 %v159
    %vm230 = vweird.f32 %v223
    %vm231 = vmor %vm229, %vm230
    %v232 = vsel %vm231, %v223, %v228
    %v233 = vrsqrt.pop %v160
    %v234 = vmul.f32 %v233, %v160
    %v235 = vmul.f32 %v234, %v233
    %v236 = vmul.f32 0.5, %v235
    %v237 = vsub.f32 1.5, %v236
    %v238 = vmul.f32 %v233, %v237
    %vm239 = vweird.f32 %v160
    %vm240 = vweird.f32 %v233
    %vm241 = vmor %vm239, %vm240
    %v242 = vsel %vm241, %v233, %v238
    %v243 = vrsqrt.pop %v161
    %v244 = vmul.f32 %v243, %v161
    %v245 = vmul.f32 %v244, %v243
    %v246 = vmul.f32 0.5, %v245
    %v247 = vsub.f32 1.5, %v246
    %v248 = vmul.f32 %v243, %v247
    %vm249 = vweird.f32 %v161
    %vm250 = vweird.f32 %v243
    %vm251 = vmor %vm249, %vm250
    %v252 = vsel %vm251, %v243, %v248
    %v253 = vrsqrt.pop %v162
    %v254 = vmul.f32 %v253, %v162
    %v255 = vmul.f32 %v254, %v253
    %v256 = vmul.f32 0.5, %v255
    %v257 = vsub.f32 1.5, %v256
    %v258 = vmul.f32 %v253, %v257
    %vm259 = vweird.f32 %v162
    %vm260 = vweird.f32 %v253
    %vm261 = vmor %vm259, %vm260
    %v262 = vsel %vm261, %v253, %v258
    %v263 = vmul.f32 %v93, %v172
    %v264 = vmul.f32 %v94, %v182
    %v265 = vmul.f32 %v95, %v192
    %v266 = vmul.f32 %v96, %v202
    %v267 = vmul.f32 %v97, %v212
    %v268 = vmul.f32 %v98, %v222
    %v269 = vmul.f32 %v99, %v232
    %v270 = vmul.f32 %v100, %v242
    %v271 = vmul.f32 %v101, %v252
    %v272 = vmul.f32 %v102, %v262
    %v273 = vld [vmem:[%s1] sm:$0x1]
    %v275 = vperm.slane %v273, 0
    %v277 = vmul.f32 %v263, %v275
    %v278 = vmul.f32 %v264, %v275
    %v279 = vmul.f32 %v265, %v275
    %v280 = vmul.f32 %v266, %v275
    %v281 = vmul.f32 %v267, %v275
    %v282 = vmul.f32 %v268, %v275
    %v283 = vmul.f32 %v269, %v275
    %v284 = vmul.f32 %v270, %v275
    %v285 = vmul.f32 %v271, %v275
    %v286 = vmul.f32 %v272, %v275
    %v287 = vld [vmem:[%s2] sm:$0x1]
    %v289 = vperm.slane %v287, 0
    %v291 = vadd.f32 %v277, %v289
    %v292 = vadd.f32 %v278, %v289
    %v293 = vadd.f32 %v279, %v289
    %v294 = vadd.f32 %v280, %v289
    %v295 = vadd.f32 %v281, %v289
    %v296 = vadd.f32 %v282, %v289
    %v297 = vadd.f32 %v283, %v289
    %v298 = vadd.f32 %v284, %v289
    %v299 = vadd.f32 %v285, %v289
    %v300 = vadd.f32 %v286, %v289
    %v301 = vpack.c.bf16 %v291, %v291
    %v302 = vpack.c.bf16 %v292, %v292
    %v303 = vpack.c.bf16 %v293, %v293
    %v304 = vpack.c.bf16 %v294, %v294
    %v305 = vpack.c.bf16 %v295, %v295
    %v306 = vpack.c.bf16 %v296, %v296
    %v307 = vpack.c.bf16 %v297, %v297
    %v308 = vpack.c.bf16 %v298, %v298
    %v309 = vpack.c.bf16 %v299, %v299
    %v310 = vpack.c.bf16 %v300, %v300
    %vm311 = vcmask 257024
    %312 = vst.msk [vmem:[#allocation2] sm:$0xf] %vm311, %v301
    %313 = vst.msk [vmem:[#allocation2 + $0x4] sm:$0xf] %vm311, %v302
    %314 = vst.msk [vmem:[#allocation2 + $0x8] sm:$0xf] %vm311, %v303
    %315 = vst.msk [vmem:[#allocation2 + $0xc] sm:$0xf] %vm311, %v304
    %316 = vst.msk [vmem:[#allocation2 + $0x10] sm:$0xf] %vm311, %v305
    %317 = vst.msk [vmem:[#allocation2 + $0x14] sm:$0xf] %vm311, %v306
    %318 = vst.msk [vmem:[#allocation2 + $0x18] sm:$0xf] %vm311, %v307
    %319 = vst.msk [vmem:[#allocation2 + $0x1c] sm:$0xf] %vm311, %v308
    %320 = vst.msk [vmem:[#allocation2 + $0x20] sm:$0xf] %vm311, %v309
    %321 = vst.msk [vmem:[#allocation2 + $0x24] sm:$0xf] %vm311, %v310
  $region25: #{vivit_forward.14} parent=0 // pred_fallthru
    _
  %v322 = vld [vmem:[#allocation2] sm:$0xf]
  %v323 = vld [vmem:[#allocation2 + $0x4] sm:$0xf]
  %v324 = vld [vmem:[#allocation2 + $0x8] sm:$0xf]
  %v325 = vld [vmem:[#allocation2 + $0xc] sm:$0xf]
  %v326 = vld [vmem:[#allocation2 + $0x10] sm:$0xf]
  %v327 = vld [vmem:[#allocation2 + $0x14] sm:$0xf]
  %v328 = vld [vmem:[#allocation2 + $0x18] sm:$0xf]
  %v329 = vld [vmem:[#allocation2 + $0x1c] sm:$0xf]
  %v330 = vld [vmem:[#allocation2 + $0x20] sm:$0xf]
  %v331 = vld [vmem:[#allocation2 + $0x24] sm:$0xf]
  %v332 = vld [vmem:[%s3] sm:$0xf]
  %v333 = vld [vmem:[%s3 + $0x4] sm:$0xf]
  %v334 = vld [vmem:[%s3 + $0x8] sm:$0xf]
  %v335 = vld [vmem:[%s3 + $0xc] sm:$0xf]
  %v336 = vld [vmem:[%s4] sm:$0x1]
  %v338 = vperm.slane %v336, 0
  %v350 = vunpack.c.l.b16 %v322
  %v351 = vunpack.c.l.b16 %v323
  %v352 = vunpack.c.l.b16 %v324
  %v353 = vunpack.c.l.b16 %v325
  %v354 = vunpack.c.l.b16 %v326
  %v355 = vunpack.c.l.b16 %v327
  %v356 = vunpack.c.l.b16 %v328
  %v357 = vunpack.c.l.b16 %v329
  %v358 = vunpack.c.l.b16 %v330
  %v359 = vunpack.c.l.b16 %v331
  %v360 = vpack.c.b16 %v351, %v350
  %v361 = vpack.c.b16 %v353, %v352
  %v362 = vpack.c.b16 %v355, %v354
  %v363 = vpack.c.b16 %v357, %v356
  %v364 = vpack.c.b16 %v359, %v358
  %v369 = vunpack.c.l.b16 %v332
  %v370 = vunpack.c.l.b16 %v333
  %v371 = vunpack.c.l.b16 %v334
  %v372 = vunpack.c.l.b16 %v335
  %v373 = vpack.c.b16 %v370, %v369
  %v374 = vpack.c.b16 %v372, %v371
  %vm377 = vcmask 261120
  %v379 = vsel %vm377, %v360, 0
  %v382 = vsel %vm377, %v361, 0
  %v385 = vsel %vm377, %v362, 0
  %v388 = vsel %vm377, %v363, 0
  %v391 = vsel %vm377, %v364, 0
  %393 = vmatpush.bf16.msra.mxu0 0
  %394 = vmatpush.bf16.msra.mxu0 0
  %395 = vmatpush.bf16.msra.mxu0 0
  %396 = vmatpush.bf16.msra.mxu0 0
  %397 = vmatpush.bf16.msra.mxu0 0
  %398 = vmatpush.bf16.msra.mxu0 0
  %399 = vmatpush.bf16.msra.mxu0 %v374
  %400 = vmatpush.bf16.msra.mxu0 %v373
  %401 = vmatmul.bf16.gmra.mxu0 %v379
  %v402 = vpop.f32.mrf.mxu0
  %v403 = vadd.f32 %v338, %v402
  %v404 = vpop.f32.mrf.mxu0
  %v405 = vadd.f32 %v338, %v404
  %406 = vmatmul.bf16.gmra.mxu0 %v382
  %v407 = vpop.f32.mrf.mxu0
  %v408 = vadd.f32 %v338, %v407
  %v409 = vpop.f32.mrf.mxu0
  %v410 = vadd.f32 %v338, %v409
  %411 = vmatmul.bf16.gmra.mxu0 %v385
  %v412 = vpop.f32.mrf.mxu0
  %v413 = vadd.f32 %v338, %v412
  %v414 = vpop.f32.mrf.mxu0
  %v415 = vadd.f32 %v338, %v414
  %416 = vmatmul.bf16.gmra.mxu0 %v388
  %v417 = vpop.f32.mrf.mxu0
  %v418 = vadd.f32 %v338, %v417
  %v419 = vpop.f32.mrf.mxu0
  %v420 = vadd.f32 %v338, %v419
  %421 = vmatmul.bf16.gmra.mxu0 %v391
  %v422 = vpop.f32.mrf.mxu0
  %v423 = vadd.f32 %v338, %v422
  %v424 = vpop.f32.mrf.mxu0
  %v425 = vadd.f32 %v338, %v424
  %426 = vdwg.mxu0
  %v427 = vpack.c.bf16 %v403, %v403
  %v428 = vpack.c.bf16 %v405, %v405
  %v429 = vpack.c.bf16 %v408, %v408
  %v430 = vpack.c.bf16 %v410, %v410
  %v431 = vpack.c.bf16 %v413, %v413
  %v432 = vpack.c.bf16 %v415, %v415
  %v433 = vpack.c.bf16 %v418, %v418
  %v434 = vpack.c.bf16 %v420, %v420
  %v435 = vpack.c.bf16 %v423, %v423
  %v436 = vpack.c.bf16 %v425, %v425
  %vm437 = vcmask 781312
  %438 = vst.msk [vmem:[%s5] sm:$0xf] %vm437, %v427
  %439 = vst.msk [vmem:[%s5 + $0x4] sm:$0xf] %vm437, %v428
  %440 = vst.msk [vmem:[%s5 + $0x8] sm:$0xf] %vm437, %v429
  %441 = vst.msk [vmem:[%s5 + $0xc] sm:$0xf] %vm437, %v430
  %442 = vst.msk [vmem:[%s5 + $0x10] sm:$0xf] %vm437, %v431
  %443 = vst.msk [vmem:[%s5 + $0x14] sm:$0xf] %vm437, %v432
  %444 = vst.msk [vmem:[%s5 + $0x18] sm:$0xf] %vm437, %v433
  %445 = vst.msk [vmem:[%s5 + $0x1c] sm:$0xf] %vm437, %v434
  %446 = vst.msk [vmem:[%s5 + $0x20] sm:$0xf] %vm437, %v435
  %447 = vst.msk [vmem:[%s5 + $0x24] sm:$0xf] %vm437, %v436
  // Predicated region
  $region26: #{vivit_forward.14} parent=0 // pred_check
    _
  $region27: #{vivit_forward.14} parent=0 // pred_check_branch
    %449 = sbr.rel (0) target = $region29
  $region28: #{vivit_forward.14} parent=0 // pred_region
    _
  $region29: #{vivit_forward.14} parent=0 // pred_fallthru
    _
  // Predicated region
  $region30: #{vivit_forward.14} parent=0 // pred_check
    _
  $region31: #{vivit_forward.14} parent=0 // pred_check_branch
    %451 = sbr.rel (0) target = $region33
  $region32: #{vivit_forward.14} parent=0 // pred_region
    _
  $region33: #{vivit_forward.14} parent=0 // pred_fallthru
    _

// kernel: vivit_forward.16
$region0: #{vivit_forward.16}
  #allocation0 [shape = 'u32[]', space=smem, size = 0x4, offset = 0x4, fixed_abs, tag = 'smem constant byte address 0x4 - core index']
  #allocation1 [shape = 'u32[72,128]{1,0:T(1,128)}', space=vmem, size = 0x9000, scoped, tag = 'internal scratch']
  #allocation2 [shape = 'f32[80,32]{1,0:T(8,128)}', space=vmem, size = 0xa000, scoped, tag = 'scratch operand']
  %s0 = inlined_call_operand.vmem [shape: bf16[80,32], index: 0, kind: input, shape index: {}]
  %s1 = inlined_call_operand.vmem [shape: bf16[32,32], index: 1, kind: input, shape index: {}]
  %s2 = inlined_call_operand.vmem [shape: f32[1,32], index: 2, kind: input, shape index: {}]
  %s3 = inlined_call_operand.vmem [shape: bf16[80,32], index: 3, kind: input, shape index: {}]
  %s4 = inlined_call_operand.vmem [shape: bf16[80,32], index: 4, kind: output, shape index: {}]
  %s5 = sld [smem:[#allocation0]]
  $region34: #{vivit_forward.16} parent=0
    _
  %s7 = ssub.s32 1, %s5
  %s8 = scalar_select 0, %s7, %s5
  // Predicated region
  $region2: #{vivit_forward.16} parent=0 // pred_check
    _
  $region3: #{vivit_forward.16} parent=0 // pred_check_branch
    %10 = sbr.rel (0) target = $region5
  $region4: #{vivit_forward.16} parent=0 // pred_region
    _
  $region5: #{vivit_forward.16} parent=0 // pred_fallthru
    _
  // Predicated region
  $region6: #{vivit_forward.16} parent=0 // pred_check
    _
  $region7: #{vivit_forward.16} parent=0 // pred_check_branch
    %12 = sbr.rel (0) target = $region9
  $region8: #{vivit_forward.16} parent=0 // pred_region
    _
  $region9: #{vivit_forward.16} parent=0 // pred_fallthru
    _
  // Predicated region
  $region10: #{vivit_forward.16} parent=0 // pred_check
    _
  $region11: #{vivit_forward.16} parent=0 // pred_check_branch
    %14 = sbr.rel (0) target = $region13
  $region12: #{vivit_forward.16} parent=0 // pred_region
    _
  $region13: #{vivit_forward.16} parent=0 // pred_fallthru
    _
  // Predicated region
  $region14: #{vivit_forward.16} parent=0 // pred_check
    _
  $region15: #{vivit_forward.16} parent=0 // pred_check_branch
    %16 = sbr.rel (0) target = $region17
  $region16: #{vivit_forward.16} parent=0 // pred_region
    _
  $region17: #{vivit_forward.16} parent=0 // pred_fallthru
    _
  %p18 = scmp.eq.s32.totalorder 0, 0
  // Predicated region
  $region18: #{vivit_forward.16} parent=0 // pred_check
    %p19 = pneg %p18
  $region19: #{vivit_forward.16} parent=0 // pred_check_branch
    %21 = sbr.rel (%p19) target = $region21
  $region20: #{vivit_forward.16} parent=0 // pred_region
    %vm22 = vcmask 261120
    %23 = vst.msk [vmem:[#allocation2] sm:$0xff] %vm22, 0.0
    %24 = vst.msk [vmem:[#allocation2 + $0x8] sm:$0xff] %vm22, 0.0
    %25 = vst.msk [vmem:[#allocation2 + $0x10] sm:$0xff] %vm22, 0.0
    %26 = vst.msk [vmem:[#allocation2 + $0x18] sm:$0xff] %vm22, 0.0
    %27 = vst.msk [vmem:[#allocation2 + $0x20] sm:$0xff] %vm22, 0.0
    %28 = vst.msk [vmem:[#allocation2 + $0x28] sm:$0xff] %vm22, 0.0
    %29 = vst.msk [vmem:[#allocation2 + $0x30] sm:$0xff] %vm22, 0.0
    %30 = vst.msk [vmem:[#allocation2 + $0x38] sm:$0xff] %vm22, 0.0
    %31 = vst.msk [vmem:[#allocation2 + $0x40] sm:$0xff] %vm22, 0.0
    %32 = vst.msk [vmem:[#allocation2 + $0x48] sm:$0xff] %vm22, 0.0
  $region21: #{vivit_forward.16} parent=0 // pred_fallthru
    _
  %v33 = vld [vmem:[#allocation2] sm:$0xff]
  %v34 = vld [vmem:[#allocation2 + $0x8] sm:$0xff]
  %v35 = vld [vmem:[#allocation2 + $0x10] sm:$0xff]
  %v36 = vld [vmem:[#allocation2 + $0x18] sm:$0xff]
  %v37 = vld [vmem:[#allocation2 + $0x20] sm:$0xff]
  %v38 = vld [vmem:[#allocation2 + $0x28] sm:$0xff]
  %v39 = vld [vmem:[#allocation2 + $0x30] sm:$0xff]
  %v40 = vld [vmem:[#allocation2 + $0x38] sm:$0xff]
  %v41 = vld [vmem:[#allocation2 + $0x40] sm:$0xff]
  %v42 = vld [vmem:[#allocation2 + $0x48] sm:$0xff]
  %v43 = vld [vmem:[%s0] sm:$0xf]
  %v44 = vld [vmem:[%s0 + $0x4] sm:$0xf]
  %v45 = vld [vmem:[%s0 + $0x8] sm:$0xf]
  %v46 = vld [vmem:[%s0 + $0xc] sm:$0xf]
  %v47 = vld [vmem:[%s0 + $0x10] sm:$0xf]
  %v48 = vld [vmem:[%s0 + $0x14] sm:$0xf]
  %v49 = vld [vmem:[%s0 + $0x18] sm:$0xf]
  %v50 = vld [vmem:[%s0 + $0x1c] sm:$0xf]
  %v51 = vld [vmem:[%s0 + $0x20] sm:$0xf]
  %v52 = vld [vmem:[%s0 + $0x24] sm:$0xf]
  %v53 = vld [vmem:[%s1] sm:$0xf]
  %v54 = vld [vmem:[%s1 + $0x4] sm:$0xf]
  %v55 = vld [vmem:[%s1 + $0x8] sm:$0xf]
  %v56 = vld [vmem:[%s1 + $0xc] sm:$0xf]
  %v67 = vunpack.c.l.b16 %v43
  %v68 = vunpack.c.l.b16 %v44
  %v69 = vunpack.c.l.b16 %v45
  %v70 = vunpack.c.l.b16 %v46
  %v71 = vunpack.c.l.b16 %v47
  %v72 = vunpack.c.l.b16 %v48
  %v73 = vunpack.c.l.b16 %v49
  %v74 = vunpack.c.l.b16 %v50
  %v75 = vunpack.c.l.b16 %v51
  %v76 = vunpack.c.l.b16 %v52
  %v77 = vpack.c.b16 %v68, %v67
  %v78 = vpack.c.b16 %v70, %v69
  %v79 = vpack.c.b16 %v72, %v71
  %v80 = vpack.c.b16 %v74, %v73
  %v81 = vpack.c.b16 %v76, %v75
  %v86 = vunpack.c.l.b16 %v53
  %v87 = vunpack.c.l.b16 %v54
  %v88 = vunpack.c.l.b16 %v55
  %v89 = vunpack.c.l.b16 %v56
  %v90 = vpack.c.b16 %v87, %v86
  %v91 = vpack.c.b16 %v89, %v88
  %vm94 = vcmask 261120
  %v96 = vsel %vm94, %v77, 0
  %v99 = vsel %vm94, %v78, 0
  %v102 = vsel %vm94, %v79, 0
  %v105 = vsel %vm94, %v80, 0
  %v108 = vsel %vm94, %v81, 0
  %110 = vmatpush.bf16.msra.mxu0 0
  %111 = vmatpush.bf16.msra.mxu0 0
  %112 = vmatpush.bf16.msra.mxu0 0
  %113 = vmatpush.bf16.msra.mxu0 0
  %114 = vmatpush.bf16.msra.mxu0 0
  %115 = vmatpush.bf16.msra.mxu0 0
  %116 = vmatpush.bf16.msra.mxu0 %v91
  %117 = vmatpush.bf16.msra.mxu0 %v90
  %118 = vmatmul.bf16.gmra.mxu0 %v96
  %v119 = vpop.f32.mrf.mxu0
  %v120 = vadd.f32 0.0, %v119
  %v121 = vpop.f32.mrf.mxu0
  %v122 = vadd.f32 0.0, %v121
  %123 = vmatmul.bf16.gmra.mxu0 %v99
  %v124 = vpop.f32.mrf.mxu0
  %v125 = vadd.f32 0.0, %v124
  %v126 = vpop.f32.mrf.mxu0
  %v127 = vadd.f32 0.0, %v126
  %128 = vmatmul.bf16.gmra.mxu0 %v102
  %v129 = vpop.f32.mrf.mxu0
  %v130 = vadd.f32 0.0, %v129
  %v131 = vpop.f32.mrf.mxu0
  %v132 = vadd.f32 0.0, %v131
  %133 = vmatmul.bf16.gmra.mxu0 %v105
  %v134 = vpop.f32.mrf.mxu0
  %v135 = vadd.f32 0.0, %v134
  %v136 = vpop.f32.mrf.mxu0
  %v137 = vadd.f32 0.0, %v136
  %138 = vmatmul.bf16.gmra.mxu0 %v108
  %v139 = vpop.f32.mrf.mxu0
  %v140 = vadd.f32 0.0, %v139
  %v141 = vpop.f32.mrf.mxu0
  %v142 = vadd.f32 0.0, %v141
  %143 = vdwg.mxu0
  %v144 = vadd.f32 %v33, %v120
  %v145 = vadd.f32 %v34, %v122
  %v146 = vadd.f32 %v35, %v125
  %v147 = vadd.f32 %v36, %v127
  %v148 = vadd.f32 %v37, %v130
  %v149 = vadd.f32 %v38, %v132
  %v150 = vadd.f32 %v39, %v135
  %v151 = vadd.f32 %v40, %v137
  %v152 = vadd.f32 %v41, %v140
  %v153 = vadd.f32 %v42, %v142
  %154 = vst.msk [vmem:[#allocation2] sm:$0xff] %vm94, %v144
  %155 = vst.msk [vmem:[#allocation2 + $0x8] sm:$0xff] %vm94, %v145
  %156 = vst.msk [vmem:[#allocation2 + $0x10] sm:$0xff] %vm94, %v146
  %157 = vst.msk [vmem:[#allocation2 + $0x18] sm:$0xff] %vm94, %v147
  %158 = vst.msk [vmem:[#allocation2 + $0x20] sm:$0xff] %vm94, %v148
  %159 = vst.msk [vmem:[#allocation2 + $0x28] sm:$0xff] %vm94, %v149
  %160 = vst.msk [vmem:[#allocation2 + $0x30] sm:$0xff] %vm94, %v150
  %161 = vst.msk [vmem:[#allocation2 + $0x38] sm:$0xff] %vm94, %v151
  %162 = vst.msk [vmem:[#allocation2 + $0x40] sm:$0xff] %vm94, %v152
  %163 = vst.msk [vmem:[#allocation2 + $0x48] sm:$0xff] %vm94, %v153
  // Predicated region
  $region22: #{vivit_forward.16} parent=0 // pred_check
    %p164 = pneg %p18
  $region23: #{vivit_forward.16} parent=0 // pred_check_branch
    %166 = sbr.rel (%p164) target = $region25
  $region24: #{vivit_forward.16} parent=0 // pred_region
    %v167 = vld [vmem:[#allocation2] sm:$0xff]
    %v168 = vld [vmem:[#allocation2 + $0x8] sm:$0xff]
    %v169 = vld [vmem:[#allocation2 + $0x10] sm:$0xff]
    %v170 = vld [vmem:[#allocation2 + $0x18] sm:$0xff]
    %v171 = vld [vmem:[#allocation2 + $0x20] sm:$0xff]
    %v172 = vld [vmem:[#allocation2 + $0x28] sm:$0xff]
    %v173 = vld [vmem:[#allocation2 + $0x30] sm:$0xff]
    %v174 = vld [vmem:[#allocation2 + $0x38] sm:$0xff]
    %v175 = vld [vmem:[#allocation2 + $0x40] sm:$0xff]
    %v176 = vld [vmem:[#allocation2 + $0x48] sm:$0xff]
    %v177 = vld [vmem:[%s2] sm:$0x1]
    %v179 = vperm.slane %v177, 0
    %v181 = vadd.f32 %v167, %v179
    %v182 = vadd.f32 %v168, %v179
    %v183 = vadd.f32 %v169, %v179
    %v184 = vadd.f32 %v170, %v179
    %v185 = vadd.f32 %v171, %v179
    %v186 = vadd.f32 %v172, %v179
    %v187 = vadd.f32 %v173, %v179
    %v188 = vadd.f32 %v174, %v179
    %v189 = vadd.f32 %v175, %v179
    %v190 = vadd.f32 %v176, %v179
    %v191 = vld [vmem:[%s3] sm:$0xf]
    %v192 = vld [vmem:[%s3 + $0x4] sm:$0xf]
    %v193 = vld [vmem:[%s3 + $0x8] sm:$0xf]
    %v194 = vld [vmem:[%s3 + $0xc] sm:$0xf]
    %v195 = vld [vmem:[%s3 + $0x10] sm:$0xf]
    %v196 = vld [vmem:[%s3 + $0x14] sm:$0xf]
    %v197 = vld [vmem:[%s3 + $0x18] sm:$0xf]
    %v198 = vld [vmem:[%s3 + $0x1c] sm:$0xf]
    %v199 = vld [vmem:[%s3 + $0x20] sm:$0xf]
    %v200 = vld [vmem:[%s3 + $0x24] sm:$0xf]
    %v201 = vunpack.c.l.bf16 %v191
    %v202 = vunpack.c.l.bf16 %v192
    %v203 = vunpack.c.l.bf16 %v193
    %v204 = vunpack.c.l.bf16 %v194
    %v205 = vunpack.c.l.bf16 %v195
    %v206 = vunpack.c.l.bf16 %v196
    %v207 = vunpack.c.l.bf16 %v197
    %v208 = vunpack.c.l.bf16 %v198
    %v209 = vunpack.c.l.bf16 %v199
    %v210 = vunpack.c.l.bf16 %v200
    %v211 = vadd.f32 %v181, %v201
    %v212 = vadd.f32 %v182, %v202
    %v213 = vadd.f32 %v183, %v203
    %v214 = vadd.f32 %v184, %v204
    %v215 = vadd.f32 %v185, %v205
    %v216 = vadd.f32 %v186, %v206
    %v217 = vadd.f32 %v187, %v207
    %v218 = vadd.f32 %v188, %v208
    %v219 = vadd.f32 %v189, %v209
    %v220 = vadd.f32 %v190, %v210
    %v221 = vpack.c.bf16 %v211, %v211
    %v222 = vpack.c.bf16 %v212, %v212
    %v223 = vpack.c.bf16 %v213, %v213
    %v224 = vpack.c.bf16 %v214, %v214
    %v225 = vpack.c.bf16 %v215, %v215
    %v226 = vpack.c.bf16 %v216, %v216
    %v227 = vpack.c.bf16 %v217, %v217
    %v228 = vpack.c.bf16 %v218, %v218
    %v229 = vpack.c.bf16 %v219, %v219
    %v230 = vpack.c.bf16 %v220, %v220
    %vm231 = vcmask 257024
    %232 = vst.msk [vmem:[%s4] sm:$0xf] %vm231, %v221
    %233 = vst.msk [vmem:[%s4 + $0x4] sm:$0xf] %vm231, %v222
    %234 = vst.msk [vmem:[%s4 + $0x8] sm:$0xf] %vm231, %v223
    %235 = vst.msk [vmem:[%s4 + $0xc] sm:$0xf] %vm231, %v224
    %236 = vst.msk [vmem:[%s4 + $0x10] sm:$0xf] %vm231, %v225
    %237 = vst.msk [vmem:[%s4 + $0x14] sm:$0xf] %vm231, %v226
    %238 = vst.msk [vmem:[%s4 + $0x18] sm:$0xf] %vm231, %v227
    %239 = vst.msk [vmem:[%s4 + $0x1c] sm:$0xf] %vm231, %v228
    %240 = vst.msk [vmem:[%s4 + $0x20] sm:$0xf] %vm231, %v229
    %241 = vst.msk [vmem:[%s4 + $0x24] sm:$0xf] %vm231, %v230
  $region25: #{vivit_forward.16} parent=0 // pred_fallthru
    _
  // Predicated region
  $region26: #{vivit_forward.16} parent=0 // pred_check
    _
  $region27: #{vivit_forward.16} parent=0 // pred_check_branch
    %243 = sbr.rel (0) target = $region29
  $region28: #{vivit_forward.16} parent=0 // pred_region
    _
  $region29: #{vivit_forward.16} parent=0 // pred_fallthru
    _
  // Predicated region
  $region30: #{vivit_forward.16} parent=0 // pred_check
    _
  $region31: #{vivit_forward.16} parent=0 // pred_check_branch
    %245 = sbr.rel (0) target = $region33
  $region32: #{vivit_forward.16} parent=0 // pred_region
    _
  $region33: #{vivit_forward.16} parent=0 // pred_fallthru
    _

// kernel: vivit_forward.17
$region0: #{vivit_forward.17}
  #allocation0 [shape = 'u32[]', space=smem, size = 0x4, offset = 0x4, fixed_abs, tag = 'smem constant byte address 0x4 - core index']
  #allocation1 [shape = 'u32[72,128]{1,0:T(1,128)}', space=vmem, size = 0x9000, scoped, tag = 'internal scratch']
  #allocation2 [shape = 'bf16[80,32]{1,0:T(8,128)(2,1)}', space=vmem, size = 0x5000, scoped, tag = 'scratch operand']
  %s0 = inlined_call_operand.vmem [shape: bf16[80,32], index: 0, kind: input, shape index: {}]
  %s1 = inlined_call_operand.vmem [shape: f32[1,32], index: 1, kind: input, shape index: {}]
  %s2 = inlined_call_operand.vmem [shape: f32[1,32], index: 2, kind: input, shape index: {}]
  %s3 = inlined_call_operand.vmem [shape: bf16[32,64], index: 3, kind: input, shape index: {}]
  %s4 = inlined_call_operand.vmem [shape: f32[1,64], index: 4, kind: input, shape index: {}]
  %s5 = inlined_call_operand.vmem [shape: bf16[80,64], index: 5, kind: output, shape index: {}]
  %s6 = sld [smem:[#allocation0]]
  $region34: #{vivit_forward.17} parent=0
    _
  %s8 = ssub.s32 1, %s6
  %s9 = scalar_select 0, %s8, %s6
  // Predicated region
  $region2: #{vivit_forward.17} parent=0 // pred_check
    _
  $region3: #{vivit_forward.17} parent=0 // pred_check_branch
    %11 = sbr.rel (0) target = $region5
  $region4: #{vivit_forward.17} parent=0 // pred_region
    _
  $region5: #{vivit_forward.17} parent=0 // pred_fallthru
    _
  // Predicated region
  $region6: #{vivit_forward.17} parent=0 // pred_check
    _
  $region7: #{vivit_forward.17} parent=0 // pred_check_branch
    %13 = sbr.rel (0) target = $region9
  $region8: #{vivit_forward.17} parent=0 // pred_region
    _
  $region9: #{vivit_forward.17} parent=0 // pred_fallthru
    _
  // Predicated region
  $region10: #{vivit_forward.17} parent=0 // pred_check
    _
  $region11: #{vivit_forward.17} parent=0 // pred_check_branch
    %15 = sbr.rel (0) target = $region13
  $region12: #{vivit_forward.17} parent=0 // pred_region
    _
  $region13: #{vivit_forward.17} parent=0 // pred_fallthru
    _
  // Predicated region
  $region14: #{vivit_forward.17} parent=0 // pred_check
    _
  $region15: #{vivit_forward.17} parent=0 // pred_check_branch
    %17 = sbr.rel (0) target = $region17
  $region16: #{vivit_forward.17} parent=0 // pred_region
    _
  $region17: #{vivit_forward.17} parent=0 // pred_fallthru
    _
  // Predicated region
  $region18: #{vivit_forward.17} parent=0 // pred_check
    _
  $region19: #{vivit_forward.17} parent=0 // pred_check_branch
    %19 = sbr.rel (0) target = $region21
  $region20: #{vivit_forward.17} parent=0 // pred_region
    _
  $region21: #{vivit_forward.17} parent=0 // pred_fallthru
    _
  %p21 = scmp.eq.s32.totalorder 0, 0
  // Predicated region
  $region22: #{vivit_forward.17} parent=0 // pred_check
    %p22 = pneg %p21
  $region23: #{vivit_forward.17} parent=0 // pred_check_branch
    %24 = sbr.rel (%p22) target = $region25
  $region24: #{vivit_forward.17} parent=0 // pred_region
    %v25 = vld [vmem:[%s0] sm:$0xf]
    %v26 = vld [vmem:[%s0 + $0x4] sm:$0xf]
    %v27 = vld [vmem:[%s0 + $0x8] sm:$0xf]
    %v28 = vld [vmem:[%s0 + $0xc] sm:$0xf]
    %v29 = vld [vmem:[%s0 + $0x10] sm:$0xf]
    %v30 = vld [vmem:[%s0 + $0x14] sm:$0xf]
    %v31 = vld [vmem:[%s0 + $0x18] sm:$0xf]
    %v32 = vld [vmem:[%s0 + $0x1c] sm:$0xf]
    %v33 = vld [vmem:[%s0 + $0x20] sm:$0xf]
    %v34 = vld [vmem:[%s0 + $0x24] sm:$0xf]
    %v35 = vunpack.c.l.bf16 %v25
    %v36 = vunpack.c.l.bf16 %v26
    %v37 = vunpack.c.l.bf16 %v27
    %v38 = vunpack.c.l.bf16 %v28
    %v39 = vunpack.c.l.bf16 %v29
    %v40 = vunpack.c.l.bf16 %v30
    %v41 = vunpack.c.l.bf16 %v31
    %v42 = vunpack.c.l.bf16 %v32
    %v43 = vunpack.c.l.bf16 %v33
    %v44 = vunpack.c.l.bf16 %v34
    %vm45 = vcmask 261120
    %v46 = vsel %vm45, %v35, 0.0
    %47 = vadd.xlane.f32.xlu0 %v46
    %v48 = vpop.xlane.xlu0 %47
    %v49 = vsel %vm45, %v36, 0.0
    %50 = vadd.xlane.f32.xlu0 %v49
    %v51 = vpop.xlane.xlu0 %50
    %v52 = vsel %vm45, %v37, 0.0
    %53 = vadd.xlane.f32.xlu0 %v52
    %v54 = vpop.xlane.xlu0 %53
    %v55 = vsel %vm45, %v38, 0.0
    %56 = vadd.xlane.f32.xlu0 %v55
    %v57 = vpop.xlane.xlu0 %56
    %v58 = vsel %vm45, %v39, 0.0
    %59 = vadd.xlane.f32.xlu0 %v58
    %v60 = vpop.xlane.xlu0 %59
    %v61 = vsel %vm45, %v40, 0.0
    %62 = vadd.xlane.f32.xlu0 %v61
    %v63 = vpop.xlane.xlu0 %62
    %v64 = vsel %vm45, %v41, 0.0
    %65 = vadd.xlane.f32.xlu0 %v64
    %v66 = vpop.xlane.xlu0 %65
    %v67 = vsel %vm45, %v42, 0.0
    %68 = vadd.xlane.f32.xlu0 %v67
    %v69 = vpop.xlane.xlu0 %68
    %v70 = vsel %vm45, %v43, 0.0
    %71 = vadd.xlane.f32.xlu0 %v70
    %v72 = vpop.xlane.xlu0 %71
    %v73 = vsel %vm45, %v44, 0.0
    %74 = vadd.xlane.f32.xlu0 %v73
    %v75 = vpop.xlane.xlu0 %74
    %v76 = vrcp.pop 32.0
    %v77 = vmul.f32 32.0, %v76
    %v78 = vsub.f32 1.0, %v77
    %v79 = vmul.f32 %v76, %v78
    %v80 = vadd.f32 %v76, %v79
    %vm81 = vweird.f32 %v76
    %v82 = vsel %vm81, %v76, %v80
    %v83 = vmul.f32 %v48, %v82
    %v84 = vmul.f32 %v51, %v82
    %v85 = vmul.f32 %v54, %v82
    %v86 = vmul.f32 %v57, %v82
    %v87 = vmul.f32 %v60, %v82
    %v88 = vmul.f32 %v63, %v82
    %v89 = vmul.f32 %v66, %v82
    %v90 = vmul.f32 %v69, %v82
    %v91 = vmul.f32 %v72, %v82
    %v92 = vmul.f32 %v75, %v82
    %v93 = vsub.f32 %v35, %v83
    %v94 = vsub.f32 %v36, %v84
    %v95 = vsub.f32 %v37, %v85
    %v96 = vsub.f32 %v38, %v86
    %v97 = vsub.f32 %v39, %v87
    %v98 = vsub.f32 %v40, %v88
    %v99 = vsub.f32 %v41, %v89
    %v100 = vsub.f32 %v42, %v90
    %v101 = vsub.f32 %v43, %v91
    %v102 = vsub.f32 %v44, %v92
    %v103 = vmul.f32 %v93, %v93
    %v104 = vmul.f32 %v94, %v94
    %v105 = vmul.f32 %v95, %v95
    %v106 = vmul.f32 %v96, %v96
    %v107 = vmul.f32 %v97, %v97
    %v108 = vmul.f32 %v98, %v98
    %v109 = vmul.f32 %v99, %v99
    %v110 = vmul.f32 %v100, %v100
    %v111 = vmul.f32 %v101, %v101
    %v112 = vmul.f32 %v102, %v102
    %v113 = vsel %vm45, %v103, 0.0
    %114 = vadd.xlane.f32.xlu0 %v113
    %v115 = vpop.xlane.xlu0 %114
    %v116 = vsel %vm45, %v104, 0.0
    %117 = vadd.xlane.f32.xlu0 %v116
    %v118 = vpop.xlane.xlu0 %117
    %v119 = vsel %vm45, %v105, 0.0
    %120 = vadd.xlane.f32.xlu0 %v119
    %v121 = vpop.xlane.xlu0 %120
    %v122 = vsel %vm45, %v106, 0.0
    %123 = vadd.xlane.f32.xlu0 %v122
    %v124 = vpop.xlane.xlu0 %123
    %v125 = vsel %vm45, %v107, 0.0
    %126 = vadd.xlane.f32.xlu0 %v125
    %v127 = vpop.xlane.xlu0 %126
    %v128 = vsel %vm45, %v108, 0.0
    %129 = vadd.xlane.f32.xlu0 %v128
    %v130 = vpop.xlane.xlu0 %129
    %v131 = vsel %vm45, %v109, 0.0
    %132 = vadd.xlane.f32.xlu0 %v131
    %v133 = vpop.xlane.xlu0 %132
    %v134 = vsel %vm45, %v110, 0.0
    %135 = vadd.xlane.f32.xlu0 %v134
    %v136 = vpop.xlane.xlu0 %135
    %v137 = vsel %vm45, %v111, 0.0
    %138 = vadd.xlane.f32.xlu0 %v137
    %v139 = vpop.xlane.xlu0 %138
    %v140 = vsel %vm45, %v112, 0.0
    %141 = vadd.xlane.f32.xlu0 %v140
    %v142 = vpop.xlane.xlu0 %141
    %v143 = vmul.f32 %v115, %v82
    %v144 = vmul.f32 %v118, %v82
    %v145 = vmul.f32 %v121, %v82
    %v146 = vmul.f32 %v124, %v82
    %v147 = vmul.f32 %v127, %v82
    %v148 = vmul.f32 %v130, %v82
    %v149 = vmul.f32 %v133, %v82
    %v150 = vmul.f32 %v136, %v82
    %v151 = vmul.f32 %v139, %v82
    %v152 = vmul.f32 %v142, %v82
    %v153 = vadd.f32 %v143, 1e-05
    %v154 = vadd.f32 %v144, 1e-05
    %v155 = vadd.f32 %v145, 1e-05
    %v156 = vadd.f32 %v146, 1e-05
    %v157 = vadd.f32 %v147, 1e-05
    %v158 = vadd.f32 %v148, 1e-05
    %v159 = vadd.f32 %v149, 1e-05
    %v160 = vadd.f32 %v150, 1e-05
    %v161 = vadd.f32 %v151, 1e-05
    %v162 = vadd.f32 %v152, 1e-05
    %v163 = vrsqrt.pop %v153
    %v164 = vmul.f32 %v163, %v153
    %v165 = vmul.f32 %v164, %v163
    %v166 = vmul.f32 0.5, %v165
    %v167 = vsub.f32 1.5, %v166
    %v168 = vmul.f32 %v163, %v167
    %vm169 = vweird.f32 %v153
    %vm170 = vweird.f32 %v163
    %vm171 = vmor %vm169, %vm170
    %v172 = vsel %vm171, %v163, %v168
    %v173 = vrsqrt.pop %v154
    %v174 = vmul.f32 %v173, %v154
    %v175 = vmul.f32 %v174, %v173
    %v176 = vmul.f32 0.5, %v175
    %v177 = vsub.f32 1.5, %v176
    %v178 = vmul.f32 %v173, %v177
    %vm179 = vweird.f32 %v154
    %vm180 = vweird.f32 %v173
    %vm181 = vmor %vm179, %vm180
    %v182 = vsel %vm181, %v173, %v178
    %v183 = vrsqrt.pop %v155
    %v184 = vmul.f32 %v183, %v155
    %v185 = vmul.f32 %v184, %v183
    %v186 = vmul.f32 0.5, %v185
    %v187 = vsub.f32 1.5, %v186
    %v188 = vmul.f32 %v183, %v187
    %vm189 = vweird.f32 %v155
    %vm190 = vweird.f32 %v183
    %vm191 = vmor %vm189, %vm190
    %v192 = vsel %vm191, %v183, %v188
    %v193 = vrsqrt.pop %v156
    %v194 = vmul.f32 %v193, %v156
    %v195 = vmul.f32 %v194, %v193
    %v196 = vmul.f32 0.5, %v195
    %v197 = vsub.f32 1.5, %v196
    %v198 = vmul.f32 %v193, %v197
    %vm199 = vweird.f32 %v156
    %vm200 = vweird.f32 %v193
    %vm201 = vmor %vm199, %vm200
    %v202 = vsel %vm201, %v193, %v198
    %v203 = vrsqrt.pop %v157
    %v204 = vmul.f32 %v203, %v157
    %v205 = vmul.f32 %v204, %v203
    %v206 = vmul.f32 0.5, %v205
    %v207 = vsub.f32 1.5, %v206
    %v208 = vmul.f32 %v203, %v207
    %vm209 = vweird.f32 %v157
    %vm210 = vweird.f32 %v203
    %vm211 = vmor %vm209, %vm210
    %v212 = vsel %vm211, %v203, %v208
    %v213 = vrsqrt.pop %v158
    %v214 = vmul.f32 %v213, %v158
    %v215 = vmul.f32 %v214, %v213
    %v216 = vmul.f32 0.5, %v215
    %v217 = vsub.f32 1.5, %v216
    %v218 = vmul.f32 %v213, %v217
    %vm219 = vweird.f32 %v158
    %vm220 = vweird.f32 %v213
    %vm221 = vmor %vm219, %vm220
    %v222 = vsel %vm221, %v213, %v218
    %v223 = vrsqrt.pop %v159
    %v224 = vmul.f32 %v223, %v159
    %v225 = vmul.f32 %v224, %v223
    %v226 = vmul.f32 0.5, %v225
    %v227 = vsub.f32 1.5, %v226
    %v228 = vmul.f32 %v223, %v227
    %vm229 = vweird.f32 %v159
    %vm230 = vweird.f32 %v223
    %vm231 = vmor %vm229, %vm230
    %v232 = vsel %vm231, %v223, %v228
    %v233 = vrsqrt.pop %v160
    %v234 = vmul.f32 %v233, %v160
    %v235 = vmul.f32 %v234, %v233
    %v236 = vmul.f32 0.5, %v235
    %v237 = vsub.f32 1.5, %v236
    %v238 = vmul.f32 %v233, %v237
    %vm239 = vweird.f32 %v160
    %vm240 = vweird.f32 %v233
    %vm241 = vmor %vm239, %vm240
    %v242 = vsel %vm241, %v233, %v238
    %v243 = vrsqrt.pop %v161
    %v244 = vmul.f32 %v243, %v161
    %v245 = vmul.f32 %v244, %v243
    %v246 = vmul.f32 0.5, %v245
    %v247 = vsub.f32 1.5, %v246
    %v248 = vmul.f32 %v243, %v247
    %vm249 = vweird.f32 %v161
    %vm250 = vweird.f32 %v243
    %vm251 = vmor %vm249, %vm250
    %v252 = vsel %vm251, %v243, %v248
    %v253 = vrsqrt.pop %v162
    %v254 = vmul.f32 %v253, %v162
    %v255 = vmul.f32 %v254, %v253
    %v256 = vmul.f32 0.5, %v255
    %v257 = vsub.f32 1.5, %v256
    %v258 = vmul.f32 %v253, %v257
    %vm259 = vweird.f32 %v162
    %vm260 = vweird.f32 %v253
    %vm261 = vmor %vm259, %vm260
    %v262 = vsel %vm261, %v253, %v258
    %v263 = vmul.f32 %v93, %v172
    %v264 = vmul.f32 %v94, %v182
    %v265 = vmul.f32 %v95, %v192
    %v266 = vmul.f32 %v96, %v202
    %v267 = vmul.f32 %v97, %v212
    %v268 = vmul.f32 %v98, %v222
    %v269 = vmul.f32 %v99, %v232
    %v270 = vmul.f32 %v100, %v242
    %v271 = vmul.f32 %v101, %v252
    %v272 = vmul.f32 %v102, %v262
    %v273 = vld [vmem:[%s1] sm:$0x1]
    %v275 = vperm.slane %v273, 0
    %v277 = vmul.f32 %v263, %v275
    %v278 = vmul.f32 %v264, %v275
    %v279 = vmul.f32 %v265, %v275
    %v280 = vmul.f32 %v266, %v275
    %v281 = vmul.f32 %v267, %v275
    %v282 = vmul.f32 %v268, %v275
    %v283 = vmul.f32 %v269, %v275
    %v284 = vmul.f32 %v270, %v275
    %v285 = vmul.f32 %v271, %v275
    %v286 = vmul.f32 %v272, %v275
    %v287 = vld [vmem:[%s2] sm:$0x1]
    %v289 = vperm.slane %v287, 0
    %v291 = vadd.f32 %v277, %v289
    %v292 = vadd.f32 %v278, %v289
    %v293 = vadd.f32 %v279, %v289
    %v294 = vadd.f32 %v280, %v289
    %v295 = vadd.f32 %v281, %v289
    %v296 = vadd.f32 %v282, %v289
    %v297 = vadd.f32 %v283, %v289
    %v298 = vadd.f32 %v284, %v289
    %v299 = vadd.f32 %v285, %v289
    %v300 = vadd.f32 %v286, %v289
    %v301 = vpack.c.bf16 %v291, %v291
    %v302 = vpack.c.bf16 %v292, %v292
    %v303 = vpack.c.bf16 %v293, %v293
    %v304 = vpack.c.bf16 %v294, %v294
    %v305 = vpack.c.bf16 %v295, %v295
    %v306 = vpack.c.bf16 %v296, %v296
    %v307 = vpack.c.bf16 %v297, %v297
    %v308 = vpack.c.bf16 %v298, %v298
    %v309 = vpack.c.bf16 %v299, %v299
    %v310 = vpack.c.bf16 %v300, %v300
    %vm311 = vcmask 257024
    %312 = vst.msk [vmem:[#allocation2] sm:$0xf] %vm311, %v301
    %313 = vst.msk [vmem:[#allocation2 + $0x4] sm:$0xf] %vm311, %v302
    %314 = vst.msk [vmem:[#allocation2 + $0x8] sm:$0xf] %vm311, %v303
    %315 = vst.msk [vmem:[#allocation2 + $0xc] sm:$0xf] %vm311, %v304
    %316 = vst.msk [vmem:[#allocation2 + $0x10] sm:$0xf] %vm311, %v305
    %317 = vst.msk [vmem:[#allocation2 + $0x14] sm:$0xf] %vm311, %v306
    %318 = vst.msk [vmem:[#allocation2 + $0x18] sm:$0xf] %vm311, %v307
    %319 = vst.msk [vmem:[#allocation2 + $0x1c] sm:$0xf] %vm311, %v308
    %320 = vst.msk [vmem:[#allocation2 + $0x20] sm:$0xf] %vm311, %v309
    %321 = vst.msk [vmem:[#allocation2 + $0x24] sm:$0xf] %vm311, %v310
  $region25: #{vivit_forward.17} parent=0 // pred_fallthru
    _
  %v322 = vld [vmem:[#allocation2] sm:$0xf]
  %v323 = vld [vmem:[#allocation2 + $0x4] sm:$0xf]
  %v324 = vld [vmem:[#allocation2 + $0x8] sm:$0xf]
  %v325 = vld [vmem:[#allocation2 + $0xc] sm:$0xf]
  %v326 = vld [vmem:[#allocation2 + $0x10] sm:$0xf]
  %v327 = vld [vmem:[#allocation2 + $0x14] sm:$0xf]
  %v328 = vld [vmem:[#allocation2 + $0x18] sm:$0xf]
  %v329 = vld [vmem:[#allocation2 + $0x1c] sm:$0xf]
  %v330 = vld [vmem:[#allocation2 + $0x20] sm:$0xf]
  %v331 = vld [vmem:[#allocation2 + $0x24] sm:$0xf]
  %v332 = vld [vmem:[%s3] sm:$0xf]
  %v333 = vld [vmem:[%s3 + $0x4] sm:$0xf]
  %v334 = vld [vmem:[%s3 + $0x8] sm:$0xf]
  %v335 = vld [vmem:[%s3 + $0xc] sm:$0xf]
  %v336 = vld [vmem:[%s4] sm:$0x1]
  %v338 = vperm.slane %v336, 0
  %v350 = vunpack.c.l.b16 %v322
  %v351 = vunpack.c.l.b16 %v323
  %v352 = vunpack.c.l.b16 %v324
  %v353 = vunpack.c.l.b16 %v325
  %v354 = vunpack.c.l.b16 %v326
  %v355 = vunpack.c.l.b16 %v327
  %v356 = vunpack.c.l.b16 %v328
  %v357 = vunpack.c.l.b16 %v329
  %v358 = vunpack.c.l.b16 %v330
  %v359 = vunpack.c.l.b16 %v331
  %v360 = vpack.c.b16 %v351, %v350
  %v361 = vpack.c.b16 %v353, %v352
  %v362 = vpack.c.b16 %v355, %v354
  %v363 = vpack.c.b16 %v357, %v356
  %v364 = vpack.c.b16 %v359, %v358
  %v369 = vunpack.c.l.b16 %v332
  %v370 = vunpack.c.l.b16 %v333
  %v371 = vunpack.c.l.b16 %v334
  %v372 = vunpack.c.l.b16 %v335
  %v373 = vpack.c.b16 %v370, %v369
  %v374 = vpack.c.b16 %v372, %v371
  %vm377 = vcmask 261120
  %v379 = vsel %vm377, %v360, 0
  %v382 = vsel %vm377, %v361, 0
  %v385 = vsel %vm377, %v362, 0
  %v388 = vsel %vm377, %v363, 0
  %v391 = vsel %vm377, %v364, 0
  %393 = vmatpush.bf16.msra.mxu0 0
  %394 = vmatpush.bf16.msra.mxu0 0
  %395 = vmatpush.bf16.msra.mxu0 0
  %396 = vmatpush.bf16.msra.mxu0 0
  %397 = vmatpush.bf16.msra.mxu0 0
  %398 = vmatpush.bf16.msra.mxu0 0
  %399 = vmatpush.bf16.msra.mxu0 %v374
  %400 = vmatpush.bf16.msra.mxu0 %v373
  %401 = vmatmul.bf16.gmra.mxu0 %v379
  %v402 = vpop.f32.mrf.mxu0
  %v403 = vadd.f32 %v338, %v402
  %v404 = vpop.f32.mrf.mxu0
  %v405 = vadd.f32 %v338, %v404
  %406 = vmatmul.bf16.gmra.mxu0 %v382
  %v407 = vpop.f32.mrf.mxu0
  %v408 = vadd.f32 %v338, %v407
  %v409 = vpop.f32.mrf.mxu0
  %v410 = vadd.f32 %v338, %v409
  %411 = vmatmul.bf16.gmra.mxu0 %v385
  %v412 = vpop.f32.mrf.mxu0
  %v413 = vadd.f32 %v338, %v412
  %v414 = vpop.f32.mrf.mxu0
  %v415 = vadd.f32 %v338, %v414
  %416 = vmatmul.bf16.gmra.mxu0 %v388
  %v417 = vpop.f32.mrf.mxu0
  %v418 = vadd.f32 %v338, %v417
  %v419 = vpop.f32.mrf.mxu0
  %v420 = vadd.f32 %v338, %v419
  %421 = vmatmul.bf16.gmra.mxu0 %v391
  %v422 = vpop.f32.mrf.mxu0
  %v423 = vadd.f32 %v338, %v422
  %v424 = vpop.f32.mrf.mxu0
  %v425 = vadd.f32 %v338, %v424
  %426 = vdwg.mxu0
  %v427 = vmul.f32 %v403, %v403
  %v428 = vmul.f32 %v405, %v405
  %v429 = vmul.f32 %v408, %v408
  %v430 = vmul.f32 %v410, %v410
  %v431 = vmul.f32 %v413, %v413
  %v432 = vmul.f32 %v415, %v415
  %v433 = vmul.f32 %v418, %v418
  %v434 = vmul.f32 %v420, %v420
  %v435 = vmul.f32 %v423, %v423
  %v436 = vmul.f32 %v425, %v425
  %v437 = vmul.f32 %v403, %v427
  %v438 = vmul.f32 %v405, %v428
  %v439 = vmul.f32 %v408, %v429
  %v440 = vmul.f32 %v410, %v430
  %v441 = vmul.f32 %v413, %v431
  %v442 = vmul.f32 %v415, %v432
  %v443 = vmul.f32 %v418, %v433
  %v444 = vmul.f32 %v420, %v434
  %v445 = vmul.f32 %v423, %v435
  %v446 = vmul.f32 %v425, %v436
  %v447 = vmul.f32 %v437, 0.044715
  %v448 = vmul.f32 %v438, 0.044715
  %v449 = vmul.f32 %v439, 0.044715
  %v450 = vmul.f32 %v440, 0.044715
  %v451 = vmul.f32 %v441, 0.044715
  %v452 = vmul.f32 %v442, 0.044715
  %v453 = vmul.f32 %v443, 0.044715
  %v454 = vmul.f32 %v444, 0.044715
  %v455 = vmul.f32 %v445, 0.044715
  %v456 = vmul.f32 %v446, 0.044715
  %v457 = vadd.f32 %v403, %v447
  %v458 = vadd.f32 %v405, %v448
  %v459 = vadd.f32 %v408, %v449
  %v460 = vadd.f32 %v410, %v450
  %v461 = vadd.f32 %v413, %v451
  %v462 = vadd.f32 %v415, %v452
  %v463 = vadd.f32 %v418, %v453
  %v464 = vadd.f32 %v420, %v454
  %v465 = vadd.f32 %v423, %v455
  %v466 = vadd.f32 %v425, %v456
  %v467 = vmul.f32 %v457, 0.7978846
  %v468 = vmul.f32 %v458, 0.7978846
  %v469 = vmul.f32 %v459, 0.7978846
  %v470 = vmul.f32 %v460, 0.7978846
  %v471 = vmul.f32 %v461, 0.7978846
  %v472 = vmul.f32 %v462, 0.7978846
  %v473 = vmul.f32 %v463, 0.7978846
  %v474 = vmul.f32 %v464, 0.7978846
  %v475 = vmul.f32 %v465, 0.7978846
  %v476 = vmul.f32 %v466, 0.7978846
  %v477 = vtanh.pop %v467
  %v478 = vtanh.pop %v468
  %v479 = vtanh.pop %v469
  %v480 = vtanh.pop %v470
  %v481 = vtanh.pop %v471
  %v482 = vtanh.pop %v472
  %v483 = vtanh.pop %v473
  %v484 = vtanh.pop %v474
  %v485 = vtanh.pop %v475
  %v486 = vtanh.pop %v476
  %v487 = vadd.f32 %v477, 1.0
  %v488 = vadd.f32 %v478, 1.0
  %v489 = vadd.f32 %v479, 1.0
  %v490 = vadd.f32 %v480, 1.0
  %v491 = vadd.f32 %v481, 1.0
  %v492 = vadd.f32 %v482, 1.0
  %v493 = vadd.f32 %v483, 1.0
  %v494 = vadd.f32 %v484, 1.0
  %v495 = vadd.f32 %v485, 1.0
  %v496 = vadd.f32 %v486, 1.0
  %v497 = vmul.f32 %v487, 0.5
  %v498 = vmul.f32 %v488, 0.5
  %v499 = vmul.f32 %v489, 0.5
  %v500 = vmul.f32 %v490, 0.5
  %v501 = vmul.f32 %v491, 0.5
  %v502 = vmul.f32 %v492, 0.5
  %v503 = vmul.f32 %v493, 0.5
  %v504 = vmul.f32 %v494, 0.5
  %v505 = vmul.f32 %v495, 0.5
  %v506 = vmul.f32 %v496, 0.5
  %v507 = vmul.f32 %v403, %v497
  %v508 = vmul.f32 %v405, %v498
  %v509 = vmul.f32 %v408, %v499
  %v510 = vmul.f32 %v410, %v500
  %v511 = vmul.f32 %v413, %v501
  %v512 = vmul.f32 %v415, %v502
  %v513 = vmul.f32 %v418, %v503
  %v514 = vmul.f32 %v420, %v504
  %v515 = vmul.f32 %v423, %v505
  %v516 = vmul.f32 %v425, %v506
  %v517 = vpack.c.bf16 %v507, %v507
  %v518 = vpack.c.bf16 %v508, %v508
  %v519 = vpack.c.bf16 %v509, %v509
  %v520 = vpack.c.bf16 %v510, %v510
  %v521 = vpack.c.bf16 %v511, %v511
  %v522 = vpack.c.bf16 %v512, %v512
  %v523 = vpack.c.bf16 %v513, %v513
  %v524 = vpack.c.bf16 %v514, %v514
  %v525 = vpack.c.bf16 %v515, %v515
  %v526 = vpack.c.bf16 %v516, %v516
  %vm527 = vcmask 519168
  %528 = vst.msk [vmem:[%s5] sm:$0xf] %vm527, %v517
  %529 = vst.msk [vmem:[%s5 + $0x4] sm:$0xf] %vm527, %v518
  %530 = vst.msk [vmem:[%s5 + $0x8] sm:$0xf] %vm527, %v519
  %531 = vst.msk [vmem:[%s5 + $0xc] sm:$0xf] %vm527, %v520
  %532 = vst.msk [vmem:[%s5 + $0x10] sm:$0xf] %vm527, %v521
  %533 = vst.msk [vmem:[%s5 + $0x14] sm:$0xf] %vm527, %v522
  %534 = vst.msk [vmem:[%s5 + $0x18] sm:$0xf] %vm527, %v523
  %535 = vst.msk [vmem:[%s5 + $0x1c] sm:$0xf] %vm527, %v524
  %536 = vst.msk [vmem:[%s5 + $0x20] sm:$0xf] %vm527, %v525
  %537 = vst.msk [vmem:[%s5 + $0x24] sm:$0xf] %vm527, %v526
  // Predicated region
  $region26: #{vivit_forward.17} parent=0 // pred_check
    _
  $region27: #{vivit_forward.17} parent=0 // pred_check_branch
    %539 = sbr.rel (0) target = $region29
  $region28: #{vivit_forward.17} parent=0 // pred_region
    _
  $region29: #{vivit_forward.17} parent=0 // pred_fallthru
    _
  // Predicated region
  $region30: #{vivit_forward.17} parent=0 // pred_check
    _
  $region31: #{vivit_forward.17} parent=0 // pred_check_branch
    %541 = sbr.rel (0) target = $region33
  $region32: #{vivit_forward.17} parent=0 // pred_region
    _
  $region33: #{vivit_forward.17} parent=0 // pred_fallthru
    _

// kernel: vivit_forward.15
$region0: #{vivit_forward.15}
  #allocation0 [shape = 'u32[]', space=smem, size = 0x4, offset = 0x4, fixed_abs, tag = 'smem constant byte address 0x4 - core index']
  #allocation1 [shape = 'u32[72,128]{1,0:T(1,128)}', space=vmem, size = 0x9000, scoped, tag = 'internal scratch']
  #allocation2 [shape = 'f32[4,40,1]{2,1,0:T(8,128)}', space=vmem, size = 0x14000, scoped, tag = 'scratch operand']
  #allocation3 [shape = 'f32[4,40,1]{2,1,0:T(8,128)}', space=vmem, size = 0x14000, scoped, tag = 'scratch operand']
  #allocation4 [shape = 'f32[4,40,8]{2,1,0:T(8,128)}', space=vmem, size = 0x14000, scoped, tag = 'scratch operand']
  %s0 = inlined_call_operand.vmem [shape: bf16[2,4,40,8], index: 0, kind: input, shape index: {}]
  %s1 = inlined_call_operand.vmem [shape: bf16[2,4,40,8], index: 1, kind: input, shape index: {}]
  %s2 = inlined_call_operand.vmem [shape: bf16[2,4,40,8], index: 2, kind: input, shape index: {}]
  %s3 = inlined_call_operand.vmem [shape: bf16[2,40,32], index: 3, kind: output, shape index: {}]
  %s4 = sld [smem:[#allocation0]]
  $region53: #{vivit_forward.15} parent=0
    _
  %s6 = ssub.s32 1, %s4
  %s7 = scalar_select 0, %s6, %s4
  loop: start=0, step=1, limit=4
  $region2: #{vivit_forward.15} parent=0 // loop_pre_header
    _
  $region3: #{vivit_forward.15} parent=0 // loop_header
    %s9 = sphi 0, %s13
    %p10 = scmp.ge.s32.totalorder %s9, 4
    %s16 = sphi 0, %s35
    %s17 = sphi 0, %s31
    %s18 = sphi 0, %s27
    %s19 = sphi 0, %s16
    %s20 = sphi 0, %s17
    %s21 = sphi 0, %s18
    %s22 = sphi 0, %s19
    %s23 = sphi 0, %s20
    %s24 = sphi 0, %s21
    %s40 = sphi 0, %s42
    %s43 = sphi 0, %s40
    %s44 = sphi 0, %s43
    %s60 = sphi 0, %s44
    %s68 = sphi 0, %s70
    %s71 = sphi 0, %s68
    %s72 = sphi 0, %s71
    %s88 = sphi 0, %s72
    %s96 = sphi 0, %s98
    %s99 = sphi 0, %s96
    %s100 = sphi 0, %s99
    %s116 = sphi 0, %s100
    %s124 = sphi 0, %s126
    %s127 = sphi 0, %s124
    %s128 = sphi 0, %s127
    %s144 = sphi 0, %s128
  $region4: #{vivit_forward.15} parent=0 // loop_header_branch
    %12 = sbr.rel (%p10) target = $region8
  $region5: #{vivit_forward.15} parent=0 // loop_body
    %s14 = ssub.s32 %s9, 1
    %s15 = ssub.s32 %s9, 2
    %s25 = sadd.s32 1, %s18
    %p26 = scmp.ge.s32.totalorder %s25, 1
    %s27 = scalar_select %p26, 0, %s25
    %s28 = sadd.s32 1, %s17
    %s29 = scalar_select %p26, %s28, %s17
    %p30 = scmp.ge.s32.totalorder %s29, 1
    %s31 = scalar_select %p30, 0, %s29
    %s32 = sadd.s32 1, %s16
    %s33 = scalar_select %p30, %s32, %s16
    %p34 = scmp.ge.s32.totalorder %s33, 2
    %s35 = scalar_select %p34, 0, %s33
    %s36 = ssub.s32 %s16, %s35
    %s37 = ssub.s32 %s17, %s31
    %s38 = sor.u32 %s36, %s37
    %p39 = scmp.eq.s32.totalorder %s38, 0
    %s41 = sadd.s32 %s40, 1
    %s42 = scalar_select %p39, %s40, %s41
    %p45 = pneg %p39
    %p46 = scmp.eq.s32.totalorder %s9, 1
    %p47 = por %p45, %p46
    %p48 = scmp.ne.s32.totalorder %s40, %s43
    %p49 = scmp.eq.s32.totalorder %s9, 0
    %p50 = por %p48, %p49
    %p51 = scmp.ne.s32.totalorder %s40, %s43
    %p52 = scmp.eq.s32.totalorder %s14, 1
    %p53 = por %p51, %p52
    %p54 = scmp.ne.s32.totalorder %s43, %s44
    %p55 = scmp.eq.s32.totalorder %s14, 0
    %p56 = por %p54, %p55
    %p57 = scmp.ne.s32.totalorder %s43, %s44
    %p58 = scmp.eq.s32.totalorder %s15, 1
    %p59 = por %p57, %p58
    %p61 = scmp.ne.s32.totalorder %s44, %s60
    %p62 = scmp.eq.s32.totalorder %s15, 0
    %p63 = por %p61, %p62
    %s64 = ssub.s32 %s16, %s35
    %s65 = ssub.s32 %s18, %s27
    %s66 = sor.u32 %s64, %s65
    %p67 = scmp.eq.s32.totalorder %s66, 0
    %s69 = sadd.s32 %s68, 1
    %s70 = scalar_select %p67, %s68, %s69
    %p73 = pneg %p67
    %p74 = scmp.eq.s32.totalorder %s9, 1
    %p75 = por %p73, %p74
    %p76 = scmp.ne.s32.totalorder %s68, %s71
    %p77 = scmp.eq.s32.totalorder %s9, 0
    %p78 = por %p76, %p77
    %p79 = scmp.ne.s32.totalorder %s68, %s71
    %p80 = scmp.eq.s32.totalorder %s14, 1
    %p81 = por %p79, %p80
    %p82 = scmp.ne.s32.totalorder %s71, %s72
    %p83 = scmp.eq.s32.totalorder %s14, 0
    %p84 = por %p82, %p83
    %p85 = scmp.ne.s32.totalorder %s71, %s72
    %p86 = scmp.eq.s32.totalorder %s15, 1
    %p87 = por %p85, %p86
    %p89 = scmp.ne.s32.totalorder %s72, %s88
    %p90 = scmp.eq.s32.totalorder %s15, 0
    %p91 = por %p89, %p90
    %s92 = ssub.s32 %s16, %s35
    %s93 = ssub.s32 %s18, %s27
    %s94 = sor.u32 %s92, %s93
    %p95 = scmp.eq.s32.totalorder %s94, 0
    %s97 = sadd.s32 %s96, 1
    %s98 = scalar_select %p95, %s96, %s97
    %p101 = pneg %p95
    %p102 = scmp.eq.s32.totalorder %s9, 1
    %p103 = por %p101, %p102
    %p104 = scmp.ne.s32.totalorder %s96, %s99
    %p105 = scmp.eq.s32.totalorder %s9, 0
    %p106 = por %p104, %p105
    %p107 = scmp.ne.s32.totalorder %s96, %s99
    %p108 = scmp.eq.s32.totalorder %s14, 1
    %p109 = por %p107, %p108
    %p110 = scmp.ne.s32.totalorder %s99, %s100
    %p111 = scmp.eq.s32.totalorder %s14, 0
    %p112 = por %p110, %p111
    %p113 = scmp.ne.s32.totalorder %s99, %s100
    %p114 = scmp.eq.s32.totalorder %s15, 1
    %p115 = por %p113, %p114
    %p117 = scmp.ne.s32.totalorder %s100, %s116
    %p118 = scmp.eq.s32.totalorder %s15, 0
    %p119 = por %p117, %p118
    %s120 = ssub.s32 %s16, %s35
    %s121 = ssub.s32 %s17, %s31
    %s122 = sor.u32 %s120, %s121
    %p123 = scmp.eq.s32.totalorder %s122, 0
    %s125 = sadd.s32 %s124, 1
    %s126 = scalar_select %p123, %s124, %s125
    %p129 = pneg %p123
    %p130 = scmp.eq.s32.totalorder %s9, 1
    %p131 = por %p129, %p130
    %p132 = scmp.ne.s32.totalorder %s124, %s127
    %p133 = scmp.eq.s32.totalorder %s9, 0
    %p134 = por %p132, %p133
    %p135 = scmp.ne.s32.totalorder %s124, %s127
    %p136 = scmp.eq.s32.totalorder %s14, 1
    %p137 = por %p135, %p136
    %p138 = scmp.ne.s32.totalorder %s127, %s128
    %p139 = scmp.eq.s32.totalorder %s14, 0
    %p140 = por %p138, %p139
    %p141 = scmp.ne.s32.totalorder %s127, %s128
    %p142 = scmp.eq.s32.totalorder %s15, 1
    %p143 = por %p141, %p142
    %p145 = scmp.ne.s32.totalorder %s128, %s144
    %p146 = scmp.eq.s32.totalorder %s15, 0
    %p147 = por %p145, %p146
    %p148 = scmp.le.s32.totalorder 1, %s9
    %p149 = scmp.lt.s32.totalorder %s9, 3
    %p150 = pnand %p148, %p149
    %p151 = pneg %p150
    // Predicated region
    $region9: #{vivit_forward.15} parent=5 // pred_check
      _
    $region10: #{vivit_forward.15} parent=5 // pred_check_branch
      %153 = sbr.rel (%p150) target = $region12
    $region11: #{vivit_forward.15} parent=5 // pred_region
      %s154 = ssub.s32 %s9, 1
    $region12: #{vivit_forward.15} parent=5 // pred_fallthru
      _
    %p155 = scmp.lt.s32.totalorder %s9, 2
    // Predicated region
    $region13: #{vivit_forward.15} parent=5 // pred_check
      %p156 = pneg %p155
    $region14: #{vivit_forward.15} parent=5 // pred_check_branch
      %158 = sbr.rel (%p156) target = $region16
    $region15: #{vivit_forward.15} parent=5 // pred_region
      // Predicated region
      $region17: #{vivit_forward.15} parent=15 // pred_check
        %p159 = pneg %p50
      $region18: #{vivit_forward.15} parent=15 // pred_check_branch
        %161 = sbr.rel (%p159) target = $region20
      $region19: #{vivit_forward.15} parent=15 // pred_region
        %s162 = smul.u32 5, %s17
        %p163 = scmp.lt.s32.totalorder %s16, 1
        %s164 = scalar_select %p163, %s16, 1
        %p165 = scmp.lt.s32.totalorder %s162, 4
        %s166 = scalar_select %p165, %s162, 4
        %s167 = smul.addr %s164, 20
        %s168 = sadd.s32 %s166, %s167
        %s169 = smul.addr %s168, 4
        %s170 = scalar_lea.vmem %s0, %s169
        %s171 = smul.u32 5, %s17
      $region20: #{vivit_forward.15} parent=15 // pred_fallthru
        _
      // Predicated region
      $region21: #{vivit_forward.15} parent=15 // pred_check
        %p172 = pneg %p78
      $region22: #{vivit_forward.15} parent=15 // pred_check_branch
        %174 = sbr.rel (%p172) target = $region24
      $region23: #{vivit_forward.15} parent=15 // pred_region
        %s175 = smul.u32 5, %s18
        %p176 = scmp.lt.s32.totalorder %s16, 1
        %s177 = scalar_select %p176, %s16, 1
        %p178 = scmp.lt.s32.totalorder %s175, 4
        %s179 = scalar_select %p178, %s175, 4
        %s180 = smul.addr %s177, 20
        %s181 = sadd.s32 %s179, %s180
        %s182 = smul.addr %s181, 4
        %s183 = scalar_lea.vmem %s1, %s182
        %s184 = smul.u32 5, %s18
      $region24: #{vivit_forward.15} parent=15 // pred_fallthru
        _
      // Predicated region
      $region25: #{vivit_forward.15} parent=15 // pred_check
        %p185 = pneg %p106
      $region26: #{vivit_forward.15} parent=15 // pred_check_branch
        %187 = sbr.rel (%p185) target = $region28
      $region27: #{vivit_forward.15} parent=15 // pred_region
        %s188 = smul.u32 5, %s18
        %p189 = scmp.lt.s32.totalorder %s16, 1
        %s190 = scalar_select %p189, %s16, 1
        %p191 = scmp.lt.s32.totalorder %s188, 4
        %s192 = scalar_select %p191, %s188, 4
        %s193 = smul.addr %s190, 20
        %s194 = sadd.s32 %s192, %s193
        %s195 = smul.addr %s194, 4
        %s196 = scalar_lea.vmem %s2, %s195
        %s197 = smul.u32 5, %s18
      $region28: #{vivit_forward.15} parent=15 // pred_fallthru
        _
    $region16: #{vivit_forward.15} parent=5 // pred_fallthru
      _
    %p198 = scmp.le.s32.totalorder 1, %s9
    %p199 = scmp.lt.s32.totalorder %s9, 3
    %p200 = pnand %p198, %p199
    %p201 = pneg %p200
    // Predicated region
    $region29: #{vivit_forward.15} parent=5 // pred_check
      _
    $region30: #{vivit_forward.15} parent=5 // pred_check_branch
      %203 = sbr.rel (%p200) target = $region32
    $region31: #{vivit_forward.15} parent=5 // pred_region
      %s204 = ssub.s32 %s9, 1
      %s205 = smul.u32 5, %s20
      %p206 = scmp.lt.s32.totalorder %s19, 1
      %s207 = scalar_select %p206, %s19, 1
      %p208 = scmp.lt.s32.totalorder %s205, 4
      %s209 = scalar_select %p208, %s205, 4
      %s210 = smul.addr %s207, 20
      %s211 = sadd.s32 %s209, %s210
      %s212 = smul.addr %s211, 4
      %s213 = scalar_lea.vmem %s0, %s212
      %p214 = pneg %p56
      %p215 = pneg %p53
      %s216 = smul.u32 5, %s21
      %p217 = scmp.lt.s32.totalorder %s19, 1
      %s218 = scalar_select %p217, %s19, 1
      %p219 = scmp.lt.s32.totalorder %s216, 4
      %s220 = scalar_select %p219, %s216, 4
      %s221 = smul.addr %s218, 20
      %s222 = sadd.s32 %s220, %s221
      %s223 = smul.addr %s222, 4
      %s224 = scalar_lea.vmem %s1, %s223
      %p225 = pneg %p84
      %p226 = pneg %p81
      %s227 = smul.u32 5, %s21
      %p228 = scmp.lt.s32.totalorder %s19, 1
      %s229 = scalar_select %p228, %s19, 1
      %p230 = scmp.lt.s32.totalorder %s227, 4
      %s231 = scalar_select %p230, %s227, 4
      %s232 = smul.addr %s229, 20
      %s233 = sadd.s32 %s231, %s232
      %s234 = smul.addr %s233, 4
      %s235 = scalar_lea.vmem %s2, %s234
      %p236 = pneg %p112
      %p237 = pneg %p109
      %p238 = pneg %p140
      %p239 = pneg %p137
      %s240 = smul.u32 5, %s20
      %p241 = scmp.lt.s32.totalorder %s19, 1
      %s242 = scalar_select %p241, %s19, 1
      %p243 = scmp.lt.s32.totalorder %s240, 4
      %s244 = scalar_select %p243, %s240, 4
      %s245 = smul.addr %s242, 5
      %s246 = sadd.s32 %s244, %s245
      %s247 = smul.addr %s246, 4
      %s248 = scalar_lea.vmem %s3, %s247
      %s249 = smul.u32 5, %s20
      %p250 = scmp.lt.s32.totalorder %s19, 1
      %s251 = scalar_select %p250, %s19, 1
      %p252 = scmp.lt.s32.totalorder %s249, 4
      %s253 = scalar_select %p252, %s249, 4
      %s254 = smul.addr %s251, 20
      %s255 = sadd.s32 %s253, %s254
      %s256 = smul.addr %s255, 4
      %s257 = scalar_lea.vmem %s0, %s256
      %s258 = smul.u32 5, %s20
      %s259 = smul.u32 5, %s21
      %p260 = scmp.lt.s32.totalorder %s19, 1
      %s261 = scalar_select %p260, %s19, 1
      %p262 = scmp.lt.s32.totalorder %s259, 4
      %s263 = scalar_select %p262, %s259, 4
      %s264 = smul.addr %s261, 20
      %s265 = sadd.s32 %s263, %s264
      %s266 = smul.addr %s265, 4
      %s267 = scalar_lea.vmem %s1, %s266
      %s268 = smul.u32 5, %s21
      %s269 = smul.u32 5, %s21
      %p270 = scmp.lt.s32.totalorder %s19, 1
      %s271 = scalar_select %p270, %s19, 1
      %p272 = scmp.lt.s32.totalorder %s269, 4
      %s273 = scalar_select %p272, %s269, 4
      %s274 = smul.addr %s271, 20
      %s275 = sadd.s32 %s273, %s274
      %s276 = smul.addr %s275, 4
      %s277 = scalar_lea.vmem %s2, %s276
      %s278 = smul.u32 5, %s21
      %s279 = smul.u32 5, %s20
      %p280 = scmp.lt.s32.totalorder %s19, 1
      %s281 = scalar_select %p280, %s19, 1
      %p282 = scmp.lt.s32.totalorder %s279, 4
      %s283 = scalar_select %p282, %s279, 4
      %s284 = smul.addr %s281, 5
      %s285 = sadd.s32 %s283, %s284
      %s286 = smul.addr %s285, 4
      %s287 = scalar_lea.vmem %s3, %s286
      %s288 = smul.u32 5, %s20
      %p290 = scmp.eq.s32.totalorder %s21, 0
      // Predicated region
      $region33: #{vivit_forward.15} parent=31 // pred_check
        %p291 = pneg %p290
      $region34: #{vivit_forward.15} parent=31 // pred_check_branch
        %293 = sbr.rel (%p291) target = $region36
      $region35: #{vivit_forward.15} parent=31 // pred_region
        %vm294 = vcmask 7168
        %295 = vst.msk [vmem:[#allocation2] sm:$0xff] %vm294, -inf
        %296 = vst.msk [vmem:[#allocation2 + $0x8] sm:$0xff] %vm294, -inf
        %297 = vst.msk [vmem:[#allocation2 + $0x10] sm:$0xff] %vm294, -inf
        %298 = vst.msk [vmem:[#allocation2 + $0x18] sm:$0xff] %vm294, -inf
        %299 = vst.msk [vmem:[#allocation2 + $0x20] sm:$0xff] %vm294, -inf
        %300 = vst.msk [vmem:[#allocation2 + $0x28] sm:$0xff] %vm294, -inf
        %301 = vst.msk [vmem:[#allocation2 + $0x30] sm:$0xff] %vm294, -inf
        %302 = vst.msk [vmem:[#allocation2 + $0x38] sm:$0xff] %vm294, -inf
        %303 = vst.msk [vmem:[#allocation2 + $0x40] sm:$0xff] %vm294, -inf
        %304 = vst.msk [vmem:[#allocation2 + $0x48] sm:$0xff] %vm294, -inf
        %305 = vst.msk [vmem:[#allocation2 + $0x50] sm:$0xff] %vm294, -inf
        %306 = vst.msk [vmem:[#allocation2 + $0x58] sm:$0xff] %vm294, -inf
        %307 = vst.msk [vmem:[#allocation2 + $0x60] sm:$0xff] %vm294, -inf
        %308 = vst.msk [vmem:[#allocation2 + $0x68] sm:$0xff] %vm294, -inf
        %309 = vst.msk [vmem:[#allocation2 + $0x70] sm:$0xff] %vm294, -inf
        %310 = vst.msk [vmem:[#allocation2 + $0x78] sm:$0xff] %vm294, -inf
        %311 = vst.msk [vmem:[#allocation2 + $0x80] sm:$0xff] %vm294, -inf
        %312 = vst.msk [vmem:[#allocation2 + $0x88] sm:$0xff] %vm294, -inf
        %313 = vst.msk [vmem:[#allocation2 + $0x90] sm:$0xff] %vm294, -inf
        %314 = vst.msk [vmem:[#allocation2 + $0x98] sm:$0xff] %vm294, -inf
        %315 = vst.msk [vmem:[#allocation3] sm:$0xff] %vm294, 0.0
        %316 = vst.msk [vmem:[#allocation3 + $0x8] sm:$0xff] %vm294, 0.0
        %317 = vst.msk [vmem:[#allocation3 + $0x10] sm:$0xff] %vm294, 0.0
        %318 = vst.msk [vmem:[#allocation3 + $0x18] sm:$0xff] %vm294, 0.0
        %319 = vst.msk [vmem:[#allocation3 + $0x20] sm:$0xff] %vm294, 0.0
        %320 = vst.msk [vmem:[#allocation3 + $0x28] sm:$0xff] %vm294, 0.0
        %321 = vst.msk [vmem:[#allocation3 + $0x30] sm:$0xff] %vm294, 0.0
        %322 = vst.msk [vmem:[#allocation3 + $0x38] sm:$0xff] %vm294, 0.0
        %323 = vst.msk [vmem:[#allocation3 + $0x40] sm:$0xff] %vm294, 0.0
        %324 = vst.msk [vmem:[#allocation3 + $0x48] sm:$0xff] %vm294, 0.0
        %325 = vst.msk [vmem:[#allocation3 + $0x50] sm:$0xff] %vm294, 0.0
        %326 = vst.msk [vmem:[#allocation3 + $0x58] sm:$0xff] %vm294, 0.0
        %327 = vst.msk [vmem:[#allocation3 + $0x60] sm:$0xff] %vm294, 0.0
        %328 = vst.msk [vmem:[#allocation3 + $0x68] sm:$0xff] %vm294, 0.0
        %329 = vst.msk [vmem:[#allocation3 + $0x70] sm:$0xff] %vm294, 0.0
        %330 = vst.msk [vmem:[#allocation3 + $0x78] sm:$0xff] %vm294, 0.0
        %331 = vst.msk [vmem:[#allocation3 + $0x80] sm:$0xff] %vm294, 0.0
        %332 = vst.msk [vmem:[#allocation3 + $0x88] sm:$0xff] %vm294, 0.0
        %333 = vst.msk [vmem:[#allocation3 + $0x90] sm:$0xff] %vm294, 0.0
        %334 = vst.msk [vmem:[#allocation3 + $0x98] sm:$0xff] %vm294, 0.0
        %vm335 = vcmask 64512
        %336 = vst.msk [vmem:[#allocation4] sm:$0xff] %vm335, 0.0
        %337 = vst.msk [vmem:[#allocation4 + $0x8] sm:$0xff] %vm335, 0.0
        %338 = vst.msk [vmem:[#allocation4 + $0x10] sm:$0xff] %vm335, 0.0
        %339 = vst.msk [vmem:[#allocation4 + $0x18] sm:$0xff] %vm335, 0.0
        %340 = vst.msk [vmem:[#allocation4 + $0x20] sm:$0xff] %vm335, 0.0
        %341 = vst.msk [vmem:[#allocation4 + $0x28] sm:$0xff] %vm335, 0.0
        %342 = vst.msk [vmem:[#allocation4 + $0x30] sm:$0xff] %vm335, 0.0
        %343 = vst.msk [vmem:[#allocation4 + $0x38] sm:$0xff] %vm335, 0.0
        %344 = vst.msk [vmem:[#allocation4 + $0x40] sm:$0xff] %vm335, 0.0
        %345 = vst.msk [vmem:[#allocation4 + $0x48] sm:$0xff] %vm335, 0.0
        %346 = vst.msk [vmem:[#allocation4 + $0x50] sm:$0xff] %vm335, 0.0
        %347 = vst.msk [vmem:[#allocation4 + $0x58] sm:$0xff] %vm335, 0.0
        %348 = vst.msk [vmem:[#allocation4 + $0x60] sm:$0xff] %vm335, 0.0
        %349 = vst.msk [vmem:[#allocation4 + $0x68] sm:$0xff] %vm335, 0.0
        %350 = vst.msk [vmem:[#allocation4 + $0x70] sm:$0xff] %vm335, 0.0
        %351 = vst.msk [vmem:[#allocation4 + $0x78] sm:$0xff] %vm335, 0.0
        %352 = vst.msk [vmem:[#allocation4 + $0x80] sm:$0xff] %vm335, 0.0
        %353 = vst.msk [vmem:[#allocation4 + $0x88] sm:$0xff] %vm335, 0.0
        %354 = vst.msk [vmem:[#allocation4 + $0x90] sm:$0xff] %vm335, 0.0
        %355 = vst.msk [vmem:[#allocation4 + $0x98] sm:$0xff] %vm335, 0.0
      $region36: #{vivit_forward.15} parent=31 // pred_fallthru
        _
      %v356 = vld [vmem:[%s257] sm:$0xf]
      %v357 = vld [vmem:[%s257 + $0x4] sm:$0xf]
      %v358 = vld [vmem:[%s257 + $0x8] sm:$0xf]
      %v359 = vld [vmem:[%s257 + $0xc] sm:$0xf]
      %v360 = vld [vmem:[%s257 + $0x10] sm:$0xf]
      %v361 = vld [vmem:[%s257 + $0x14] sm:$0xf]
      %v362 = vld [vmem:[%s257 + $0x18] sm:$0xf]
      %v363 = vld [vmem:[%s257 + $0x1c] sm:$0xf]
      %v364 = vld [vmem:[%s257 + $0x20] sm:$0xf]
      %v365 = vld [vmem:[%s257 + $0x24] sm:$0xf]
      %v366 = vld [vmem:[%s257 + $0x28] sm:$0xf]
      %v367 = vld [vmem:[%s257 + $0x2c] sm:$0xf]
      %v368 = vld [vmem:[%s257 + $0x30] sm:$0xf]
      %v369 = vld [vmem:[%s257 + $0x34] sm:$0xf]
      %v370 = vld [vmem:[%s257 + $0x38] sm:$0xf]
      %v371 = vld [vmem:[%s257 + $0x3c] sm:$0xf]
      %v372 = vld [vmem:[%s257 + $0x40] sm:$0xf]
      %v373 = vld [vmem:[%s257 + $0x44] sm:$0xf]
      %v374 = vld [vmem:[%s257 + $0x48] sm:$0xf]
      %v375 = vld [vmem:[%s257 + $0x4c] sm:$0xf]
      %v376 = vunpack.c.l.bf16 %v356
      %v377 = vunpack.c.l.bf16 %v357
      %v378 = vunpack.c.l.bf16 %v358
      %v379 = vunpack.c.l.bf16 %v359
      %v380 = vunpack.c.l.bf16 %v360
      %v381 = vunpack.c.l.bf16 %v361
      %v382 = vunpack.c.l.bf16 %v362
      %v383 = vunpack.c.l.bf16 %v363
      %v384 = vunpack.c.l.bf16 %v364
      %v385 = vunpack.c.l.bf16 %v365
      %v386 = vunpack.c.l.bf16 %v366
      %v387 = vunpack.c.l.bf16 %v367
      %v388 = vunpack.c.l.bf16 %v368
      %v389 = vunpack.c.l.bf16 %v369
      %v390 = vunpack.c.l.bf16 %v370
      %v391 = vunpack.c.l.bf16 %v371
      %v392 = vunpack.c.l.bf16 %v372
      %v393 = vunpack.c.l.bf16 %v373
      %v394 = vunpack.c.l.bf16 %v374
      %v395 = vunpack.c.l.bf16 %v375
      %v396 = vmul.f32 %v376, 0.35351563
      %v397 = vmul.f32 %v377, 0.35351563
      %v398 = vmul.f32 %v378, 0.35351563
      %v399 = vmul.f32 %v379, 0.35351563
      %v400 = vmul.f32 %v380, 0.35351563
      %v401 = vmul.f32 %v381, 0.35351563
      %v402 = vmul.f32 %v382, 0.35351563
      %v403 = vmul.f32 %v383, 0.35351563
      %v404 = vmul.f32 %v384, 0.35351563
      %v405 = vmul.f32 %v385, 0.35351563
      %v406 = vmul.f32 %v386, 0.35351563
      %v407 = vmul.f32 %v387, 0.35351563
      %v408 = vmul.f32 %v388, 0.35351563
      %v409 = vmul.f32 %v389, 0.35351563
      %v410 = vmul.f32 %v390, 0.35351563
      %v411 = vmul.f32 %v391, 0.35351563
      %v412 = vmul.f32 %v392, 0.35351563
      %v413 = vmul.f32 %v393, 0.35351563
      %v414 = vmul.f32 %v394, 0.35351563
      %v415 = vmul.f32 %v395, 0.35351563
      %v416 = vpack.c.bf16 %v396, %v396
      %v417 = vpack.c.bf16 %v397, %v397
      %v418 = vpack.c.bf16 %v398, %v398
      %v419 = vpack.c.bf16 %v399, %v399
      %v420 = vpack.c.bf16 %v400, %v400
      %v421 = vpack.c.bf16 %v401, %v401
      %v422 = vpack.c.bf16 %v402, %v402
      %v423 = vpack.c.bf16 %v403, %v403
      %v424 = vpack.c.bf16 %v404, %v404
      %v425 = vpack.c.bf16 %v405, %v405
      %v426 = vpack.c.bf16 %v406, %v406
      %v427 = vpack.c.bf16 %v407, %v407
      %v428 = vpack.c.bf16 %v408, %v408
      %v429 = vpack.c.bf16 %v409, %v409
      %v430 = vpack.c.bf16 %v410, %v410
      %v431 = vpack.c.bf16 %v411, %v411
      %v432 = vpack.c.bf16 %v412, %v412
      %v433 = vpack.c.bf16 %v413, %v413
      %v434 = vpack.c.bf16 %v414, %v414
      %v435 = vpack.c.bf16 %v415, %v415
      %v436 = vld [vmem:[%s267] sm:$0xf]
      %v437 = vld [vmem:[%s267 + $0x4] sm:$0xf]
      %v438 = vld [vmem:[%s267 + $0x8] sm:$0xf]
      %v439 = vld [vmem:[%s267 + $0xc] sm:$0xf]
      %v440 = vld [vmem:[%s267 + $0x10] sm:$0xf]
      %v441 = vld [vmem:[%s267 + $0x14] sm:$0xf]
      %v442 = vld [vmem:[%s267 + $0x18] sm:$0xf]
      %v443 = vld [vmem:[%s267 + $0x1c] sm:$0xf]
      %v444 = vld [vmem:[%s267 + $0x20] sm:$0xf]
      %v445 = vld [vmem:[%s267 + $0x24] sm:$0xf]
      %v446 = vld [vmem:[%s267 + $0x28] sm:$0xf]
      %v447 = vld [vmem:[%s267 + $0x2c] sm:$0xf]
      %v448 = vld [vmem:[%s267 + $0x30] sm:$0xf]
      %v449 = vld [vmem:[%s267 + $0x34] sm:$0xf]
      %v450 = vld [vmem:[%s267 + $0x38] sm:$0xf]
      %v451 = vld [vmem:[%s267 + $0x3c] sm:$0xf]
      %v452 = vld [vmem:[%s267 + $0x40] sm:$0xf]
      %v453 = vld [vmem:[%s267 + $0x44] sm:$0xf]
      %v454 = vld [vmem:[%s267 + $0x48] sm:$0xf]
      %v455 = vld [vmem:[%s267 + $0x4c] sm:$0xf]
      %v456 = vld [vmem:[%s277] sm:$0xf]
      %v457 = vld [vmem:[%s277 + $0x4] sm:$0xf]
      %v458 = vld [vmem:[%s277 + $0x8] sm:$0xf]
      %v459 = vld [vmem:[%s277 + $0xc] sm:$0xf]
      %v460 = vld [vmem:[%s277 + $0x10] sm:$0xf]
      %v461 = vld [vmem:[%s277 + $0x14] sm:$0xf]
      %v462 = vld [vmem:[%s277 + $0x18] sm:$0xf]
      %v463 = vld [vmem:[%s277 + $0x1c] sm:$0xf]
      %v464 = vld [vmem:[%s277 + $0x20] sm:$0xf]
      %v465 = vld [vmem:[%s277 + $0x24] sm:$0xf]
      %v466 = vld [vmem:[%s277 + $0x28] sm:$0xf]
      %v467 = vld [vmem:[%s277 + $0x2c] sm:$0xf]
      %v468 = vld [vmem:[%s277 + $0x30] sm:$0xf]
      %v469 = vld [vmem:[%s277 + $0x34] sm:$0xf]
      %v470 = vld [vmem:[%s277 + $0x38] sm:$0xf]
      %v471 = vld [vmem:[%s277 + $0x3c] sm:$0xf]
      %v472 = vld [vmem:[%s277 + $0x40] sm:$0xf]
      %v473 = vld [vmem:[%s277 + $0x44] sm:$0xf]
      %v474 = vld [vmem:[%s277 + $0x48] sm:$0xf]
      %v475 = vld [vmem:[%s277 + $0x4c] sm:$0xf]
      %v481 = vunpack.c.l.b16 %v416
      %v482 = vunpack.c.l.b16 %v417
      %v483 = vunpack.c.l.b16 %v418
      %v484 = vunpack.c.l.b16 %v419
      %v485 = vunpack.c.l.b16 %v420
      %v486 = vpack.c.b16 %v482, %v481
      %v487 = vpack.c.b16 %v484, %v483
      %v488 = vpack.c.b16 %v485, %v485
      %v494 = vunpack.c.l.b16 %v436
      %v495 = vunpack.c.l.b16 %v437
      %v496 = vunpack.c.l.b16 %v438
      %v497 = vunpack.c.l.b16 %v439
      %v498 = vunpack.c.l.b16 %v440
      %v499 = vpack.c.b16 %v495, %v494
      %v500 = vpack.c.b16 %v497, %v496
      %v501 = vpack.c.b16 %v498, %v498
      %vm502 = vcmask 64512
      %v504 = vsel %vm502, %v486, 0
      %v507 = vsel %vm502, %v487, 0
      %v510 = vsel %vm502, %v488, 0
      %v513 = vsel %vm502, %v499, 0
      %v516 = vsel %vm502, %v500, 0
      %v519 = vsel %vm502, %v501, 0
      %521 = vmatpush.bf16.xpose.msra.mxu0 0
      %522 = vmatpush.bf16.xpose.msra.mxu0 0
      %523 = vmatpush.bf16.xpose.msra.mxu0 0
      %524 = vmatpush.bf16.xpose.msra.mxu0 0
      %525 = vmatpush.bf16.xpose.msra.mxu0 0
      %526 = vmatpush.bf16.xpose.msra.mxu0 %v519
      %527 = vmatpush.bf16.xpose.msra.mxu0 %v516
      %528 = vmatpush.bf16.xpose.msra.mxu0 %v513
      %529 = vmatmul.bf16.gmra.mxu0 %v504
      %v530 = vpop.f32.mrf.mxu0
      %v531 = vadd.f32 0.0, %v530
      %v532 = vpop.f32.mrf.mxu0
      %v533 = vadd.f32 0.0, %v532
      %534 = vmatmul.bf16.gmra.mxu0 %v507
      %v535 = vpop.f32.mrf.mxu0
      %v536 = vadd.f32 0.0, %v535
      %v537 = vpop.f32.mrf.mxu0
      %v538 = vadd.f32 0.0, %v537
      %539 = vmatmul.bf16.gmra.mxu0 %v510
      %v540 = vpop.f32.mrf.mxu0
      %v541 = vadd.f32 0.0, %v540
      %v542 = vpop.f32.mrf.mxu0
      %543 = vdwg.mxu0
      %v549 = vunpack.c.l.b16 %v421
      %v550 = vunpack.c.l.b16 %v422
      %v551 = vunpack.c.l.b16 %v423
      %v552 = vunpack.c.l.b16 %v424
      %v553 = vunpack.c.l.b16 %v425
      %v554 = vpack.c.b16 %v550, %v549
      %v555 = vpack.c.b16 %v552, %v551
      %v556 = vpack.c.b16 %v553, %v553
      %v562 = vunpack.c.l.b16 %v441
      %v563 = vunpack.c.l.b16 %v442
      %v564 = vunpack.c.l.b16 %v443
      %v565 = vunpack.c.l.b16 %v444
      %v566 = vunpack.c.l.b16 %v445
      %v567 = vpack.c.b16 %v563, %v562
      %v568 = vpack.c.b16 %v565, %v564
      %v569 = vpack.c.b16 %v566, %v566
      %v571 = vsel %vm502, %v554, 0
      %v574 = vsel %vm502, %v555, 0
      %v577 = vsel %vm502, %v556, 0
      %v580 = vsel %vm502, %v567, 0
      %v583 = vsel %vm502, %v568, 0
      %v586 = vsel %vm502, %v569, 0
      %588 = vmatpush.bf16.xpose.msra.mxu0 0
      %589 = vmatpush.bf16.xpose.msra.mxu0 0
      %590 = vmatpush.bf16.xpose.msra.mxu0 0
      %591 = vmatpush.bf16.xpose.msra.mxu0 0
      %592 = vmatpush.bf16.xpose.msra.mxu0 0
      %593 = vmatpush.bf16.xpose.msra.mxu0 %v586
      %594 = vmatpush.bf16.xpose.msra.mxu0 %v583
      %595 = vmatpush.bf16.xpose.msra.mxu0 %v580
      %596 = vmatmul.bf16.gmra.mxu0 %v571
      %v597 = vpop.f32.mrf.mxu0
      %v598 = vadd.f32 0.0, %v597
      %v599 = vpop.f32.mrf.mxu0
      %v600 = vadd.f32 0.0, %v599
      %601 = vmatmul.bf16.gmra.mxu0 %v574
      %v602 = vpop.f32.mrf.mxu0
      %v603 = vadd.f32 0.0, %v602
      %v604 = vpop.f32.mrf.mxu0
      %v605 = vadd.f32 0.0, %v604
      %606 = vmatmul.bf16.gmra.mxu0 %v577
      %v607 = vpop.f32.mrf.mxu0
      %v608 = vadd.f32 0.0, %v607
      %v609 = vpop.f32.mrf.mxu0
      %610 = vdwg.mxu0
      %v616 = vunpack.c.l.b16 %v426
      %v617 = vunpack.c.l.b16 %v427
      %v618 = vunpack.c.l.b16 %v428
      %v619 = vunpack.c.l.b16 %v429
      %v620 = vunpack.c.l.b16 %v430
      %v621 = vpack.c.b16 %v617, %v616
      %v622 = vpack.c.b16 %v619, %v618
      %v623 = vpack.c.b16 %v620, %v620
      %v629 = vunpack.c.l.b16 %v446
      %v630 = vunpack.c.l.b16 %v447
      %v631 = vunpack.c.l.b16 %v448
      %v632 = vunpack.c.l.b16 %v449
      %v633 = vunpack.c.l.b16 %v450
      %v634 = vpack.c.b16 %v630, %v629
      %v635 = vpack.c.b16 %v632, %v631
      %v636 = vpack.c.b16 %v633, %v633
      %v638 = vsel %vm502, %v621, 0
      %v641 = vsel %vm502, %v622, 0
      %v644 = vsel %vm502, %v623, 0
      %v647 = vsel %vm502, %v634, 0
      %v650 = vsel %vm502, %v635, 0
      %v653 = vsel %vm502, %v636, 0
      %655 = vmatpush.bf16.xpose.msra.mxu0 0
      %656 = vmatpush.bf16.xpose.msra.mxu0 0
      %657 = vmatpush.bf16.xpose.msra.mxu0 0
      %658 = vmatpush.bf16.xpose.msra.mxu0 0
      %659 = vmatpush.bf16.xpose.msra.mxu0 0
      %660 = vmatpush.bf16.xpose.msra.mxu0 %v653
      %661 = vmatpush.bf16.xpose.msra.mxu0 %v650
      %662 = vmatpush.bf16.xpose.msra.mxu0 %v647
      %663 = vmatmul.bf16.gmra.mxu0 %v638
      %v664 = vpop.f32.mrf.mxu0
      %v665 = vadd.f32 0.0, %v664
      %v666 = vpop.f32.mrf.mxu0
      %v667 = vadd.f32 0.0, %v666
      %668 = vmatmul.bf16.gmra.mxu0 %v641
      %v669 = vpop.f32.mrf.mxu0
      %v670 = vadd.f32 0.0, %v669
      %v671 = vpop.f32.mrf.mxu0
      %v672 = vadd.f32 0.0, %v671
      %673 = vmatmul.bf16.gmra.mxu0 %v644
      %v674 = vpop.f32.mrf.mxu0
      %v675 = vadd.f32 0.0, %v674
      %v676 = vpop.f32.mrf.mxu0
      %677 = vdwg.mxu0
      %v683 = vunpack.c.l.b16 %v431
      %v684 = vunpack.c.l.b16 %v432
      %v685 = vunpack.c.l.b16 %v433
      %v686 = vunpack.c.l.b16 %v434
      %v687 = vunpack.c.l.b16 %v435
      %v688 = vpack.c.b16 %v684, %v683
      %v689 = vpack.c.b16 %v686, %v685
      %v690 = vpack.c.b16 %v687, %v687
      %v696 = vunpack.c.l.b16 %v451
      %v697 = vunpack.c.l.b16 %v452
      %v698 = vunpack.c.l.b16 %v453
      %v699 = vunpack.c.l.b16 %v454
      %v700 = vunpack.c.l.b16 %v455
      %v701 = vpack.c.b16 %v697, %v696
      %v702 = vpack.c.b16 %v699, %v698
      %v703 = vpack.c.b16 %v700, %v700
      %v705 = vsel %vm502, %v688, 0
      %v708 = vsel %vm502, %v689, 0
      %v711 = vsel %vm502, %v690, 0
      %v714 = vsel %vm502, %v701, 0
      %v717 = vsel %vm502, %v702, 0
      %v720 = vsel %vm502, %v703, 0
      %722 = vmatpush.bf16.xpose.msra.mxu0 0
      %723 = vmatpush.bf16.xpose.msra.mxu0 0
      %724 = vmatpush.bf16.xpose.msra.mxu0 0
      %725 = vmatpush.bf16.xpose.msra.mxu0 0
      %726 = vmatpush.bf16.xpose.msra.mxu0 0
      %727 = vmatpush.bf16.xpose.msra.mxu0 %v720
      %728 = vmatpush.bf16.xpose.msra.mxu0 %v717
      %729 = vmatpush.bf16.xpose.msra.mxu0 %v714
      %730 = vmatmul.bf16.gmra.mxu0 %v705
      %v731 = vpop.f32.mrf.mxu0
      %v732 = vadd.f32 0.0, %v731
      %v733 = vpop.f32.mrf.mxu0
      %v734 = vadd.f32 0.0, %v733
      %735 = vmatmul.bf16.gmra.mxu0 %v708
      %v736 = vpop.f32.mrf.mxu0
      %v737 = vadd.f32 0.0, %v736
      %v738 = vpop.f32.mrf.mxu0
      %v739 = vadd.f32 0.0, %v738
      %740 = vmatmul.bf16.gmra.mxu0 %v711
      %v741 = vpop.f32.mrf.mxu0
      %v742 = vadd.f32 0.0, %v741
      %v743 = vpop.f32.mrf.mxu0
      %744 = vdwg.mxu0
      %v745 = vlaneseq
      %v746 = vand.u32 %v745, 127
      %s747 = smul.u32 %s21, 40
      %v748 = vstv %s747
      %v749 = vadd.s32 %v746, %v748
      %vm750 = vcmp.lt.s32.totalorder %v749, 33
      %v751 = vsel %vm750, 1, 0
      %vm752 = vcmp.eq.s32.totalorder %v751, 1
      %v753 = vsel %vm752, %v531, -1e+30
      %v754 = vsel %vm752, %v533, -1e+30
      %v755 = vsel %vm752, %v536, -1e+30
      %v756 = vsel %vm752, %v538, -1e+30
      %v757 = vsel %vm752, %v541, -1e+30
      %v758 = vsel %vm752, %v598, -1e+30
      %v759 = vsel %vm752, %v600, -1e+30
      %v760 = vsel %vm752, %v603, -1e+30
      %v761 = vsel %vm752, %v605, -1e+30
      %v762 = vsel %vm752, %v608, -1e+30
      %v763 = vsel %vm752, %v665, -1e+30
      %v764 = vsel %vm752, %v667, -1e+30
      %v765 = vsel %vm752, %v670, -1e+30
      %v766 = vsel %vm752, %v672, -1e+30
      %v767 = vsel %vm752, %v675, -1e+30
      %v768 = vsel %vm752, %v732, -1e+30
      %v769 = vsel %vm752, %v734, -1e+30
      %v770 = vsel %vm752, %v737, -1e+30
      %v771 = vsel %vm752, %v739, -1e+30
      %v772 = vsel %vm752, %v742, -1e+30
      %v773 = vld [vmem:[#allocation2] sm:$0xff]
      %v774 = vld [vmem:[#allocation2 + $0x8] sm:$0xff]
      %v775 = vld [vmem:[#allocation2 + $0x10] sm:$0xff]
      %v776 = vld [vmem:[#allocation2 + $0x18] sm:$0xff]
      %v777 = vld [vmem:[#allocation2 + $0x20] sm:$0xff]
      %v778 = vld [vmem:[#allocation2 + $0x28] sm:$0xff]
      %v779 = vld [vmem:[#allocation2 + $0x30] sm:$0xff]
      %v780 = vld [vmem:[#allocation2 + $0x38] sm:$0xff]
      %v781 = vld [vmem:[#allocation2 + $0x40] sm:$0xff]
      %v782 = vld [vmem:[#allocation2 + $0x48] sm:$0xff]
      %v783 = vld [vmem:[#allocation2 + $0x50] sm:$0xff]
      %v784 = vld [vmem:[#allocation2 + $0x58] sm:$0xff]
      %v785 = vld [vmem:[#allocation2 + $0x60] sm:$0xff]
      %v786 = vld [vmem:[#allocation2 + $0x68] sm:$0xff]
      %v787 = vld [vmem:[#allocation2 + $0x70] sm:$0xff]
      %v788 = vld [vmem:[#allocation2 + $0x78] sm:$0xff]
      %v789 = vld [vmem:[#allocation2 + $0x80] sm:$0xff]
      %v790 = vld [vmem:[#allocation2 + $0x88] sm:$0xff]
      %v791 = vld [vmem:[#allocation2 + $0x90] sm:$0xff]
      %v792 = vld [vmem:[#allocation2 + $0x98] sm:$0xff]
      %vm793 = vcmask 326656
      %v794 = vsel %vm793, %v753, -inf
      %795 = vmax.xlane.f32.xlu0 %v794
      %v796 = vpop.xlane.xlu0 %795
      %v797 = vsel %vm793, %v754, -inf
      %798 = vmax.xlane.f32.xlu0 %v797
      %v799 = vpop.xlane.xlu0 %798
      %v800 = vsel %vm793, %v755, -inf
      %801 = vmax.xlane.f32.xlu0 %v800
      %v802 = vpop.xlane.xlu0 %801
      %v803 = vsel %vm793, %v756, -inf
      %804 = vmax.xlane.f32.xlu0 %v803
      %v805 = vpop.xlane.xlu0 %804
      %v806 = vsel %vm793, %v757, -inf
      %807 = vmax.xlane.f32.xlu0 %v806
      %v808 = vpop.xlane.xlu0 %807
      %v809 = vsel %vm793, %v758, -inf
      %810 = vmax.xlane.f32.xlu0 %v809
      %v811 = vpop.xlane.xlu0 %810
      %v812 = vsel %vm793, %v759, -inf
      %813 = vmax.xlane.f32.xlu0 %v812
      %v814 = vpop.xlane.xlu0 %813
      %v815 = vsel %vm793, %v760, -inf
      %816 = vmax.xlane.f32.xlu0 %v815
      %v817 = vpop.xlane.xlu0 %816
      %v818 = vsel %vm793, %v761, -inf
      %819 = vmax.xlane.f32.xlu0 %v818
      %v820 = vpop.xlane.xlu0 %819
      %v821 = vsel %vm793, %v762, -inf
      %822 = vmax.xlane.f32.xlu0 %v821
      %v823 = vpop.xlane.xlu0 %822
      %v824 = vsel %vm793, %v763, -inf
      %825 = vmax.xlane.f32.xlu0 %v824
      %v826 = vpop.xlane.xlu0 %825
      %v827 = vsel %vm793, %v764, -inf
      %828 = vmax.xlane.f32.xlu0 %v827
      %v829 = vpop.xlane.xlu0 %828
      %v830 = vsel %vm793, %v765, -inf
      %831 = vmax.xlane.f32.xlu0 %v830
      %v832 = vpop.xlane.xlu0 %831
      %v833 = vsel %vm793, %v766, -inf
      %834 = vmax.xlane.f32.xlu0 %v833
      %v835 = vpop.xlane.xlu0 %834
      %v836 = vsel %vm793, %v767, -inf
      %837 = vmax.xlane.f32.xlu0 %v836
      %v838 = vpop.xlane.xlu0 %837
      %v839 = vsel %vm793, %v768, -inf
      %840 = vmax.xlane.f32.xlu0 %v839
      %v841 = vpop.xlane.xlu0 %840
      %v842 = vsel %vm793, %v769, -inf
      %843 = vmax.xlane.f32.xlu0 %v842
      %v844 = vpop.xlane.xlu0 %843
      %v845 = vsel %vm793, %v770, -inf
      %846 = vmax.xlane.f32.xlu0 %v845
      %v847 = vpop.xlane.xlu0 %846
      %v848 = vsel %vm793, %v771, -inf
      %849 = vmax.xlane.f32.xlu0 %v848
      %v850 = vpop.xlane.xlu0 %849
      %v851 = vsel %vm793, %v772, -inf
      %852 = vmax.xlane.f32.xlu0 %v851
      %v853 = vpop.xlane.xlu0 %852
      %v854 = vmax.f32 %v773, %v796
      %v855 = vmax.f32 %v774, %v799
      %v856 = vmax.f32 %v775, %v802
      %v857 = vmax.f32 %v776, %v805
      %v858 = vmax.f32 %v777, %v808
      %v859 = vmax.f32 %v778, %v811
      %v860 = vmax.f32 %v779, %v814
      %v861 = vmax.f32 %v780, %v817
      %v862 = vmax.f32 %v781, %v820
      %v863 = vmax.f32 %v782, %v823
      %v864 = vmax.f32 %v783, %v826
      %v865 = vmax.f32 %v784, %v829
      %v866 = vmax.f32 %v785, %v832
      %v867 = vmax.f32 %v786, %v835
      %v868 = vmax.f32 %v787, %v838
      %v869 = vmax.f32 %v788, %v841
      %v870 = vmax.f32 %v789, %v844
      %v871 = vmax.f32 %v790, %v847
      %v872 = vmax.f32 %v791, %v850
      %v873 = vmax.f32 %v792, %v853
      %v874 = vsub.f32 %v773, %v854
      %v875 = vsub.f32 %v774, %v855
      %v876 = vsub.f32 %v775, %v856
      %v877 = vsub.f32 %v776, %v857
      %v878 = vsub.f32 %v777, %v858
      %v879 = vsub.f32 %v778, %v859
      %v880 = vsub.f32 %v779, %v860
      %v881 = vsub.f32 %v780, %v861
      %v882 = vsub.f32 %v781, %v862
      %v883 = vsub.f32 %v782, %v863
      %v884 = vsub.f32 %v783, %v864
      %v885 = vsub.f32 %v784, %v865
      %v886 = vsub.f32 %v785, %v866
      %v887 = vsub.f32 %v786, %v867
      %v888 = vsub.f32 %v787, %v868
      %v889 = vsub.f32 %v788, %v869
      %v890 = vsub.f32 %v789, %v870
      %v891 = vsub.f32 %v790, %v871
      %v892 = vsub.f32 %v791, %v872
      %v893 = vsub.f32 %v792, %v873
      %v894 = vmul.f32 %v874, 1.442695
      %v895 = vpow.pop %v894
      %v896 = vmul.f32 %v875, 1.442695
      %v897 = vpow.pop %v896
      %v898 = vmul.f32 %v876, 1.442695
      %v899 = vpow.pop %v898
      %v900 = vmul.f32 %v877, 1.442695
      %v901 = vpow.pop %v900
      %v902 = vmul.f32 %v878, 1.442695
      %v903 = vpow.pop %v902
      %v904 = vmul.f32 %v879, 1.442695
      %v905 = vpow.pop %v904
      %v906 = vmul.f32 %v880, 1.442695
      %v907 = vpow.pop %v906
      %v908 = vmul.f32 %v881, 1.442695
      %v909 = vpow.pop %v908
      %v910 = vmul.f32 %v882, 1.442695
      %v911 = vpow.pop %v910
      %v912 = vmul.f32 %v883, 1.442695
      %v913 = vpow.pop %v912
      %v914 = vmul.f32 %v884, 1.442695
      %v915 = vpow.pop %v914
      %v916 = vmul.f32 %v885, 1.442695
      %v917 = vpow.pop %v916
      %v918 = vmul.f32 %v886, 1.442695
      %v919 = vpow.pop %v918
      %v920 = vmul.f32 %v887, 1.442695
      %v921 = vpow.pop %v920
      %v922 = vmul.f32 %v888, 1.442695
      %v923 = vpow.pop %v922
      %v924 = vmul.f32 %v889, 1.442695
      %v925 = vpow.pop %v924
      %v926 = vmul.f32 %v890, 1.442695
      %v927 = vpow.pop %v926
      %v928 = vmul.f32 %v891, 1.442695
      %v929 = vpow.pop %v928
      %v930 = vmul.f32 %v892, 1.442695
      %v931 = vpow.pop %v930
      %v932 = vmul.f32 %v893, 1.442695
      %v933 = vpow.pop %v932
      %935 = vset.pattern.permute.xlu0 0
      %936 = vperm.xlu0 %935, %v854
      %v937 = vpop.permute.xlu0 %936
      %940 = vset.pattern.permute.xlu0 0
      %941 = vperm.xlu0 %940, %v855
      %v942 = vpop.permute.xlu0 %941
      %945 = vset.pattern.permute.xlu0 0
      %946 = vperm.xlu0 %945, %v856
      %v947 = vpop.permute.xlu0 %946
      %950 = vset.pattern.permute.xlu0 0
      %951 = vperm.xlu0 %950, %v857
      %v952 = vpop.permute.xlu0 %951
      %955 = vset.pattern.permute.xlu0 0
      %956 = vperm.xlu0 %955, %v858
      %v957 = vpop.permute.xlu0 %956
      %960 = vset.pattern.permute.xlu0 0
      %961 = vperm.xlu0 %960, %v859
      %v962 = vpop.permute.xlu0 %961
      %965 = vset.pattern.permute.xlu0 0
      %966 = vperm.xlu0 %965, %v860
      %v967 = vpop.permute.xlu0 %966
      %970 = vset.pattern.permute.xlu0 0
      %971 = vperm.xlu0 %970, %v861
      %v972 = vpop.permute.xlu0 %971
      %975 = vset.pattern.permute.xlu0 0
      %976 = vperm.xlu0 %975, %v862
      %v977 = vpop.permute.xlu0 %976
      %980 = vset.pattern.permute.xlu0 0
      %981 = vperm.xlu0 %980, %v863
      %v982 = vpop.permute.xlu0 %981
      %985 = vset.pattern.permute.xlu0 0
      %986 = vperm.xlu0 %985, %v864
      %v987 = vpop.permute.xlu0 %986
      %990 = vset.pattern.permute.xlu0 0
      %991 = vperm.xlu0 %990, %v865
      %v992 = vpop.permute.xlu0 %991
      %995 = vset.pattern.permute.xlu0 0
      %996 = vperm.xlu0 %995, %v866
      %v997 = vpop.permute.xlu0 %996
      %1000 = vset.pattern.permute.xlu0 0
      %1001 = vperm.xlu0 %1000, %v867
      %v1002 = vpop.permute.xlu0 %1001
      %1005 = vset.pattern.permute.xlu0 0
      %1006 = vperm.xlu0 %1005, %v868
      %v1007 = vpop.permute.xlu0 %1006
      %1010 = vset.pattern.permute.xlu0 0
      %1011 = vperm.xlu0 %1010, %v869
      %v1012 = vpop.permute.xlu0 %1011
      %1015 = vset.pattern.permute.xlu0 0
      %1016 = vperm.xlu0 %1015, %v870
      %v1017 = vpop.permute.xlu0 %1016
      %1020 = vset.pattern.permute.xlu0 0
      %1021 = vperm.xlu0 %1020, %v871
      %v1022 = vpop.permute.xlu0 %1021
      %1025 = vset.pattern.permute.xlu0 0
      %1026 = vperm.xlu0 %1025, %v872
      %v1027 = vpop.permute.xlu0 %1026
      %1030 = vset.pattern.permute.xlu0 0
      %1031 = vperm.xlu0 %1030, %v873
      %v1032 = vpop.permute.xlu0 %1031
      %v1034 = vsub.f32 %v753, %v937
      %v1035 = vsub.f32 %v754, %v942
      %v1036 = vsub.f32 %v755, %v947
      %v1037 = vsub.f32 %v756, %v952
      %v1038 = vsub.f32 %v757, %v957
      %v1039 = vsub.f32 %v758, %v962
      %v1040 = vsub.f32 %v759, %v967
      %v1041 = vsub.f32 %v760, %v972
      %v1042 = vsub.f32 %v761, %v977
      %v1043 = vsub.f32 %v762, %v982
      %v1044 = vsub.f32 %v763, %v987
      %v1045 = vsub.f32 %v764, %v992
      %v1046 = vsub.f32 %v765, %v997
      %v1047 = vsub.f32 %v766, %v1002
      %v1048 = vsub.f32 %v767, %v1007
      %v1049 = vsub.f32 %v768, %v1012
      %v1050 = vsub.f32 %v769, %v1017
      %v1051 = vsub.f32 %v770, %v1022
      %v1052 = vsub.f32 %v771, %v1027
      %v1053 = vsub.f32 %v772, %v1032
      %v1054 = vmul.f32 %v1034, 1.442695
      %v1055 = vpow.pop %v1054
      %v1056 = vmul.f32 %v1035, 1.442695
      %v1057 = vpow.pop %v1056
      %v1058 = vmul.f32 %v1036, 1.442695
      %v1059 = vpow.pop %v1058
      %v1060 = vmul.f32 %v1037, 1.442695
      %v1061 = vpow.pop %v1060
      %v1062 = vmul.f32 %v1038, 1.442695
      %v1063 = vpow.pop %v1062
      %v1064 = vmul.f32 %v1039, 1.442695
      %v1065 = vpow.pop %v1064
      %v1066 = vmul.f32 %v1040, 1.442695
      %v1067 = vpow.pop %v1066
      %v1068 = vmul.f32 %v1041, 1.442695
      %v1069 = vpow.pop %v1068
      %v1070 = vmul.f32 %v1042, 1.442695
      %v1071 = vpow.pop %v1070
      %v1072 = vmul.f32 %v1043, 1.442695
      %v1073 = vpow.pop %v1072
      %v1074 = vmul.f32 %v1044, 1.442695
      %v1075 = vpow.pop %v1074
      %v1076 = vmul.f32 %v1045, 1.442695
      %v1077 = vpow.pop %v1076
      %v1078 = vmul.f32 %v1046, 1.442695
      %v1079 = vpow.pop %v1078
      %v1080 = vmul.f32 %v1047, 1.442695
      %v1081 = vpow.pop %v1080
      %v1082 = vmul.f32 %v1048, 1.442695
      %v1083 = vpow.pop %v1082
      %v1084 = vmul.f32 %v1049, 1.442695
      %v1085 = vpow.pop %v1084
      %v1086 = vmul.f32 %v1050, 1.442695
      %v1087 = vpow.pop %v1086
      %v1088 = vmul.f32 %v1051, 1.442695
      %v1089 = vpow.pop %v1088
      %v1090 = vmul.f32 %v1052, 1.442695
      %v1091 = vpow.pop %v1090
      %v1092 = vmul.f32 %v1053, 1.442695
      %v1093 = vpow.pop %v1092
      %v1094 = vld [vmem:[#allocation3] sm:$0xff]
      %v1095 = vld [vmem:[#allocation3 + $0x8] sm:$0xff]
      %v1096 = vld [vmem:[#allocation3 + $0x10] sm:$0xff]
      %v1097 = vld [vmem:[#allocation3 + $0x18] sm:$0xff]
      %v1098 = vld [vmem:[#allocation3 + $0x20] sm:$0xff]
      %v1099 = vld [vmem:[#allocation3 + $0x28] sm:$0xff]
      %v1100 = vld [vmem:[#allocation3 + $0x30] sm:$0xff]
      %v1101 = vld [vmem:[#allocation3 + $0x38] sm:$0xff]
      %v1102 = vld [vmem:[#allocation3 + $0x40] sm:$0xff]
      %v1103 = vld [vmem:[#allocation3 + $0x48] sm:$0xff]
      %v1104 = vld [vmem:[#allocation3 + $0x50] sm:$0xff]
      %v1105 = vld [vmem:[#allocation3 + $0x58] sm:$0xff]
      %v1106 = vld [vmem:[#allocation3 + $0x60] sm:$0xff]
      %v1107 = vld [vmem:[#allocation3 + $0x68] sm:$0xff]
      %v1108 = vld [vmem:[#allocation3 + $0x70] sm:$0xff]
      %v1109 = vld [vmem:[#allocation3 + $0x78] sm:$0xff]
      %v1110 = vld [vmem:[#allocation3 + $0x80] sm:$0xff]
      %v1111 = vld [vmem:[#allocation3 + $0x88] sm:$0xff]
      %v1112 = vld [vmem:[#allocation3 + $0x90] sm:$0xff]
      %v1113 = vld [vmem:[#allocation3 + $0x98] sm:$0xff]
      %v1114 = vmul.f32 %v895, %v1094
      %v1115 = vmul.f32 %v897, %v1095
      %v1116 = vmul.f32 %v899, %v1096
      %v1117 = vmul.f32 %v901, %v1097
      %v1118 = vmul.f32 %v903, %v1098
      %v1119 = vmul.f32 %v905, %v1099
      %v1120 = vmul.f32 %v907, %v1100
      %v1121 = vmul.f32 %v909, %v1101
      %v1122 = vmul.f32 %v911, %v1102
      %v1123 = vmul.f32 %v913, %v1103
      %v1124 = vmul.f32 %v915, %v1104
      %v1125 = vmul.f32 %v917, %v1105
      %v1126 = vmul.f32 %v919, %v1106
      %v1127 = vmul.f32 %v921, %v1107
      %v1128 = vmul.f32 %v923, %v1108
      %v1129 = vmul.f32 %v925, %v1109
      %v1130 = vmul.f32 %v927, %v1110
      %v1131 = vmul.f32 %v929, %v1111
      %v1132 = vmul.f32 %v931, %v1112
      %v1133 = vmul.f32 %v933, %v1113
      %v1134 = vsel %vm793, %v1055, 0.0
      %1135 = vadd.xlane.f32.xlu0 %v1134
      %v1136 = vpop.xlane.xlu0 %1135
      %v1137 = vsel %vm793, %v1057, 0.0
      %1138 = vadd.xlane.f32.xlu0 %v1137
      %v1139 = vpop.xlane.xlu0 %1138
      %v1140 = vsel %vm793, %v1059, 0.0
      %1141 = vadd.xlane.f32.xlu0 %v1140
      %v1142 = vpop.xlane.xlu0 %1141
      %v1143 = vsel %vm793, %v1061, 0.0
      %1144 = vadd.xlane.f32.xlu0 %v1143
      %v1145 = vpop.xlane.xlu0 %1144
      %v1146 = vsel %vm793, %v1063, 0.0
      %1147 = vadd.xlane.f32.xlu0 %v1146
      %v1148 = vpop.xlane.xlu0 %1147
      %v1149 = vsel %vm793, %v1065, 0.0
      %1150 = vadd.xlane.f32.xlu0 %v1149
      %v1151 = vpop.xlane.xlu0 %1150
      %v1152 = vsel %vm793, %v1067, 0.0
      %1153 = vadd.xlane.f32.xlu0 %v1152
      %v1154 = vpop.xlane.xlu0 %1153
      %v1155 = vsel %vm793, %v1069, 0.0
      %1156 = vadd.xlane.f32.xlu0 %v1155
      %v1157 = vpop.xlane.xlu0 %1156
      %v1158 = vsel %vm793, %v1071, 0.0
      %1159 = vadd.xlane.f32.xlu0 %v1158
      %v1160 = vpop.xlane.xlu0 %1159
      %v1161 = vsel %vm793, %v1073, 0.0
      %1162 = vadd.xlane.f32.xlu0 %v1161
      %v1163 = vpop.xlane.xlu0 %1162
      %v1164 = vsel %vm793, %v1075, 0.0
      %1165 = vadd.xlane.f32.xlu0 %v1164
      %v1166 = vpop.xlane.xlu0 %1165
      %v1167 = vsel %vm793, %v1077, 0.0
      %1168 = vadd.xlane.f32.xlu0 %v1167
      %v1169 = vpop.xlane.xlu0 %1168
      %v1170 = vsel %vm793, %v1079, 0.0
      %1171 = vadd.xlane.f32.xlu0 %v1170
      %v1172 = vpop.xlane.xlu0 %1171
      %v1173 = vsel %vm793, %v1081, 0.0
      %1174 = vadd.xlane.f32.xlu0 %v1173
      %v1175 = vpop.xlane.xlu0 %1174
      %v1176 = vsel %vm793, %v1083, 0.0
      %1177 = vadd.xlane.f32.xlu0 %v1176
      %v1178 = vpop.xlane.xlu0 %1177
      %v1179 = vsel %vm793, %v1085, 0.0
      %1180 = vadd.xlane.f32.xlu0 %v1179
      %v1181 = vpop.xlane.xlu0 %1180
      %v1182 = vsel %vm793, %v1087, 0.0
      %1183 = vadd.xlane.f32.xlu0 %v1182
      %v1184 = vpop.xlane.xlu0 %1183
      %v1185 = vsel %vm793, %v1089, 0.0
      %1186 = vadd.xlane.f32.xlu0 %v1185
      %v1187 = vpop.xlane.xlu0 %1186
      %v1188 = vsel %vm793, %v1091, 0.0
      %1189 = vadd.xlane.f32.xlu0 %v1188
      %v1190 = vpop.xlane.xlu0 %1189
      %v1191 = vsel %vm793, %v1093, 0.0
      %1192 = vadd.xlane.f32.xlu0 %v1191
      %v1193 = vpop.xlane.xlu0 %1192
      %v1194 = vadd.f32 %v1114, %v1136
      %v1195 = vadd.f32 %v1115, %v1139
      %v1196 = vadd.f32 %v1116, %v1142
      %v1197 = vadd.f32 %v1117, %v1145
      %v1198 = vadd.f32 %v1118, %v1148
      %v1199 = vadd.f32 %v1119, %v1151
      %v1200 = vadd.f32 %v1120, %v1154
      %v1201 = vadd.f32 %v1121, %v1157
      %v1202 = vadd.f32 %v1122, %v1160
      %v1203 = vadd.f32 %v1123, %v1163
      %v1204 = vadd.f32 %v1124, %v1166
      %v1205 = vadd.f32 %v1125, %v1169
      %v1206 = vadd.f32 %v1126, %v1172
      %v1207 = vadd.f32 %v1127, %v1175
      %v1208 = vadd.f32 %v1128, %v1178
      %v1209 = vadd.f32 %v1129, %v1181
      %v1210 = vadd.f32 %v1130, %v1184
      %v1211 = vadd.f32 %v1131, %v1187
      %v1212 = vadd.f32 %v1132, %v1190
      %v1213 = vadd.f32 %v1133, %v1193
      %vm1214 = vcmask 7168
      %1215 = vst.msk [vmem:[#allocation3] sm:$0xff] %vm1214, %v1194
      %1216 = vst.msk [vmem:[#allocation3 + $0x8] sm:$0xff] %vm1214, %v1195
      %1217 = vst.msk [vmem:[#allocation3 + $0x10] sm:$0xff] %vm1214, %v1196
      %1218 = vst.msk [vmem:[#allocation3 + $0x18] sm:$0xff] %vm1214, %v1197
      %1219 = vst.msk [vmem:[#allocation3 + $0x20] sm:$0xff] %vm1214, %v1198
      %1220 = vst.msk [vmem:[#allocation3 + $0x28] sm:$0xff] %vm1214, %v1199
      %1221 = vst.msk [vmem:[#allocation3 + $0x30] sm:$0xff] %vm1214, %v1200
      %1222 = vst.msk [vmem:[#allocation3 + $0x38] sm:$0xff] %vm1214, %v1201
      %1223 = vst.msk [vmem:[#allocation3 + $0x40] sm:$0xff] %vm1214, %v1202
      %1224 = vst.msk [vmem:[#allocation3 + $0x48] sm:$0xff] %vm1214, %v1203
      %1225 = vst.msk [vmem:[#allocation3 + $0x50] sm:$0xff] %vm1214, %v1204
      %1226 = vst.msk [vmem:[#allocation3 + $0x58] sm:$0xff] %vm1214, %v1205
      %1227 = vst.msk [vmem:[#allocation3 + $0x60] sm:$0xff] %vm1214, %v1206
      %1228 = vst.msk [vmem:[#allocation3 + $0x68] sm:$0xff] %vm1214, %v1207
      %1229 = vst.msk [vmem:[#allocation3 + $0x70] sm:$0xff] %vm1214, %v1208
      %1230 = vst.msk [vmem:[#allocation3 + $0x78] sm:$0xff] %vm1214, %v1209
      %1231 = vst.msk [vmem:[#allocation3 + $0x80] sm:$0xff] %vm1214, %v1210
      %1232 = vst.msk [vmem:[#allocation3 + $0x88] sm:$0xff] %vm1214, %v1211
      %1233 = vst.msk [vmem:[#allocation3 + $0x90] sm:$0xff] %vm1214, %v1212
      %1234 = vst.msk [vmem:[#allocation3 + $0x98] sm:$0xff] %vm1214, %v1213
      %v1235 = vpack.c.bf16 %v1055, %v1055
      %v1236 = vpack.c.bf16 %v1057, %v1057
      %v1237 = vpack.c.bf16 %v1059, %v1059
      %v1238 = vpack.c.bf16 %v1061, %v1061
      %v1239 = vpack.c.bf16 %v1063, %v1063
      %v1240 = vpack.c.bf16 %v1065, %v1065
      %v1241 = vpack.c.bf16 %v1067, %v1067
      %v1242 = vpack.c.bf16 %v1069, %v1069
      %v1243 = vpack.c.bf16 %v1071, %v1071
      %v1244 = vpack.c.bf16 %v1073, %v1073
      %v1245 = vpack.c.bf16 %v1075, %v1075
      %v1246 = vpack.c.bf16 %v1077, %v1077
      %v1247 = vpack.c.bf16 %v1079, %v1079
      %v1248 = vpack.c.bf16 %v1081, %v1081
      %v1249 = vpack.c.bf16 %v1083, %v1083
      %v1250 = vpack.c.bf16 %v1085, %v1085
      %v1251 = vpack.c.bf16 %v1087, %v1087
      %v1252 = vpack.c.bf16 %v1089, %v1089
      %v1253 = vpack.c.bf16 %v1091, %v1091
      %v1254 = vpack.c.bf16 %v1093, %v1093
      %v1260 = vunpack.c.l.b16 %v1235
      %v1261 = vunpack.c.l.b16 %v1236
      %v1262 = vunpack.c.l.b16 %v1237
      %v1263 = vunpack.c.l.b16 %v1238
      %v1264 = vunpack.c.l.b16 %v1239
      %v1265 = vpack.c.b16 %v1261, %v1260
      %v1266 = vpack.c.b16 %v1263, %v1262
      %v1267 = vpack.c.b16 %v1264, %v1264
      %v1273 = vunpack.c.l.b16 %v456
      %v1274 = vunpack.c.l.b16 %v457
      %v1275 = vunpack.c.l.b16 %v458
      %v1276 = vunpack.c.l.b16 %v459
      %v1277 = vunpack.c.l.b16 %v460
      %v1278 = vpack.c.b16 %v1274, %v1273
      %v1279 = vpack.c.b16 %v1276, %v1275
      %v1280 = vpack.c.b16 %v1277, %v1277
      %v1284 = vsel %vm793, %v1265, 0
      %v1287 = vsel %vm793, %v1266, 0
      %v1290 = vsel %vm793, %v1267, 0
      %vm1292 = vcmask 1043456
      %v1294 = vsel %vm1292, %v1280, 0
      %1296 = vmatpush.bf16.msra.mxu0 0
      %1297 = vmatpush.bf16.msra.mxu0 0
      %1298 = vmatpush.bf16.msra.mxu0 0
      %1299 = vmatpush.bf16.msra.mxu0 0
      %1300 = vmatpush.bf16.msra.mxu0 0
      %1301 = vmatpush.bf16.msra.mxu0 %v1294
      %1302 = vmatpush.bf16.msra.mxu0 %v1279
      %1303 = vmatpush.bf16.msra.mxu0 %v1278
      %1304 = vmatmul.bf16.gmra.mxu0 %v1284
      %v1305 = vpop.f32.mrf.mxu0
      %v1306 = vadd.f32 0.0, %v1305
      %v1307 = vpop.f32.mrf.mxu0
      %v1308 = vadd.f32 0.0, %v1307
      %1309 = vmatmul.bf16.gmra.mxu0 %v1287
      %v1310 = vpop.f32.mrf.mxu0
      %v1311 = vadd.f32 0.0, %v1310
      %v1312 = vpop.f32.mrf.mxu0
      %v1313 = vadd.f32 0.0, %v1312
      %1314 = vmatmul.bf16.gmra.mxu0 %v1290
      %v1315 = vpop.f32.mrf.mxu0
      %v1316 = vadd.f32 0.0, %v1315
      %v1317 = vpop.f32.mrf.mxu0
      %1318 = vdwg.mxu0
      %v1324 = vunpack.c.l.b16 %v1240
      %v1325 = vunpack.c.l.b16 %v1241
      %v1326 = vunpack.c.l.b16 %v1242
      %v1327 = vunpack.c.l.b16 %v1243
      %v1328 = vunpack.c.l.b16 %v1244
      %v1329 = vpack.c.b16 %v1325, %v1324
      %v1330 = vpack.c.b16 %v1327, %v1326
      %v1331 = vpack.c.b16 %v1328, %v1328
      %v1337 = vunpack.c.l.b16 %v461
      %v1338 = vunpack.c.l.b16 %v462
      %v1339 = vunpack.c.l.b16 %v463
      %v1340 = vunpack.c.l.b16 %v464
      %v1341 = vunpack.c.l.b16 %v465
      %v1342 = vpack.c.b16 %v1338, %v1337
      %v1343 = vpack.c.b16 %v1340, %v1339
      %v1344 = vpack.c.b16 %v1341, %v1341
      %v1348 = vsel %vm793, %v1329, 0
      %v1351 = vsel %vm793, %v1330, 0
      %v1354 = vsel %vm793, %v1331, 0
      %v1357 = vsel %vm1292, %v1344, 0
      %1359 = vmatpush.bf16.msra.mxu0 0
      %1360 = vmatpush.bf16.msra.mxu0 0
      %1361 = vmatpush.bf16.msra.mxu0 0
      %1362 = vmatpush.bf16.msra.mxu0 0
      %1363 = vmatpush.bf16.msra.mxu0 0
      %1364 = vmatpush.bf16.msra.mxu0 %v1357
      %1365 = vmatpush.bf16.msra.mxu0 %v1343
      %1366 = vmatpush.bf16.msra.mxu0 %v1342
      %1367 = vmatmul.bf16.gmra.mxu0 %v1348
      %v1368 = vpop.f32.mrf.mxu0
      %v1369 = vadd.f32 0.0, %v1368
      %v1370 = vpop.f32.mrf.mxu0
      %v1371 = vadd.f32 0.0, %v1370
      %1372 = vmatmul.bf16.gmra.mxu0 %v1351
      %v1373 = vpop.f32.mrf.mxu0
      %v1374 = vadd.f32 0.0, %v1373
      %v1375 = vpop.f32.mrf.mxu0
      %v1376 = vadd.f32 0.0, %v1375
      %1377 = vmatmul.bf16.gmra.mxu0 %v1354
      %v1378 = vpop.f32.mrf.mxu0
      %v1379 = vadd.f32 0.0, %v1378
      %v1380 = vpop.f32.mrf.mxu0
      %1381 = vdwg.mxu0
      %v1387 = vunpack.c.l.b16 %v1245
      %v1388 = vunpack.c.l.b16 %v1246
      %v1389 = vunpack.c.l.b16 %v1247
      %v1390 = vunpack.c.l.b16 %v1248
      %v1391 = vunpack.c.l.b16 %v1249
      %v1392 = vpack.c.b16 %v1388, %v1387
      %v1393 = vpack.c.b16 %v1390, %v1389
      %v1394 = vpack.c.b16 %v1391, %v1391
      %v1400 = vunpack.c.l.b16 %v466
      %v1401 = vunpack.c.l.b16 %v467
      %v1402 = vunpack.c.l.b16 %v468
      %v1403 = vunpack.c.l.b16 %v469
      %v1404 = vunpack.c.l.b16 %v470
      %v1405 = vpack.c.b16 %v1401, %v1400
      %v1406 = vpack.c.b16 %v1403, %v1402
      %v1407 = vpack.c.b16 %v1404, %v1404
      %v1411 = vsel %vm793, %v1392, 0
      %v1414 = vsel %vm793, %v1393, 0
      %v1417 = vsel %vm793, %v1394, 0
      %v1420 = vsel %vm1292, %v1407, 0
      %1422 = vmatpush.bf16.msra.mxu0 0
      %1423 = vmatpush.bf16.msra.mxu0 0
      %1424 = vmatpush.bf16.msra.mxu0 0
      %1425 = vmatpush.bf16.msra.mxu0 0
      %1426 = vmatpush.bf16.msra.mxu0 0
      %1427 = vmatpush.bf16.msra.mxu0 %v1420
      %1428 = vmatpush.bf16.msra.mxu0 %v1406
      %1429 = vmatpush.bf16.msra.mxu0 %v1405
      %1430 = vmatmul.bf16.gmra.mxu0 %v1411
      %v1431 = vpop.f32.mrf.mxu0
      %v1432 = vadd.f32 0.0, %v1431
      %v1433 = vpop.f32.mrf.mxu0
      %v1434 = vadd.f32 0.0, %v1433
      %1435 = vmatmul.bf16.gmra.mxu0 %v1414
      %v1436 = vpop.f32.mrf.mxu0
      %v1437 = vadd.f32 0.0, %v1436
      %v1438 = vpop.f32.mrf.mxu0
      %v1439 = vadd.f32 0.0, %v1438
      %1440 = vmatmul.bf16.gmra.mxu0 %v1417
      %v1441 = vpop.f32.mrf.mxu0
      %v1442 = vadd.f32 0.0, %v1441
      %v1443 = vpop.f32.mrf.mxu0
      %1444 = vdwg.mxu0
      %v1450 = vunpack.c.l.b16 %v1250
      %v1451 = vunpack.c.l.b16 %v1251
      %v1452 = vunpack.c.l.b16 %v1252
      %v1453 = vunpack.c.l.b16 %v1253
      %v1454 = vunpack.c.l.b16 %v1254
      %v1455 = vpack.c.b16 %v1451, %v1450
      %v1456 = vpack.c.b16 %v1453, %v1452
      %v1457 = vpack.c.b16 %v1454, %v1454
      %v1463 = vunpack.c.l.b16 %v471
      %v1464 = vunpack.c.l.b16 %v472
      %v1465 = vunpack.c.l.b16 %v473
      %v1466 = vunpack.c.l.b16 %v474
      %v1467 = vunpack.c.l.b16 %v475
      %v1468 = vpack.c.b16 %v1464, %v1463
      %v1469 = vpack.c.b16 %v1466, %v1465
      %v1470 = vpack.c.b16 %v1467, %v1467
      %v1474 = vsel %vm793, %v1455, 0
      %v1477 = vsel %vm793, %v1456, 0
      %v1480 = vsel %vm793, %v1457, 0
      %v1483 = vsel %vm1292, %v1470, 0
      %1485 = vmatpush.bf16.msra.mxu0 0
      %1486 = vmatpush.bf16.msra.mxu0 0
      %1487 = vmatpush.bf16.msra.mxu0 0
      %1488 = vmatpush.bf16.msra.mxu0 0
      %1489 = vmatpush.bf16.msra.mxu0 0
      %1490 = vmatpush.bf16.msra.mxu0 %v1483
      %1491 = vmatpush.bf16.msra.mxu0 %v1469
      %1492 = vmatpush.bf16.msra.mxu0 %v1468
      %1493 = vmatmul.bf16.gmra.mxu0 %v1474
      %v1494 = vpop.f32.mrf.mxu0
      %v1495 = vadd.f32 0.0, %v1494
      %v1496 = vpop.f32.mrf.mxu0
      %v1497 = vadd.f32 0.0, %v1496
      %1498 = vmatmul.bf16.gmra.mxu0 %v1477
      %v1499 = vpop.f32.mrf.mxu0
      %v1500 = vadd.f32 0.0, %v1499
      %v1501 = vpop.f32.mrf.mxu0
      %v1502 = vadd.f32 0.0, %v1501
      %1503 = vmatmul.bf16.gmra.mxu0 %v1480
      %v1504 = vpop.f32.mrf.mxu0
      %v1505 = vadd.f32 0.0, %v1504
      %v1506 = vpop.f32.mrf.mxu0
      %1507 = vdwg.mxu0
      %v1508 = vld [vmem:[#allocation4] sm:$0xff]
      %v1509 = vld [vmem:[#allocation4 + $0x8] sm:$0xff]
      %v1510 = vld [vmem:[#allocation4 + $0x10] sm:$0xff]
      %v1511 = vld [vmem:[#allocation4 + $0x18] sm:$0xff]
      %v1512 = vld [vmem:[#allocation4 + $0x20] sm:$0xff]
      %v1513 = vld [vmem:[#allocation4 + $0x28] sm:$0xff]
      %v1514 = vld [vmem:[#allocation4 + $0x30] sm:$0xff]
      %v1515 = vld [vmem:[#allocation4 + $0x38] sm:$0xff]
      %v1516 = vld [vmem:[#allocation4 + $0x40] sm:$0xff]
      %v1517 = vld [vmem:[#allocation4 + $0x48] sm:$0xff]
      %v1518 = vld [vmem:[#allocation4 + $0x50] sm:$0xff]
      %v1519 = vld [vmem:[#allocation4 + $0x58] sm:$0xff]
      %v1520 = vld [vmem:[#allocation4 + $0x60] sm:$0xff]
      %v1521 = vld [vmem:[#allocation4 + $0x68] sm:$0xff]
      %v1522 = vld [vmem:[#allocation4 + $0x70] sm:$0xff]
      %v1523 = vld [vmem:[#allocation4 + $0x78] sm:$0xff]
      %v1524 = vld [vmem:[#allocation4 + $0x80] sm:$0xff]
      %v1525 = vld [vmem:[#allocation4 + $0x88] sm:$0xff]
      %v1526 = vld [vmem:[#allocation4 + $0x90] sm:$0xff]
      %v1527 = vld [vmem:[#allocation4 + $0x98] sm:$0xff]
      %1529 = vset.pattern.permute.xlu0 0
      %1530 = vperm.xlu0 %1529, %v895
      %v1531 = vpop.permute.xlu0 %1530
      %1534 = vset.pattern.permute.xlu0 0
      %1535 = vperm.xlu0 %1534, %v897
      %v1536 = vpop.permute.xlu0 %1535
      %1539 = vset.pattern.permute.xlu0 0
      %1540 = vperm.xlu0 %1539, %v899
      %v1541 = vpop.permute.xlu0 %1540
      %1544 = vset.pattern.permute.xlu0 0
      %1545 = vperm.xlu0 %1544, %v901
      %v1546 = vpop.permute.xlu0 %1545
      %1549 = vset.pattern.permute.xlu0 0
      %1550 = vperm.xlu0 %1549, %v903
      %v1551 = vpop.permute.xlu0 %1550
      %1554 = vset.pattern.permute.xlu0 0
      %1555 = vperm.xlu0 %1554, %v905
      %v1556 = vpop.permute.xlu0 %1555
      %1559 = vset.pattern.permute.xlu0 0
      %1560 = vperm.xlu0 %1559, %v907
      %v1561 = vpop.permute.xlu0 %1560
      %1564 = vset.pattern.permute.xlu0 0
      %1565 = vperm.xlu0 %1564, %v909
      %v1566 = vpop.permute.xlu0 %1565
      %1569 = vset.pattern.permute.xlu0 0
      %1570 = vperm.xlu0 %1569, %v911
      %v1571 = vpop.permute.xlu0 %1570
      %1574 = vset.pattern.permute.xlu0 0
      %1575 = vperm.xlu0 %1574, %v913
      %v1576 = vpop.permute.xlu0 %1575
      %1579 = vset.pattern.permute.xlu0 0
      %1580 = vperm.xlu0 %1579, %v915
      %v1581 = vpop.permute.xlu0 %1580
      %1584 = vset.pattern.permute.xlu0 0
      %1585 = vperm.xlu0 %1584, %v917
      %v1586 = vpop.permute.xlu0 %1585
      %1589 = vset.pattern.permute.xlu0 0
      %1590 = vperm.xlu0 %1589, %v919
      %v1591 = vpop.permute.xlu0 %1590
      %1594 = vset.pattern.permute.xlu0 0
      %1595 = vperm.xlu0 %1594, %v921
      %v1596 = vpop.permute.xlu0 %1595
      %1599 = vset.pattern.permute.xlu0 0
      %1600 = vperm.xlu0 %1599, %v923
      %v1601 = vpop.permute.xlu0 %1600
      %1604 = vset.pattern.permute.xlu0 0
      %1605 = vperm.xlu0 %1604, %v925
      %v1606 = vpop.permute.xlu0 %1605
      %1609 = vset.pattern.permute.xlu0 0
      %1610 = vperm.xlu0 %1609, %v927
      %v1611 = vpop.permute.xlu0 %1610
      %1614 = vset.pattern.permute.xlu0 0
      %1615 = vperm.xlu0 %1614, %v929
      %v1616 = vpop.permute.xlu0 %1615
      %1619 = vset.pattern.permute.xlu0 0
      %1620 = vperm.xlu0 %1619, %v931
      %v1621 = vpop.permute.xlu0 %1620
      %1624 = vset.pattern.permute.xlu0 0
      %1625 = vperm.xlu0 %1624, %v933
      %v1626 = vpop.permute.xlu0 %1625
      %v1628 = vmul.f32 %v1531, %v1508
      %v1629 = vmul.f32 %v1536, %v1509
      %v1630 = vmul.f32 %v1541, %v1510
      %v1631 = vmul.f32 %v1546, %v1511
      %v1632 = vmul.f32 %v1551, %v1512
      %v1633 = vmul.f32 %v1556, %v1513
      %v1634 = vmul.f32 %v1561, %v1514
      %v1635 = vmul.f32 %v1566, %v1515
      %v1636 = vmul.f32 %v1571, %v1516
      %v1637 = vmul.f32 %v1576, %v1517
      %v1638 = vmul.f32 %v1581, %v1518
      %v1639 = vmul.f32 %v1586, %v1519
      %v1640 = vmul.f32 %v1591, %v1520
      %v1641 = vmul.f32 %v1596, %v1521
      %v1642 = vmul.f32 %v1601, %v1522
      %v1643 = vmul.f32 %v1606, %v1523
      %v1644 = vmul.f32 %v1611, %v1524
      %v1645 = vmul.f32 %v1616, %v1525
      %v1646 = vmul.f32 %v1621, %v1526
      %v1647 = vmul.f32 %v1626, %v1527
      %v1648 = vadd.f32 %v1628, %v1306
      %v1649 = vadd.f32 %v1629, %v1308
      %v1650 = vadd.f32 %v1630, %v1311
      %v1651 = vadd.f32 %v1631, %v1313
      %v1652 = vadd.f32 %v1632, %v1316
      %v1653 = vadd.f32 %v1633, %v1369
      %v1654 = vadd.f32 %v1634, %v1371
      %v1655 = vadd.f32 %v1635, %v1374
      %v1656 = vadd.f32 %v1636, %v1376
      %v1657 = vadd.f32 %v1637, %v1379
      %v1658 = vadd.f32 %v1638, %v1432
      %v1659 = vadd.f32 %v1639, %v1434
      %v1660 = vadd.f32 %v1640, %v1437
      %v1661 = vadd.f32 %v1641, %v1439
      %v1662 = vadd.f32 %v1642, %v1442
      %v1663 = vadd.f32 %v1643, %v1495
      %v1664 = vadd.f32 %v1644, %v1497
      %v1665 = vadd.f32 %v1645, %v1500
      %v1666 = vadd.f32 %v1646, %v1502
      %v1667 = vadd.f32 %v1647, %v1505
      %1668 = vst.msk [vmem:[#allocation4] sm:$0xff] %vm502, %v1648
      %1669 = vst.msk [vmem:[#allocation4 + $0x8] sm:$0xff] %vm502, %v1649
      %1670 = vst.msk [vmem:[#allocation4 + $0x10] sm:$0xff] %vm502, %v1650
      %1671 = vst.msk [vmem:[#allocation4 + $0x18] sm:$0xff] %vm502, %v1651
      %1672 = vst.msk [vmem:[#allocation4 + $0x20] sm:$0xff] %vm502, %v1652
      %1673 = vst.msk [vmem:[#allocation4 + $0x28] sm:$0xff] %vm502, %v1653
      %1674 = vst.msk [vmem:[#allocation4 + $0x30] sm:$0xff] %vm502, %v1654
      %1675 = vst.msk [vmem:[#allocation4 + $0x38] sm:$0xff] %vm502, %v1655
      %1676 = vst.msk [vmem:[#allocation4 + $0x40] sm:$0xff] %vm502, %v1656
      %1677 = vst.msk [vmem:[#allocation4 + $0x48] sm:$0xff] %vm502, %v1657
      %1678 = vst.msk [vmem:[#allocation4 + $0x50] sm:$0xff] %vm502, %v1658
      %1679 = vst.msk [vmem:[#allocation4 + $0x58] sm:$0xff] %vm502, %v1659
      %1680 = vst.msk [vmem:[#allocation4 + $0x60] sm:$0xff] %vm502, %v1660
      %1681 = vst.msk [vmem:[#allocation4 + $0x68] sm:$0xff] %vm502, %v1661
      %1682 = vst.msk [vmem:[#allocation4 + $0x70] sm:$0xff] %vm502, %v1662
      %1683 = vst.msk [vmem:[#allocation4 + $0x78] sm:$0xff] %vm502, %v1663
      %1684 = vst.msk [vmem:[#allocation4 + $0x80] sm:$0xff] %vm502, %v1664
      %1685 = vst.msk [vmem:[#allocation4 + $0x88] sm:$0xff] %vm502, %v1665
      %1686 = vst.msk [vmem:[#allocation4 + $0x90] sm:$0xff] %vm502, %v1666
      %1687 = vst.msk [vmem:[#allocation4 + $0x98] sm:$0xff] %vm502, %v1667
      %1688 = vst.msk [vmem:[#allocation2] sm:$0xff] %vm1214, %v854
      %1689 = vst.msk [vmem:[#allocation2 + $0x8] sm:$0xff] %vm1214, %v855
      %1690 = vst.msk [vmem:[#allocation2 + $0x10] sm:$0xff] %vm1214, %v856
      %1691 = vst.msk [vmem:[#allocation2 + $0x18] sm:$0xff] %vm1214, %v857
      %1692 = vst.msk [vmem:[#allocation2 + $0x20] sm:$0xff] %vm1214, %v858
      %1693 = vst.msk [vmem:[#allocation2 + $0x28] sm:$0xff] %vm1214, %v859
      %1694 = vst.msk [vmem:[#allocation2 + $0x30] sm:$0xff] %vm1214, %v860
      %1695 = vst.msk [vmem:[#allocation2 + $0x38] sm:$0xff] %vm1214, %v861
      %1696 = vst.msk [vmem:[#allocation2 + $0x40] sm:$0xff] %vm1214, %v862
      %1697 = vst.msk [vmem:[#allocation2 + $0x48] sm:$0xff] %vm1214, %v863
      %1698 = vst.msk [vmem:[#allocation2 + $0x50] sm:$0xff] %vm1214, %v864
      %1699 = vst.msk [vmem:[#allocation2 + $0x58] sm:$0xff] %vm1214, %v865
      %1700 = vst.msk [vmem:[#allocation2 + $0x60] sm:$0xff] %vm1214, %v866
      %1701 = vst.msk [vmem:[#allocation2 + $0x68] sm:$0xff] %vm1214, %v867
      %1702 = vst.msk [vmem:[#allocation2 + $0x70] sm:$0xff] %vm1214, %v868
      %1703 = vst.msk [vmem:[#allocation2 + $0x78] sm:$0xff] %vm1214, %v869
      %1704 = vst.msk [vmem:[#allocation2 + $0x80] sm:$0xff] %vm1214, %v870
      %1705 = vst.msk [vmem:[#allocation2 + $0x88] sm:$0xff] %vm1214, %v871
      %1706 = vst.msk [vmem:[#allocation2 + $0x90] sm:$0xff] %vm1214, %v872
      %1707 = vst.msk [vmem:[#allocation2 + $0x98] sm:$0xff] %vm1214, %v873
      // Predicated region
      $region37: #{vivit_forward.15} parent=31 // pred_check
        %p1708 = pneg %p290
      $region38: #{vivit_forward.15} parent=31 // pred_check_branch
        %1710 = sbr.rel (%p1708) target = $region40
      $region39: #{vivit_forward.15} parent=31 // pred_region
        %v1711 = vld [vmem:[#allocation3] sm:$0xff]
        %v1712 = vld [vmem:[#allocation3 + $0x8] sm:$0xff]
        %v1713 = vld [vmem:[#allocation3 + $0x10] sm:$0xff]
        %v1714 = vld [vmem:[#allocation3 + $0x18] sm:$0xff]
        %v1715 = vld [vmem:[#allocation3 + $0x20] sm:$0xff]
        %v1716 = vld [vmem:[#allocation3 + $0x28] sm:$0xff]
        %v1717 = vld [vmem:[#allocation3 + $0x30] sm:$0xff]
        %v1718 = vld [vmem:[#allocation3 + $0x38] sm:$0xff]
        %v1719 = vld [vmem:[#allocation3 + $0x40] sm:$0xff]
        %v1720 = vld [vmem:[#allocation3 + $0x48] sm:$0xff]
        %v1721 = vld [vmem:[#allocation3 + $0x50] sm:$0xff]
        %v1722 = vld [vmem:[#allocation3 + $0x58] sm:$0xff]
        %v1723 = vld [vmem:[#allocation3 + $0x60] sm:$0xff]
        %v1724 = vld [vmem:[#allocation3 + $0x68] sm:$0xff]
        %v1725 = vld [vmem:[#allocation3 + $0x70] sm:$0xff]
        %v1726 = vld [vmem:[#allocation3 + $0x78] sm:$0xff]
        %v1727 = vld [vmem:[#allocation3 + $0x80] sm:$0xff]
        %v1728 = vld [vmem:[#allocation3 + $0x88] sm:$0xff]
        %v1729 = vld [vmem:[#allocation3 + $0x90] sm:$0xff]
        %v1730 = vld [vmem:[#allocation3 + $0x98] sm:$0xff]
        %v1731 = vrcp.pop %v1711
        %v1732 = vmul.f32 %v1711, %v1731
        %v1733 = vsub.f32 1.0, %v1732
        %v1734 = vmul.f32 %v1731, %v1733
        %v1735 = vadd.f32 %v1731, %v1734
        %vm1736 = vweird.f32 %v1711
        %vm1737 = vweird.f32 %v1731
        %vm1738 = vmor %vm1736, %vm1737
        %v1739 = vsel %vm1738, %v1731, %v1735
        %v1740 = vand.u32 2147483647, %v1711
        %vm1741 = vcmp.eq.f32.partialorder %v1740, 8.507059e+37
        %v1742 = vand.u32 %v1711, 2147483648
        %v1743 = vor.u32 1.1754944e-38, %v1742
        %v1744 = vsel %vm1741, %v1743, %v1739
        %v1745 = vrcp.pop %v1712
        %v1746 = vmul.f32 %v1712, %v1745
        %v1747 = vsub.f32 1.0, %v1746
        %v1748 = vmul.f32 %v1745, %v1747
        %v1749 = vadd.f32 %v1745, %v1748
        %vm1750 = vweird.f32 %v1712
        %vm1751 = vweird.f32 %v1745
        %vm1752 = vmor %vm1750, %vm1751
        %v1753 = vsel %vm1752, %v1745, %v1749
        %v1754 = vand.u32 2147483647, %v1712
        %vm1755 = vcmp.eq.f32.partialorder %v1754, 8.507059e+37
        %v1756 = vand.u32 %v1712, 2147483648
        %v1757 = vor.u32 1.1754944e-38, %v1756
        %v1758 = vsel %vm1755, %v1757, %v1753
        %v1759 = vrcp.pop %v1713
        %v1760 = vmul.f32 %v1713, %v1759
        %v1761 = vsub.f32 1.0, %v1760
        %v1762 = vmul.f32 %v1759, %v1761
        %v1763 = vadd.f32 %v1759, %v1762
        %vm1764 = vweird.f32 %v1713
        %vm1765 = vweird.f32 %v1759
        %vm1766 = vmor %vm1764, %vm1765
        %v1767 = vsel %vm1766, %v1759, %v1763
        %v1768 = vand.u32 2147483647, %v1713
        %vm1769 = vcmp.eq.f32.partialorder %v1768, 8.507059e+37
        %v1770 = vand.u32 %v1713, 2147483648
        %v1771 = vor.u32 1.1754944e-38, %v1770
        %v1772 = vsel %vm1769, %v1771, %v1767
        %v1773 = vrcp.pop %v1714
        %v1774 = vmul.f32 %v1714, %v1773
        %v1775 = vsub.f32 1.0, %v1774
        %v1776 = vmul.f32 %v1773, %v1775
        %v1777 = vadd.f32 %v1773, %v1776
        %vm1778 = vweird.f32 %v1714
        %vm1779 = vweird.f32 %v1773
        %vm1780 = vmor %vm1778, %vm1779
        %v1781 = vsel %vm1780, %v1773, %v1777
        %v1782 = vand.u32 2147483647, %v1714
        %vm1783 = vcmp.eq.f32.partialorder %v1782, 8.507059e+37
        %v1784 = vand.u32 %v1714, 2147483648
        %v1785 = vor.u32 1.1754944e-38, %v1784
        %v1786 = vsel %vm1783, %v1785, %v1781
        %v1787 = vrcp.pop %v1715
        %v1788 = vmul.f32 %v1715, %v1787
        %v1789 = vsub.f32 1.0, %v1788
        %v1790 = vmul.f32 %v1787, %v1789
        %v1791 = vadd.f32 %v1787, %v1790
        %vm1792 = vweird.f32 %v1715
        %vm1793 = vweird.f32 %v1787
        %vm1794 = vmor %vm1792, %vm1793
        %v1795 = vsel %vm1794, %v1787, %v1791
        %v1796 = vand.u32 2147483647, %v1715
        %vm1797 = vcmp.eq.f32.partialorder %v1796, 8.507059e+37
        %v1798 = vand.u32 %v1715, 2147483648
        %v1799 = vor.u32 1.1754944e-38, %v1798
        %v1800 = vsel %vm1797, %v1799, %v1795
        %v1801 = vrcp.pop %v1716
        %v1802 = vmul.f32 %v1716, %v1801
        %v1803 = vsub.f32 1.0, %v1802
        %v1804 = vmul.f32 %v1801, %v1803
        %v1805 = vadd.f32 %v1801, %v1804
        %vm1806 = vweird.f32 %v1716
        %vm1807 = vweird.f32 %v1801
        %vm1808 = vmor %vm1806, %vm1807
        %v1809 = vsel %vm1808, %v1801, %v1805
        %v1810 = vand.u32 2147483647, %v1716
        %vm1811 = vcmp.eq.f32.partialorder %v1810, 8.507059e+37
        %v1812 = vand.u32 %v1716, 2147483648
        %v1813 = vor.u32 1.1754944e-38, %v1812
        %v1814 = vsel %vm1811, %v1813, %v1809
        %v1815 = vrcp.pop %v1717
        %v1816 = vmul.f32 %v1717, %v1815
        %v1817 = vsub.f32 1.0, %v1816
        %v1818 = vmul.f32 %v1815, %v1817
        %v1819 = vadd.f32 %v1815, %v1818
        %vm1820 = vweird.f32 %v1717
        %vm1821 = vweird.f32 %v1815
        %vm1822 = vmor %vm1820, %vm1821
        %v1823 = vsel %vm1822, %v1815, %v1819
        %v1824 = vand.u32 2147483647, %v1717
        %vm1825 = vcmp.eq.f32.partialorder %v1824, 8.507059e+37
        %v1826 = vand.u32 %v1717, 2147483648
        %v1827 = vor.u32 1.1754944e-38, %v1826
        %v1828 = vsel %vm1825, %v1827, %v1823
        %v1829 = vrcp.pop %v1718
        %v1830 = vmul.f32 %v1718, %v1829
        %v1831 = vsub.f32 1.0, %v1830
        %v1832 = vmul.f32 %v1829, %v1831
        %v1833 = vadd.f32 %v1829, %v1832
        %vm1834 = vweird.f32 %v1718
        %vm1835 = vweird.f32 %v1829
        %vm1836 = vmor %vm1834, %vm1835
        %v1837 = vsel %vm1836, %v1829, %v1833
        %v1838 = vand.u32 2147483647, %v1718
        %vm1839 = vcmp.eq.f32.partialorder %v1838, 8.507059e+37
        %v1840 = vand.u32 %v1718, 2147483648
        %v1841 = vor.u32 1.1754944e-38, %v1840
        %v1842 = vsel %vm1839, %v1841, %v1837
        %v1843 = vrcp.pop %v1719
        %v1844 = vmul.f32 %v1719, %v1843
        %v1845 = vsub.f32 1.0, %v1844
        %v1846 = vmul.f32 %v1843, %v1845
        %v1847 = vadd.f32 %v1843, %v1846
        %vm1848 = vweird.f32 %v1719
        %vm1849 = vweird.f32 %v1843
        %vm1850 = vmor %vm1848, %vm1849
        %v1851 = vsel %vm1850, %v1843, %v1847
        %v1852 = vand.u32 2147483647, %v1719
        %vm1853 = vcmp.eq.f32.partialorder %v1852, 8.507059e+37
        %v1854 = vand.u32 %v1719, 2147483648
        %v1855 = vor.u32 1.1754944e-38, %v1854
        %v1856 = vsel %vm1853, %v1855, %v1851
        %v1857 = vrcp.pop %v1720
        %v1858 = vmul.f32 %v1720, %v1857
        %v1859 = vsub.f32 1.0, %v1858
        %v1860 = vmul.f32 %v1857, %v1859
        %v1861 = vadd.f32 %v1857, %v1860
        %vm1862 = vweird.f32 %v1720
        %vm1863 = vweird.f32 %v1857
        %vm1864 = vmor %vm1862, %vm1863
        %v1865 = vsel %vm1864, %v1857, %v1861
        %v1866 = vand.u32 2147483647, %v1720
        %vm1867 = vcmp.eq.f32.partialorder %v1866, 8.507059e+37
        %v1868 = vand.u32 %v1720, 2147483648
        %v1869 = vor.u32 1.1754944e-38, %v1868
        %v1870 = vsel %vm1867, %v1869, %v1865
        %v1871 = vrcp.pop %v1721
        %v1872 = vmul.f32 %v1721, %v1871
        %v1873 = vsub.f32 1.0, %v1872
        %v1874 = vmul.f32 %v1871, %v1873
        %v1875 = vadd.f32 %v1871, %v1874
        %vm1876 = vweird.f32 %v1721
        %vm1877 = vweird.f32 %v1871
        %vm1878 = vmor %vm1876, %vm1877
        %v1879 = vsel %vm1878, %v1871, %v1875
        %v1880 = vand.u32 2147483647, %v1721
        %vm1881 = vcmp.eq.f32.partialorder %v1880, 8.507059e+37
        %v1882 = vand.u32 %v1721, 2147483648
        %v1883 = vor.u32 1.1754944e-38, %v1882
        %v1884 = vsel %vm1881, %v1883, %v1879
        %v1885 = vrcp.pop %v1722
        %v1886 = vmul.f32 %v1722, %v1885
        %v1887 = vsub.f32 1.0, %v1886
        %v1888 = vmul.f32 %v1885, %v1887
        %v1889 = vadd.f32 %v1885, %v1888
        %vm1890 = vweird.f32 %v1722
        %vm1891 = vweird.f32 %v1885
        %vm1892 = vmor %vm1890, %vm1891
        %v1893 = vsel %vm1892, %v1885, %v1889
        %v1894 = vand.u32 2147483647, %v1722
        %vm1895 = vcmp.eq.f32.partialorder %v1894, 8.507059e+37
        %v1896 = vand.u32 %v1722, 2147483648
        %v1897 = vor.u32 1.1754944e-38, %v1896
        %v1898 = vsel %vm1895, %v1897, %v1893
        %v1899 = vrcp.pop %v1723
        %v1900 = vmul.f32 %v1723, %v1899
        %v1901 = vsub.f32 1.0, %v1900
        %v1902 = vmul.f32 %v1899, %v1901
        %v1903 = vadd.f32 %v1899, %v1902
        %vm1904 = vweird.f32 %v1723
        %vm1905 = vweird.f32 %v1899
        %vm1906 = vmor %vm1904, %vm1905
        %v1907 = vsel %vm1906, %v1899, %v1903
        %v1908 = vand.u32 2147483647, %v1723
        %vm1909 = vcmp.eq.f32.partialorder %v1908, 8.507059e+37
        %v1910 = vand.u32 %v1723, 2147483648
        %v1911 = vor.u32 1.1754944e-38, %v1910
        %v1912 = vsel %vm1909, %v1911, %v1907
        %v1913 = vrcp.pop %v1724
        %v1914 = vmul.f32 %v1724, %v1913
        %v1915 = vsub.f32 1.0, %v1914
        %v1916 = vmul.f32 %v1913, %v1915
        %v1917 = vadd.f32 %v1913, %v1916
        %vm1918 = vweird.f32 %v1724
        %vm1919 = vweird.f32 %v1913
        %vm1920 = vmor %vm1918, %vm1919
        %v1921 = vsel %vm1920, %v1913, %v1917
        %v1922 = vand.u32 2147483647, %v1724
        %vm1923 = vcmp.eq.f32.partialorder %v1922, 8.507059e+37
        %v1924 = vand.u32 %v1724, 2147483648
        %v1925 = vor.u32 1.1754944e-38, %v1924
        %v1926 = vsel %vm1923, %v1925, %v1921
        %v1927 = vrcp.pop %v1725
        %v1928 = vmul.f32 %v1725, %v1927
        %v1929 = vsub.f32 1.0, %v1928
        %v1930 = vmul.f32 %v1927, %v1929
        %v1931 = vadd.f32 %v1927, %v1930
        %vm1932 = vweird.f32 %v1725
        %vm1933 = vweird.f32 %v1927
        %vm1934 = vmor %vm1932, %vm1933
        %v1935 = vsel %vm1934, %v1927, %v1931
        %v1936 = vand.u32 2147483647, %v1725
        %vm1937 = vcmp.eq.f32.partialorder %v1936, 8.507059e+37
        %v1938 = vand.u32 %v1725, 2147483648
        %v1939 = vor.u32 1.1754944e-38, %v1938
        %v1940 = vsel %vm1937, %v1939, %v1935
        %v1941 = vrcp.pop %v1726
        %v1942 = vmul.f32 %v1726, %v1941
        %v1943 = vsub.f32 1.0, %v1942
        %v1944 = vmul.f32 %v1941, %v1943
        %v1945 = vadd.f32 %v1941, %v1944
        %vm1946 = vweird.f32 %v1726
        %vm1947 = vweird.f32 %v1941
        %vm1948 = vmor %vm1946, %vm1947
        %v1949 = vsel %vm1948, %v1941, %v1945
        %v1950 = vand.u32 2147483647, %v1726
        %vm1951 = vcmp.eq.f32.partialorder %v1950, 8.507059e+37
        %v1952 = vand.u32 %v1726, 2147483648
        %v1953 = vor.u32 1.1754944e-38, %v1952
        %v1954 = vsel %vm1951, %v1953, %v1949
        %v1955 = vrcp.pop %v1727
        %v1956 = vmul.f32 %v1727, %v1955
        %v1957 = vsub.f32 1.0, %v1956
        %v1958 = vmul.f32 %v1955, %v1957
        %v1959 = vadd.f32 %v1955, %v1958
        %vm1960 = vweird.f32 %v1727
        %vm1961 = vweird.f32 %v1955
        %vm1962 = vmor %vm1960, %vm1961
        %v1963 = vsel %vm1962, %v1955, %v1959
        %v1964 = vand.u32 2147483647, %v1727
        %vm1965 = vcmp.eq.f32.partialorder %v1964, 8.507059e+37
        %v1966 = vand.u32 %v1727, 2147483648
        %v1967 = vor.u32 1.1754944e-38, %v1966
        %v1968 = vsel %vm1965, %v1967, %v1963
        %v1969 = vrcp.pop %v1728
        %v1970 = vmul.f32 %v1728, %v1969
        %v1971 = vsub.f32 1.0, %v1970
        %v1972 = vmul.f32 %v1969, %v1971
        %v1973 = vadd.f32 %v1969, %v1972
        %vm1974 = vweird.f32 %v1728
        %vm1975 = vweird.f32 %v1969
        %vm1976 = vmor %vm1974, %vm1975
        %v1977 = vsel %vm1976, %v1969, %v1973
        %v1978 = vand.u32 2147483647, %v1728
        %vm1979 = vcmp.eq.f32.partialorder %v1978, 8.507059e+37
        %v1980 = vand.u32 %v1728, 2147483648
        %v1981 = vor.u32 1.1754944e-38, %v1980
        %v1982 = vsel %vm1979, %v1981, %v1977
        %v1983 = vrcp.pop %v1729
        %v1984 = vmul.f32 %v1729, %v1983
        %v1985 = vsub.f32 1.0, %v1984
        %v1986 = vmul.f32 %v1983, %v1985
        %v1987 = vadd.f32 %v1983, %v1986
        %vm1988 = vweird.f32 %v1729
        %vm1989 = vweird.f32 %v1983
        %vm1990 = vmor %vm1988, %vm1989
        %v1991 = vsel %vm1990, %v1983, %v1987
        %v1992 = vand.u32 2147483647, %v1729
        %vm1993 = vcmp.eq.f32.partialorder %v1992, 8.507059e+37
        %v1994 = vand.u32 %v1729, 2147483648
        %v1995 = vor.u32 1.1754944e-38, %v1994
        %v1996 = vsel %vm1993, %v1995, %v1991
        %v1997 = vrcp.pop %v1730
        %v1998 = vmul.f32 %v1730, %v1997
        %v1999 = vsub.f32 1.0, %v1998
        %v2000 = vmul.f32 %v1997, %v1999
        %v2001 = vadd.f32 %v1997, %v2000
        %vm2002 = vweird.f32 %v1730
        %vm2003 = vweird.f32 %v1997
        %vm2004 = vmor %vm2002, %vm2003
        %v2005 = vsel %vm2004, %v1997, %v2001
        %v2006 = vand.u32 2147483647, %v1730
        %vm2007 = vcmp.eq.f32.partialorder %v2006, 8.507059e+37
        %v2008 = vand.u32 %v1730, 2147483648
        %v2009 = vor.u32 1.1754944e-38, %v2008
        %v2010 = vsel %vm2007, %v2009, %v2005
        %v2011 = vld [vmem:[#allocation4] sm:$0xff]
        %v2012 = vld [vmem:[#allocation4 + $0x8] sm:$0xff]
        %v2013 = vld [vmem:[#allocation4 + $0x10] sm:$0xff]
        %v2014 = vld [vmem:[#allocation4 + $0x18] sm:$0xff]
        %v2015 = vld [vmem:[#allocation4 + $0x20] sm:$0xff]
        %v2016 = vld [vmem:[#allocation4 + $0x28] sm:$0xff]
        %v2017 = vld [vmem:[#allocation4 + $0x30] sm:$0xff]
        %v2018 = vld [vmem:[#allocation4 + $0x38] sm:$0xff]
        %v2019 = vld [vmem:[#allocation4 + $0x40] sm:$0xff]
        %v2020 = vld [vmem:[#allocation4 + $0x48] sm:$0xff]
        %v2021 = vld [vmem:[#allocation4 + $0x50] sm:$0xff]
        %v2022 = vld [vmem:[#allocation4 + $0x58] sm:$0xff]
        %v2023 = vld [vmem:[#allocation4 + $0x60] sm:$0xff]
        %v2024 = vld [vmem:[#allocation4 + $0x68] sm:$0xff]
        %v2025 = vld [vmem:[#allocation4 + $0x70] sm:$0xff]
        %v2026 = vld [vmem:[#allocation4 + $0x78] sm:$0xff]
        %v2027 = vld [vmem:[#allocation4 + $0x80] sm:$0xff]
        %v2028 = vld [vmem:[#allocation4 + $0x88] sm:$0xff]
        %v2029 = vld [vmem:[#allocation4 + $0x90] sm:$0xff]
        %v2030 = vld [vmem:[#allocation4 + $0x98] sm:$0xff]
        %2032 = vset.pattern.permute.xlu0 0
        %2033 = vperm.xlu0 %2032, %v1744
        %v2034 = vpop.permute.xlu0 %2033
        %2037 = vset.pattern.permute.xlu0 0
        %2038 = vperm.xlu0 %2037, %v1758
        %v2039 = vpop.permute.xlu0 %2038
        %2042 = vset.pattern.permute.xlu0 0
        %2043 = vperm.xlu0 %2042, %v1772
        %v2044 = vpop.permute.xlu0 %2043
        %2047 = vset.pattern.permute.xlu0 0
        %2048 = vperm.xlu0 %2047, %v1786
        %v2049 = vpop.permute.xlu0 %2048
        %2052 = vset.pattern.permute.xlu0 0
        %2053 = vperm.xlu0 %2052, %v1800
        %v2054 = vpop.permute.xlu0 %2053
        %2057 = vset.pattern.permute.xlu0 0
        %2058 = vperm.xlu0 %2057, %v1814
        %v2059 = vpop.permute.xlu0 %2058
        %2062 = vset.pattern.permute.xlu0 0
        %2063 = vperm.xlu0 %2062, %v1828
        %v2064 = vpop.permute.xlu0 %2063
        %2067 = vset.pattern.permute.xlu0 0
        %2068 = vperm.xlu0 %2067, %v1842
        %v2069 = vpop.permute.xlu0 %2068
        %2072 = vset.pattern.permute.xlu0 0
        %2073 = vperm.xlu0 %2072, %v1856
        %v2074 = vpop.permute.xlu0 %2073
        %2077 = vset.pattern.permute.xlu0 0
        %2078 = vperm.xlu0 %2077, %v1870
        %v2079 = vpop.permute.xlu0 %2078
        %2082 = vset.pattern.permute.xlu0 0
        %2083 = vperm.xlu0 %2082, %v1884
        %v2084 = vpop.permute.xlu0 %2083
        %2087 = vset.pattern.permute.xlu0 0
        %2088 = vperm.xlu0 %2087, %v1898
        %v2089 = vpop.permute.xlu0 %2088
        %2092 = vset.pattern.permute.xlu0 0
        %2093 = vperm.xlu0 %2092, %v1912
        %v2094 = vpop.permute.xlu0 %2093
        %2097 = vset.pattern.permute.xlu0 0
        %2098 = vperm.xlu0 %2097, %v1926
        %v2099 = vpop.permute.xlu0 %2098
        %2102 = vset.pattern.permute.xlu0 0
        %2103 = vperm.xlu0 %2102, %v1940
        %v2104 = vpop.permute.xlu0 %2103
        %2107 = vset.pattern.permute.xlu0 0
        %2108 = vperm.xlu0 %2107, %v1954
        %v2109 = vpop.permute.xlu0 %2108
        %2112 = vset.pattern.permute.xlu0 0
        %2113 = vperm.xlu0 %2112, %v1968
        %v2114 = vpop.permute.xlu0 %2113
        %2117 = vset.pattern.permute.xlu0 0
        %2118 = vperm.xlu0 %2117, %v1982
        %v2119 = vpop.permute.xlu0 %2118
        %2122 = vset.pattern.permute.xlu0 0
        %2123 = vperm.xlu0 %2122, %v1996
        %v2124 = vpop.permute.xlu0 %2123
        %2127 = vset.pattern.permute.xlu0 0
        %2128 = vperm.xlu0 %2127, %v2010
        %v2129 = vpop.permute.xlu0 %2128
        %v2131 = vmul.f32 %v2011, %v2034
        %v2132 = vmul.f32 %v2012, %v2039
        %v2133 = vmul.f32 %v2013, %v2044
        %v2134 = vmul.f32 %v2014, %v2049
        %v2135 = vmul.f32 %v2015, %v2054
        %v2136 = vmul.f32 %v2016, %v2059
        %v2137 = vmul.f32 %v2017, %v2064
        %v2138 = vmul.f32 %v2018, %v2069
        %v2139 = vmul.f32 %v2019, %v2074
        %v2140 = vmul.f32 %v2020, %v2079
        %v2141 = vmul.f32 %v2021, %v2084
        %v2142 = vmul.f32 %v2022, %v2089
        %v2143 = vmul.f32 %v2023, %v2094
        %v2144 = vmul.f32 %v2024, %v2099
        %v2145 = vmul.f32 %v2025, %v2104
        %v2146 = vmul.f32 %v2026, %v2109
        %v2147 = vmul.f32 %v2027, %v2114
        %v2148 = vmul.f32 %v2028, %v2119
        %v2149 = vmul.f32 %v2029, %v2124
        %v2150 = vmul.f32 %v2030, %v2129
        %2156 = vrot.lane.b32.xlu0 %v2136, 8
        %v2157 = vpop.permute.xlu0 %2156
        %2158 = vrot.lane.b32.xlu0 %v2137, 8
        %v2159 = vpop.permute.xlu0 %2158
        %2160 = vrot.lane.b32.xlu0 %v2138, 8
        %v2161 = vpop.permute.xlu0 %2160
        %2162 = vrot.lane.b32.xlu0 %v2139, 8
        %v2163 = vpop.permute.xlu0 %2162
        %2164 = vrot.lane.b32.xlu0 %v2140, 8
        %v2165 = vpop.permute.xlu0 %2164
        %2176 = vrot.lane.b32.xlu0 %v2141, 16
        %v2177 = vpop.permute.xlu0 %2176
        %2178 = vrot.lane.b32.xlu0 %v2142, 16
        %v2179 = vpop.permute.xlu0 %2178
        %2180 = vrot.lane.b32.xlu0 %v2143, 16
        %v2181 = vpop.permute.xlu0 %2180
        %2182 = vrot.lane.b32.xlu0 %v2144, 16
        %v2183 = vpop.permute.xlu0 %2182
        %2184 = vrot.lane.b32.xlu0 %v2145, 16
        %v2185 = vpop.permute.xlu0 %2184
        %2196 = vrot.lane.b32.xlu0 %v2146, 24
        %v2197 = vpop.permute.xlu0 %2196
        %2198 = vrot.lane.b32.xlu0 %v2147, 24
        %v2199 = vpop.permute.xlu0 %2198
        %2200 = vrot.lane.b32.xlu0 %v2148, 24
        %v2201 = vpop.permute.xlu0 %2200
        %2202 = vrot.lane.b32.xlu0 %v2149, 24
        %v2203 = vpop.permute.xlu0 %2202
        %2204 = vrot.lane.b32.xlu0 %v2150, 24
        %v2205 = vpop.permute.xlu0 %2204
        %v2211 = vsel %vm502, %v2131, %v2157
        %v2212 = vsel %vm502, %v2132, %v2159
        %v2213 = vsel %vm502, %v2133, %v2161
        %v2214 = vsel %vm502, %v2134, %v2163
        %v2215 = vsel %vm502, %v2135, %v2165
        %vm2216 = vcmask 130048
        %v2217 = vsel %vm2216, %v2211, %v2177
        %v2218 = vsel %vm2216, %v2212, %v2179
        %v2219 = vsel %vm2216, %v2213, %v2181
        %v2220 = vsel %vm2216, %v2214, %v2183
        %v2221 = vsel %vm2216, %v2215, %v2185
        %vm2222 = vcmask 195584
        %v2223 = vsel %vm2222, %v2217, %v2197
        %v2224 = vsel %vm2222, %v2218, %v2199
        %v2225 = vsel %vm2222, %v2219, %v2201
        %v2226 = vsel %vm2222, %v2220, %v2203
        %v2227 = vsel %vm2222, %v2221, %v2205
        %v2228 = vpack.c.bf16 %v2223, %v2223
        %v2229 = vpack.c.bf16 %v2224, %v2224
        %v2230 = vpack.c.bf16 %v2225, %v2225
        %v2231 = vpack.c.bf16 %v2226, %v2226
        %v2232 = vpack.c.bf16 %v2227, %v2227
        %vm2233 = vcmask 257024
        %2234 = vst.msk [vmem:[%s287] sm:$0xf] %vm2233, %v2228
        %2235 = vst.msk [vmem:[%s287 + $0x4] sm:$0xf] %vm2233, %v2229
        %2236 = vst.msk [vmem:[%s287 + $0x8] sm:$0xf] %vm2233, %v2230
        %2237 = vst.msk [vmem:[%s287 + $0xc] sm:$0xf] %vm2233, %v2231
        %2238 = vst.msk [vmem:[%s287 + $0x10] sm:$0xf] %vm2233, %v2232
      $region40: #{vivit_forward.15} parent=31 // pred_fallthru
        _
      %s2239 = smul.u32 5, %s20
      %p2240 = scmp.lt.s32.totalorder %s19, 1
      %s2241 = scalar_select %p2240, %s19, 1
      %p2242 = scmp.lt.s32.totalorder %s2239, 4
      %s2243 = scalar_select %p2242, %s2239, 4
      %s2244 = smul.addr %s2241, 5
      %s2245 = sadd.s32 %s2243, %s2244
      %s2246 = smul.addr %s2245, 4
      %s2247 = scalar_lea.vmem %s3, %s2246
      // Predicated region
      $region41: #{vivit_forward.15} parent=31 // pred_check
        %p2248 = pneg %p137
      $region42: #{vivit_forward.15} parent=31 // pred_check_branch
        %2250 = sbr.rel (%p2248) target = $region44
      $region43: #{vivit_forward.15} parent=31 // pred_region
        %s2251 = smul.u32 5, %s20
      $region44: #{vivit_forward.15} parent=31 // pred_fallthru
        _
    $region32: #{vivit_forward.15} parent=5 // pred_fallthru
      _
    %p2252 = scmp.le.s32.totalorder 2, %s9
    // Predicated region
    $region45: #{vivit_forward.15} parent=5 // pred_check
      %p2253 = pneg %p2252
    $region46: #{vivit_forward.15} parent=5 // pred_check_branch
      %2255 = sbr.rel (%p2253) target = $region48
    $region47: #{vivit_forward.15} parent=5 // pred_region
      %s2256 = ssub.s32 %s9, 2
      // Predicated region
      $region49: #{vivit_forward.15} parent=47 // pred_check
        %p2257 = pneg %p143
      $region50: #{vivit_forward.15} parent=47 // pred_check_branch
        %2259 = sbr.rel (%p2257) target = $region52
      $region51: #{vivit_forward.15} parent=47 // pred_region
        %s2260 = smul.u32 5, %s23
        %p2261 = scmp.lt.s32.totalorder %s22, 1
        %s2262 = scalar_select %p2261, %s22, 1
        %p2263 = scmp.lt.s32.totalorder %s2260, 4
        %s2264 = scalar_select %p2263, %s2260, 4
        %s2265 = smul.addr %s2262, 5
        %s2266 = sadd.s32 %s2264, %s2265
        %s2267 = smul.addr %s2266, 4
        %s2268 = scalar_lea.vmem %s3, %s2267
      $region52: #{vivit_forward.15} parent=47 // pred_fallthru
        _
    $region48: #{vivit_forward.15} parent=5 // pred_fallthru
      _
  $region6: #{vivit_forward.15} parent=0 // loop_footer
    %s13 = sadd.s32 1, %s9
  $region7: #{vivit_forward.15} parent=0 // loop_footer_branch
    %8 = sbr.rel target = $region3
  $region8: #{vivit_forward.15} parent=0 // loop_exit
    _

// kernel: vivit_forward.24
$region0: #{vivit_forward.24}
  #allocation0 [shape = 'u32[]', space=smem, size = 0x4, offset = 0x4, fixed_abs, tag = 'smem constant byte address 0x4 - core index']
  #allocation1 [shape = 'u32[72,128]{1,0:T(1,128)}', space=vmem, size = 0x9000, scoped, tag = 'internal scratch']
  %s0 = inlined_call_operand.vmem [shape: bf16[80,32], index: 0, kind: input, shape index: {}]
  %s1 = inlined_call_operand.vmem [shape: f32[1,32], index: 1, kind: input, shape index: {}]
  %s2 = inlined_call_operand.vmem [shape: f32[1,32], index: 2, kind: input, shape index: {}]
  %s3 = inlined_call_operand.vmem [shape: bf16[80,32], index: 3, kind: output, shape index: {}]
  %s4 = sld [smem:[#allocation0]]
  $region22: #{vivit_forward.24} parent=0
    _
  %s6 = ssub.s32 1, %s4
  %s7 = scalar_select 0, %s6, %s4
  // Predicated region
  $region2: #{vivit_forward.24} parent=0 // pred_check
    _
  $region3: #{vivit_forward.24} parent=0 // pred_check_branch
    %9 = sbr.rel (0) target = $region5
  $region4: #{vivit_forward.24} parent=0 // pred_region
    _
  $region5: #{vivit_forward.24} parent=0 // pred_fallthru
    _
  // Predicated region
  $region6: #{vivit_forward.24} parent=0 // pred_check
    _
  $region7: #{vivit_forward.24} parent=0 // pred_check_branch
    %11 = sbr.rel (0) target = $region9
  $region8: #{vivit_forward.24} parent=0 // pred_region
    _
  $region9: #{vivit_forward.24} parent=0 // pred_fallthru
    _
  // Predicated region
  $region10: #{vivit_forward.24} parent=0 // pred_check
    _
  $region11: #{vivit_forward.24} parent=0 // pred_check_branch
    %13 = sbr.rel (0) target = $region13
  $region12: #{vivit_forward.24} parent=0 // pred_region
    _
  $region13: #{vivit_forward.24} parent=0 // pred_fallthru
    _
  %v14 = vld [vmem:[%s0] sm:$0xf]
  %v15 = vld [vmem:[%s0 + $0x4] sm:$0xf]
  %v16 = vld [vmem:[%s0 + $0x8] sm:$0xf]
  %v17 = vld [vmem:[%s0 + $0xc] sm:$0xf]
  %v18 = vld [vmem:[%s0 + $0x10] sm:$0xf]
  %v19 = vld [vmem:[%s0 + $0x14] sm:$0xf]
  %v20 = vld [vmem:[%s0 + $0x18] sm:$0xf]
  %v21 = vld [vmem:[%s0 + $0x1c] sm:$0xf]
  %v22 = vld [vmem:[%s0 + $0x20] sm:$0xf]
  %v23 = vld [vmem:[%s0 + $0x24] sm:$0xf]
  %v24 = vunpack.c.l.bf16 %v14
  %v25 = vunpack.c.l.bf16 %v15
  %v26 = vunpack.c.l.bf16 %v16
  %v27 = vunpack.c.l.bf16 %v17
  %v28 = vunpack.c.l.bf16 %v18
  %v29 = vunpack.c.l.bf16 %v19
  %v30 = vunpack.c.l.bf16 %v20
  %v31 = vunpack.c.l.bf16 %v21
  %v32 = vunpack.c.l.bf16 %v22
  %v33 = vunpack.c.l.bf16 %v23
  %vm34 = vcmask 261120
  %v35 = vsel %vm34, %v24, 0.0
  %36 = vadd.xlane.f32.xlu0 %v35
  %v37 = vpop.xlane.xlu0 %36
  %v38 = vsel %vm34, %v25, 0.0
  %39 = vadd.xlane.f32.xlu0 %v38
  %v40 = vpop.xlane.xlu0 %39
  %v41 = vsel %vm34, %v26, 0.0
  %42 = vadd.xlane.f32.xlu0 %v41
  %v43 = vpop.xlane.xlu0 %42
  %v44 = vsel %vm34, %v27, 0.0
  %45 = vadd.xlane.f32.xlu0 %v44
  %v46 = vpop.xlane.xlu0 %45
  %v47 = vsel %vm34, %v28, 0.0
  %48 = vadd.xlane.f32.xlu0 %v47
  %v49 = vpop.xlane.xlu0 %48
  %v50 = vsel %vm34, %v29, 0.0
  %51 = vadd.xlane.f32.xlu0 %v50
  %v52 = vpop.xlane.xlu0 %51
  %v53 = vsel %vm34, %v30, 0.0
  %54 = vadd.xlane.f32.xlu0 %v53
  %v55 = vpop.xlane.xlu0 %54
  %v56 = vsel %vm34, %v31, 0.0
  %57 = vadd.xlane.f32.xlu0 %v56
  %v58 = vpop.xlane.xlu0 %57
  %v59 = vsel %vm34, %v32, 0.0
  %60 = vadd.xlane.f32.xlu0 %v59
  %v61 = vpop.xlane.xlu0 %60
  %v62 = vsel %vm34, %v33, 0.0
  %63 = vadd.xlane.f32.xlu0 %v62
  %v64 = vpop.xlane.xlu0 %63
  %v65 = vrcp.pop 32.0
  %v66 = vmul.f32 32.0, %v65
  %v67 = vsub.f32 1.0, %v66
  %v68 = vmul.f32 %v65, %v67
  %v69 = vadd.f32 %v65, %v68
  %vm70 = vweird.f32 %v65
  %v71 = vsel %vm70, %v65, %v69
  %v72 = vmul.f32 %v37, %v71
  %v73 = vmul.f32 %v40, %v71
  %v74 = vmul.f32 %v43, %v71
  %v75 = vmul.f32 %v46, %v71
  %v76 = vmul.f32 %v49, %v71
  %v77 = vmul.f32 %v52, %v71
  %v78 = vmul.f32 %v55, %v71
  %v79 = vmul.f32 %v58, %v71
  %v80 = vmul.f32 %v61, %v71
  %v81 = vmul.f32 %v64, %v71
  %v82 = vsub.f32 %v24, %v72
  %v83 = vsub.f32 %v25, %v73
  %v84 = vsub.f32 %v26, %v74
  %v85 = vsub.f32 %v27, %v75
  %v86 = vsub.f32 %v28, %v76
  %v87 = vsub.f32 %v29, %v77
  %v88 = vsub.f32 %v30, %v78
  %v89 = vsub.f32 %v31, %v79
  %v90 = vsub.f32 %v32, %v80
  %v91 = vsub.f32 %v33, %v81
  %v92 = vmul.f32 %v82, %v82
  %v93 = vmul.f32 %v83, %v83
  %v94 = vmul.f32 %v84, %v84
  %v95 = vmul.f32 %v85, %v85
  %v96 = vmul.f32 %v86, %v86
  %v97 = vmul.f32 %v87, %v87
  %v98 = vmul.f32 %v88, %v88
  %v99 = vmul.f32 %v89, %v89
  %v100 = vmul.f32 %v90, %v90
  %v101 = vmul.f32 %v91, %v91
  %v102 = vsel %vm34, %v92, 0.0
  %103 = vadd.xlane.f32.xlu0 %v102
  %v104 = vpop.xlane.xlu0 %103
  %v105 = vsel %vm34, %v93, 0.0
  %106 = vadd.xlane.f32.xlu0 %v105
  %v107 = vpop.xlane.xlu0 %106
  %v108 = vsel %vm34, %v94, 0.0
  %109 = vadd.xlane.f32.xlu0 %v108
  %v110 = vpop.xlane.xlu0 %109
  %v111 = vsel %vm34, %v95, 0.0
  %112 = vadd.xlane.f32.xlu0 %v111
  %v113 = vpop.xlane.xlu0 %112
  %v114 = vsel %vm34, %v96, 0.0
  %115 = vadd.xlane.f32.xlu0 %v114
  %v116 = vpop.xlane.xlu0 %115
  %v117 = vsel %vm34, %v97, 0.0
  %118 = vadd.xlane.f32.xlu0 %v117
  %v119 = vpop.xlane.xlu0 %118
  %v120 = vsel %vm34, %v98, 0.0
  %121 = vadd.xlane.f32.xlu0 %v120
  %v122 = vpop.xlane.xlu0 %121
  %v123 = vsel %vm34, %v99, 0.0
  %124 = vadd.xlane.f32.xlu0 %v123
  %v125 = vpop.xlane.xlu0 %124
  %v126 = vsel %vm34, %v100, 0.0
  %127 = vadd.xlane.f32.xlu0 %v126
  %v128 = vpop.xlane.xlu0 %127
  %v129 = vsel %vm34, %v101, 0.0
  %130 = vadd.xlane.f32.xlu0 %v129
  %v131 = vpop.xlane.xlu0 %130
  %v132 = vmul.f32 %v104, %v71
  %v133 = vmul.f32 %v107, %v71
  %v134 = vmul.f32 %v110, %v71
  %v135 = vmul.f32 %v113, %v71
  %v136 = vmul.f32 %v116, %v71
  %v137 = vmul.f32 %v119, %v71
  %v138 = vmul.f32 %v122, %v71
  %v139 = vmul.f32 %v125, %v71
  %v140 = vmul.f32 %v128, %v71
  %v141 = vmul.f32 %v131, %v71
  %v142 = vadd.f32 %v132, 1e-05
  %v143 = vadd.f32 %v133, 1e-05
  %v144 = vadd.f32 %v134, 1e-05
  %v145 = vadd.f32 %v135, 1e-05
  %v146 = vadd.f32 %v136, 1e-05
  %v147 = vadd.f32 %v137, 1e-05
  %v148 = vadd.f32 %v138, 1e-05
  %v149 = vadd.f32 %v139, 1e-05
  %v150 = vadd.f32 %v140, 1e-05
  %v151 = vadd.f32 %v141, 1e-05
  %v152 = vrsqrt.pop %v142
  %v153 = vmul.f32 %v152, %v142
  %v154 = vmul.f32 %v153, %v152
  %v155 = vmul.f32 0.5, %v154
  %v156 = vsub.f32 1.5, %v155
  %v157 = vmul.f32 %v152, %v156
  %vm158 = vweird.f32 %v142
  %vm159 = vweird.f32 %v152
  %vm160 = vmor %vm158, %vm159
  %v161 = vsel %vm160, %v152, %v157
  %v162 = vrsqrt.pop %v143
  %v163 = vmul.f32 %v162, %v143
  %v164 = vmul.f32 %v163, %v162
  %v165 = vmul.f32 0.5, %v164
  %v166 = vsub.f32 1.5, %v165
  %v167 = vmul.f32 %v162, %v166
  %vm168 = vweird.f32 %v143
  %vm169 = vweird.f32 %v162
  %vm170 = vmor %vm168, %vm169
  %v171 = vsel %vm170, %v162, %v167
  %v172 = vrsqrt.pop %v144
  %v173 = vmul.f32 %v172, %v144
  %v174 = vmul.f32 %v173, %v172
  %v175 = vmul.f32 0.5, %v174
  %v176 = vsub.f32 1.5, %v175
  %v177 = vmul.f32 %v172, %v176
  %vm178 = vweird.f32 %v144
  %vm179 = vweird.f32 %v172
  %vm180 = vmor %vm178, %vm179
  %v181 = vsel %vm180, %v172, %v177
  %v182 = vrsqrt.pop %v145
  %v183 = vmul.f32 %v182, %v145
  %v184 = vmul.f32 %v183, %v182
  %v185 = vmul.f32 0.5, %v184
  %v186 = vsub.f32 1.5, %v185
  %v187 = vmul.f32 %v182, %v186
  %vm188 = vweird.f32 %v145
  %vm189 = vweird.f32 %v182
  %vm190 = vmor %vm188, %vm189
  %v191 = vsel %vm190, %v182, %v187
  %v192 = vrsqrt.pop %v146
  %v193 = vmul.f32 %v192, %v146
  %v194 = vmul.f32 %v193, %v192
  %v195 = vmul.f32 0.5, %v194
  %v196 = vsub.f32 1.5, %v195
  %v197 = vmul.f32 %v192, %v196
  %vm198 = vweird.f32 %v146
  %vm199 = vweird.f32 %v192
  %vm200 = vmor %vm198, %vm199
  %v201 = vsel %vm200, %v192, %v197
  %v202 = vrsqrt.pop %v147
  %v203 = vmul.f32 %v202, %v147
  %v204 = vmul.f32 %v203, %v202
  %v205 = vmul.f32 0.5, %v204
  %v206 = vsub.f32 1.5, %v205
  %v207 = vmul.f32 %v202, %v206
  %vm208 = vweird.f32 %v147
  %vm209 = vweird.f32 %v202
  %vm210 = vmor %vm208, %vm209
  %v211 = vsel %vm210, %v202, %v207
  %v212 = vrsqrt.pop %v148
  %v213 = vmul.f32 %v212, %v148
  %v214 = vmul.f32 %v213, %v212
  %v215 = vmul.f32 0.5, %v214
  %v216 = vsub.f32 1.5, %v215
  %v217 = vmul.f32 %v212, %v216
  %vm218 = vweird.f32 %v148
  %vm219 = vweird.f32 %v212
  %vm220 = vmor %vm218, %vm219
  %v221 = vsel %vm220, %v212, %v217
  %v222 = vrsqrt.pop %v149
  %v223 = vmul.f32 %v222, %v149
  %v224 = vmul.f32 %v223, %v222
  %v225 = vmul.f32 0.5, %v224
  %v226 = vsub.f32 1.5, %v225
  %v227 = vmul.f32 %v222, %v226
  %vm228 = vweird.f32 %v149
  %vm229 = vweird.f32 %v222
  %vm230 = vmor %vm228, %vm229
  %v231 = vsel %vm230, %v222, %v227
  %v232 = vrsqrt.pop %v150
  %v233 = vmul.f32 %v232, %v150
  %v234 = vmul.f32 %v233, %v232
  %v235 = vmul.f32 0.5, %v234
  %v236 = vsub.f32 1.5, %v235
  %v237 = vmul.f32 %v232, %v236
  %vm238 = vweird.f32 %v150
  %vm239 = vweird.f32 %v232
  %vm240 = vmor %vm238, %vm239
  %v241 = vsel %vm240, %v232, %v237
  %v242 = vrsqrt.pop %v151
  %v243 = vmul.f32 %v242, %v151
  %v244 = vmul.f32 %v243, %v242
  %v245 = vmul.f32 0.5, %v244
  %v246 = vsub.f32 1.5, %v245
  %v247 = vmul.f32 %v242, %v246
  %vm248 = vweird.f32 %v151
  %vm249 = vweird.f32 %v242
  %vm250 = vmor %vm248, %vm249
  %v251 = vsel %vm250, %v242, %v247
  %v252 = vmul.f32 %v82, %v161
  %v253 = vmul.f32 %v83, %v171
  %v254 = vmul.f32 %v84, %v181
  %v255 = vmul.f32 %v85, %v191
  %v256 = vmul.f32 %v86, %v201
  %v257 = vmul.f32 %v87, %v211
  %v258 = vmul.f32 %v88, %v221
  %v259 = vmul.f32 %v89, %v231
  %v260 = vmul.f32 %v90, %v241
  %v261 = vmul.f32 %v91, %v251
  %v262 = vld [vmem:[%s1] sm:$0x1]
  %v264 = vperm.slane %v262, 0
  %v266 = vmul.f32 %v252, %v264
  %v267 = vmul.f32 %v253, %v264
  %v268 = vmul.f32 %v254, %v264
  %v269 = vmul.f32 %v255, %v264
  %v270 = vmul.f32 %v256, %v264
  %v271 = vmul.f32 %v257, %v264
  %v272 = vmul.f32 %v258, %v264
  %v273 = vmul.f32 %v259, %v264
  %v274 = vmul.f32 %v260, %v264
  %v275 = vmul.f32 %v261, %v264
  %v276 = vld [vmem:[%s2] sm:$0x1]
  %v278 = vperm.slane %v276, 0
  %v280 = vadd.f32 %v266, %v278
  %v281 = vadd.f32 %v267, %v278
  %v282 = vadd.f32 %v268, %v278
  %v283 = vadd.f32 %v269, %v278
  %v284 = vadd.f32 %v270, %v278
  %v285 = vadd.f32 %v271, %v278
  %v286 = vadd.f32 %v272, %v278
  %v287 = vadd.f32 %v273, %v278
  %v288 = vadd.f32 %v274, %v278
  %v289 = vadd.f32 %v275, %v278
  %v290 = vpack.c.bf16 %v280, %v280
  %v291 = vpack.c.bf16 %v281, %v281
  %v292 = vpack.c.bf16 %v282, %v282
  %v293 = vpack.c.bf16 %v283, %v283
  %v294 = vpack.c.bf16 %v284, %v284
  %v295 = vpack.c.bf16 %v285, %v285
  %v296 = vpack.c.bf16 %v286, %v286
  %v297 = vpack.c.bf16 %v287, %v287
  %v298 = vpack.c.bf16 %v288, %v288
  %v299 = vpack.c.bf16 %v289, %v289
  %vm300 = vcmask 257024
  %301 = vst.msk [vmem:[%s3] sm:$0xf] %vm300, %v290
  %302 = vst.msk [vmem:[%s3 + $0x4] sm:$0xf] %vm300, %v291
  %303 = vst.msk [vmem:[%s3 + $0x8] sm:$0xf] %vm300, %v292
  %304 = vst.msk [vmem:[%s3 + $0xc] sm:$0xf] %vm300, %v293
  %305 = vst.msk [vmem:[%s3 + $0x10] sm:$0xf] %vm300, %v294
  %306 = vst.msk [vmem:[%s3 + $0x14] sm:$0xf] %vm300, %v295
  %307 = vst.msk [vmem:[%s3 + $0x18] sm:$0xf] %vm300, %v296
  %308 = vst.msk [vmem:[%s3 + $0x1c] sm:$0xf] %vm300, %v297
  %309 = vst.msk [vmem:[%s3 + $0x20] sm:$0xf] %vm300, %v298
  %310 = vst.msk [vmem:[%s3 + $0x24] sm:$0xf] %vm300, %v299
  // Predicated region
  $region14: #{vivit_forward.24} parent=0 // pred_check
    _
  $region15: #{vivit_forward.24} parent=0 // pred_check_branch
    %312 = sbr.rel (0) target = $region17
  $region16: #{vivit_forward.24} parent=0 // pred_region
    _
  $region17: #{vivit_forward.24} parent=0 // pred_fallthru
    _
  // Predicated region
  $region18: #{vivit_forward.24} parent=0 // pred_check
    _
  $region19: #{vivit_forward.24} parent=0 // pred_check_branch
    %314 = sbr.rel (0) target = $region21
  $region20: #{vivit_forward.24} parent=0 // pred_region
    _
  $region21: #{vivit_forward.24} parent=0 // pred_fallthru
    _

// kernel: vivit_forward.18
$region0: #{vivit_forward.18}
  #allocation0 [shape = 'u32[]', space=smem, size = 0x4, offset = 0x4, fixed_abs, tag = 'smem constant byte address 0x4 - core index']
  #allocation1 [shape = 'u32[72,128]{1,0:T(1,128)}', space=vmem, size = 0x9000, scoped, tag = 'internal scratch']
  #allocation2 [shape = 'f32[80,32]{1,0:T(8,128)}', space=vmem, size = 0xa000, scoped, tag = 'scratch operand']
  %s0 = inlined_call_operand.vmem [shape: bf16[80,64], index: 0, kind: input, shape index: {}]
  %s1 = inlined_call_operand.vmem [shape: bf16[64,32], index: 1, kind: input, shape index: {}]
  %s2 = inlined_call_operand.vmem [shape: f32[1,32], index: 2, kind: input, shape index: {}]
  %s3 = inlined_call_operand.vmem [shape: bf16[80,32], index: 3, kind: input, shape index: {}]
  %s4 = inlined_call_operand.vmem [shape: bf16[80,32], index: 4, kind: output, shape index: {}]
  %s5 = sld [smem:[#allocation0]]
  $region34: #{vivit_forward.18} parent=0
    _
  %s7 = ssub.s32 1, %s5
  %s8 = scalar_select 0, %s7, %s5
  // Predicated region
  $region2: #{vivit_forward.18} parent=0 // pred_check
    _
  $region3: #{vivit_forward.18} parent=0 // pred_check_branch
    %10 = sbr.rel (0) target = $region5
  $region4: #{vivit_forward.18} parent=0 // pred_region
    _
  $region5: #{vivit_forward.18} parent=0 // pred_fallthru
    _
  // Predicated region
  $region6: #{vivit_forward.18} parent=0 // pred_check
    _
  $region7: #{vivit_forward.18} parent=0 // pred_check_branch
    %12 = sbr.rel (0) target = $region9
  $region8: #{vivit_forward.18} parent=0 // pred_region
    _
  $region9: #{vivit_forward.18} parent=0 // pred_fallthru
    _
  // Predicated region
  $region10: #{vivit_forward.18} parent=0 // pred_check
    _
  $region11: #{vivit_forward.18} parent=0 // pred_check_branch
    %14 = sbr.rel (0) target = $region13
  $region12: #{vivit_forward.18} parent=0 // pred_region
    _
  $region13: #{vivit_forward.18} parent=0 // pred_fallthru
    _
  // Predicated region
  $region14: #{vivit_forward.18} parent=0 // pred_check
    _
  $region15: #{vivit_forward.18} parent=0 // pred_check_branch
    %16 = sbr.rel (0) target = $region17
  $region16: #{vivit_forward.18} parent=0 // pred_region
    _
  $region17: #{vivit_forward.18} parent=0 // pred_fallthru
    _
  %p18 = scmp.eq.s32.totalorder 0, 0
  // Predicated region
  $region18: #{vivit_forward.18} parent=0 // pred_check
    %p19 = pneg %p18
  $region19: #{vivit_forward.18} parent=0 // pred_check_branch
    %21 = sbr.rel (%p19) target = $region21
  $region20: #{vivit_forward.18} parent=0 // pred_region
    %vm22 = vcmask 261120
    %23 = vst.msk [vmem:[#allocation2] sm:$0xff] %vm22, 0.0
    %24 = vst.msk [vmem:[#allocation2 + $0x8] sm:$0xff] %vm22, 0.0
    %25 = vst.msk [vmem:[#allocation2 + $0x10] sm:$0xff] %vm22, 0.0
    %26 = vst.msk [vmem:[#allocation2 + $0x18] sm:$0xff] %vm22, 0.0
    %27 = vst.msk [vmem:[#allocation2 + $0x20] sm:$0xff] %vm22, 0.0
    %28 = vst.msk [vmem:[#allocation2 + $0x28] sm:$0xff] %vm22, 0.0
    %29 = vst.msk [vmem:[#allocation2 + $0x30] sm:$0xff] %vm22, 0.0
    %30 = vst.msk [vmem:[#allocation2 + $0x38] sm:$0xff] %vm22, 0.0
    %31 = vst.msk [vmem:[#allocation2 + $0x40] sm:$0xff] %vm22, 0.0
    %32 = vst.msk [vmem:[#allocation2 + $0x48] sm:$0xff] %vm22, 0.0
  $region21: #{vivit_forward.18} parent=0 // pred_fallthru
    _
  %v33 = vld [vmem:[#allocation2] sm:$0xff]
  %v34 = vld [vmem:[#allocation2 + $0x8] sm:$0xff]
  %v35 = vld [vmem:[#allocation2 + $0x10] sm:$0xff]
  %v36 = vld [vmem:[#allocation2 + $0x18] sm:$0xff]
  %v37 = vld [vmem:[#allocation2 + $0x20] sm:$0xff]
  %v38 = vld [vmem:[#allocation2 + $0x28] sm:$0xff]
  %v39 = vld [vmem:[#allocation2 + $0x30] sm:$0xff]
  %v40 = vld [vmem:[#allocation2 + $0x38] sm:$0xff]
  %v41 = vld [vmem:[#allocation2 + $0x40] sm:$0xff]
  %v42 = vld [vmem:[#allocation2 + $0x48] sm:$0xff]
  %v43 = vld [vmem:[%s0] sm:$0xf]
  %v44 = vld [vmem:[%s0 + $0x4] sm:$0xf]
  %v45 = vld [vmem:[%s0 + $0x8] sm:$0xf]
  %v46 = vld [vmem:[%s0 + $0xc] sm:$0xf]
  %v47 = vld [vmem:[%s0 + $0x10] sm:$0xf]
  %v48 = vld [vmem:[%s0 + $0x14] sm:$0xf]
  %v49 = vld [vmem:[%s0 + $0x18] sm:$0xf]
  %v50 = vld [vmem:[%s0 + $0x1c] sm:$0xf]
  %v51 = vld [vmem:[%s0 + $0x20] sm:$0xf]
  %v52 = vld [vmem:[%s0 + $0x24] sm:$0xf]
  %v53 = vld [vmem:[%s1] sm:$0xf]
  %v54 = vld [vmem:[%s1 + $0x4] sm:$0xf]
  %v55 = vld [vmem:[%s1 + $0x8] sm:$0xf]
  %v56 = vld [vmem:[%s1 + $0xc] sm:$0xf]
  %v57 = vld [vmem:[%s1 + $0x10] sm:$0xf]
  %v58 = vld [vmem:[%s1 + $0x14] sm:$0xf]
  %v59 = vld [vmem:[%s1 + $0x18] sm:$0xf]
  %v60 = vld [vmem:[%s1 + $0x1c] sm:$0xf]
  %v71 = vunpack.c.l.b16 %v43
  %v72 = vunpack.c.l.b16 %v44
  %v73 = vunpack.c.l.b16 %v45
  %v74 = vunpack.c.l.b16 %v46
  %v75 = vunpack.c.l.b16 %v47
  %v76 = vunpack.c.l.b16 %v48
  %v77 = vunpack.c.l.b16 %v49
  %v78 = vunpack.c.l.b16 %v50
  %v79 = vunpack.c.l.b16 %v51
  %v80 = vunpack.c.l.b16 %v52
  %v81 = vpack.c.b16 %v72, %v71
  %v82 = vpack.c.b16 %v74, %v73
  %v83 = vpack.c.b16 %v76, %v75
  %v84 = vpack.c.b16 %v78, %v77
  %v85 = vpack.c.b16 %v80, %v79
  %v94 = vunpack.c.l.b16 %v53
  %v95 = vunpack.c.l.b16 %v54
  %v96 = vunpack.c.l.b16 %v55
  %v97 = vunpack.c.l.b16 %v56
  %v98 = vunpack.c.l.b16 %v57
  %v99 = vunpack.c.l.b16 %v58
  %v100 = vunpack.c.l.b16 %v59
  %v101 = vunpack.c.l.b16 %v60
  %v102 = vpack.c.b16 %v95, %v94
  %v103 = vpack.c.b16 %v97, %v96
  %v104 = vpack.c.b16 %v99, %v98
  %v105 = vpack.c.b16 %v101, %v100
  %vm110 = vcmask 523264
  %v112 = vsel %vm110, %v81, 0
  %v115 = vsel %vm110, %v82, 0
  %v118 = vsel %vm110, %v83, 0
  %v121 = vsel %vm110, %v84, 0
  %v124 = vsel %vm110, %v85, 0
  %126 = vmatpush.bf16.msra.mxu0 0
  %127 = vmatpush.bf16.msra.mxu0 0
  %128 = vmatpush.bf16.msra.mxu0 0
  %129 = vmatpush.bf16.msra.mxu0 0
  %130 = vmatpush.bf16.msra.mxu0 %v105
  %131 = vmatpush.bf16.msra.mxu0 %v104
  %132 = vmatpush.bf16.msra.mxu0 %v103
  %133 = vmatpush.bf16.msra.mxu0 %v102
  %134 = vmatmul.bf16.gmra.mxu0 %v112
  %v135 = vpop.f32.mrf.mxu0
  %v136 = vadd.f32 0.0, %v135
  %v137 = vpop.f32.mrf.mxu0
  %v138 = vadd.f32 0.0, %v137
  %139 = vmatmul.bf16.gmra.mxu0 %v115
  %v140 = vpop.f32.mrf.mxu0
  %v141 = vadd.f32 0.0, %v140
  %v142 = vpop.f32.mrf.mxu0
  %v143 = vadd.f32 0.0, %v142
  %144 = vmatmul.bf16.gmra.mxu0 %v118
  %v145 = vpop.f32.mrf.mxu0
  %v146 = vadd.f32 0.0, %v145
  %v147 = vpop.f32.mrf.mxu0
  %v148 = vadd.f32 0.0, %v147
  %149 = vmatmul.bf16.gmra.mxu0 %v121
  %v150 = vpop.f32.mrf.mxu0
  %v151 = vadd.f32 0.0, %v150
  %v152 = vpop.f32.mrf.mxu0
  %v153 = vadd.f32 0.0, %v152
  %154 = vmatmul.bf16.gmra.mxu0 %v124
  %v155 = vpop.f32.mrf.mxu0
  %v156 = vadd.f32 0.0, %v155
  %v157 = vpop.f32.mrf.mxu0
  %v158 = vadd.f32 0.0, %v157
  %159 = vdwg.mxu0
  %v160 = vadd.f32 %v33, %v136
  %v161 = vadd.f32 %v34, %v138
  %v162 = vadd.f32 %v35, %v141
  %v163 = vadd.f32 %v36, %v143
  %v164 = vadd.f32 %v37, %v146
  %v165 = vadd.f32 %v38, %v148
  %v166 = vadd.f32 %v39, %v151
  %v167 = vadd.f32 %v40, %v153
  %v168 = vadd.f32 %v41, %v156
  %v169 = vadd.f32 %v42, %v158
  %vm170 = vcmask 261120
  %171 = vst.msk [vmem:[#allocation2] sm:$0xff] %vm170, %v160
  %172 = vst.msk [vmem:[#allocation2 + $0x8] sm:$0xff] %vm170, %v161
  %173 = vst.msk [vmem:[#allocation2 + $0x10] sm:$0xff] %vm170, %v162
  %174 = vst.msk [vmem:[#allocation2 + $0x18] sm:$0xff] %vm170, %v163
  %175 = vst.msk [vmem:[#allocation2 + $0x20] sm:$0xff] %vm170, %v164
  %176 = vst.msk [vmem:[#allocation2 + $0x28] sm:$0xff] %vm170, %v165
  %177 = vst.msk [vmem:[#allocation2 + $0x30] sm:$0xff] %vm170, %v166
  %178 = vst.msk [vmem:[#allocation2 + $0x38] sm:$0xff] %vm170, %v167
  %179 = vst.msk [vmem:[#allocation2 + $0x40] sm:$0xff] %vm170, %v168
  %180 = vst.msk [vmem:[#allocation2 + $0x48] sm:$0xff] %vm170, %v169
  // Predicated region
  $region22: #{vivit_forward.18} parent=0 // pred_check
    %p181 = pneg %p18
  $region23: #{vivit_forward.18} parent=0 // pred_check_branch
    %183 = sbr.rel (%p181) target = $region25
  $region24: #{vivit_forward.18} parent=0 // pred_region
    %v184 = vld [vmem:[#allocation2] sm:$0xff]
    %v185 = vld [vmem:[#allocation2 + $0x8] sm:$0xff]
    %v186 = vld [vmem:[#allocation2 + $0x10] sm:$0xff]
    %v187 = vld [vmem:[#allocation2 + $0x18] sm:$0xff]
    %v188 = vld [vmem:[#allocation2 + $0x20] sm:$0xff]
    %v189 = vld [vmem:[#allocation2 + $0x28] sm:$0xff]
    %v190 = vld [vmem:[#allocation2 + $0x30] sm:$0xff]
    %v191 = vld [vmem:[#allocation2 + $0x38] sm:$0xff]
    %v192 = vld [vmem:[#allocation2 + $0x40] sm:$0xff]
    %v193 = vld [vmem:[#allocation2 + $0x48] sm:$0xff]
    %v194 = vld [vmem:[%s2] sm:$0x1]
    %v196 = vperm.slane %v194, 0
    %v198 = vadd.f32 %v184, %v196
    %v199 = vadd.f32 %v185, %v196
    %v200 = vadd.f32 %v186, %v196
    %v201 = vadd.f32 %v187, %v196
    %v202 = vadd.f32 %v188, %v196
    %v203 = vadd.f32 %v189, %v196
    %v204 = vadd.f32 %v190, %v196
    %v205 = vadd.f32 %v191, %v196
    %v206 = vadd.f32 %v192, %v196
    %v207 = vadd.f32 %v193, %v196
    %v208 = vld [vmem:[%s3] sm:$0xf]
    %v209 = vld [vmem:[%s3 + $0x4] sm:$0xf]
    %v210 = vld [vmem:[%s3 + $0x8] sm:$0xf]
    %v211 = vld [vmem:[%s3 + $0xc] sm:$0xf]
    %v212 = vld [vmem:[%s3 + $0x10] sm:$0xf]
    %v213 = vld [vmem:[%s3 + $0x14] sm:$0xf]
    %v214 = vld [vmem:[%s3 + $0x18] sm:$0xf]
    %v215 = vld [vmem:[%s3 + $0x1c] sm:$0xf]
    %v216 = vld [vmem:[%s3 + $0x20] sm:$0xf]
    %v217 = vld [vmem:[%s3 + $0x24] sm:$0xf]
    %v218 = vunpack.c.l.bf16 %v208
    %v219 = vunpack.c.l.bf16 %v209
    %v220 = vunpack.c.l.bf16 %v210
    %v221 = vunpack.c.l.bf16 %v211
    %v222 = vunpack.c.l.bf16 %v212
    %v223 = vunpack.c.l.bf16 %v213
    %v224 = vunpack.c.l.bf16 %v214
    %v225 = vunpack.c.l.bf16 %v215
    %v226 = vunpack.c.l.bf16 %v216
    %v227 = vunpack.c.l.bf16 %v217
    %v228 = vadd.f32 %v198, %v218
    %v229 = vadd.f32 %v199, %v219
    %v230 = vadd.f32 %v200, %v220
    %v231 = vadd.f32 %v201, %v221
    %v232 = vadd.f32 %v202, %v222
    %v233 = vadd.f32 %v203, %v223
    %v234 = vadd.f32 %v204, %v224
    %v235 = vadd.f32 %v205, %v225
    %v236 = vadd.f32 %v206, %v226
    %v237 = vadd.f32 %v207, %v227
    %v238 = vpack.c.bf16 %v228, %v228
    %v239 = vpack.c.bf16 %v229, %v229
    %v240 = vpack.c.bf16 %v230, %v230
    %v241 = vpack.c.bf16 %v231, %v231
    %v242 = vpack.c.bf16 %v232, %v232
    %v243 = vpack.c.bf16 %v233, %v233
    %v244 = vpack.c.bf16 %v234, %v234
    %v245 = vpack.c.bf16 %v235, %v235
    %v246 = vpack.c.bf16 %v236, %v236
    %v247 = vpack.c.bf16 %v237, %v237
    %vm248 = vcmask 257024
    %249 = vst.msk [vmem:[%s4] sm:$0xf] %vm248, %v238
    %250 = vst.msk [vmem:[%s4 + $0x4] sm:$0xf] %vm248, %v239
    %251 = vst.msk [vmem:[%s4 + $0x8] sm:$0xf] %vm248, %v240
    %252 = vst.msk [vmem:[%s4 + $0xc] sm:$0xf] %vm248, %v241
    %253 = vst.msk [vmem:[%s4 + $0x10] sm:$0xf] %vm248, %v242
    %254 = vst.msk [vmem:[%s4 + $0x14] sm:$0xf] %vm248, %v243
    %255 = vst.msk [vmem:[%s4 + $0x18] sm:$0xf] %vm248, %v244
    %256 = vst.msk [vmem:[%s4 + $0x1c] sm:$0xf] %vm248, %v245
    %257 = vst.msk [vmem:[%s4 + $0x20] sm:$0xf] %vm248, %v246
    %258 = vst.msk [vmem:[%s4 + $0x24] sm:$0xf] %vm248, %v247
  $region25: #{vivit_forward.18} parent=0 // pred_fallthru
    _
  // Predicated region
  $region26: #{vivit_forward.18} parent=0 // pred_check
    _
  $region27: #{vivit_forward.18} parent=0 // pred_check_branch
    %260 = sbr.rel (0) target = $region29
  $region28: #{vivit_forward.18} parent=0 // pred_region
    _
  $region29: #{vivit_forward.18} parent=0 // pred_fallthru
    _
  // Predicated region
  $region30: #{vivit_forward.18} parent=0 // pred_check
    _
  $region31: #{vivit_forward.18} parent=0 // pred_check_branch
    %262 = sbr.rel (0) target = $region33
  $region32: #{vivit_forward.18} parent=0 // pred_region
    _
  $region33: #{vivit_forward.18} parent=0 // pred_fallthru
    _

// kernel: vivit_forward.25
$region0: #{vivit_forward.25}
  #allocation0 [shape = 'u32[]', space=smem, size = 0x4, offset = 0x4, fixed_abs, tag = 'smem constant byte address 0x4 - core index']
  #allocation1 [shape = 'u32[72,128]{1,0:T(1,128)}', space=vmem, size = 0x9000, scoped, tag = 'internal scratch']
  #allocation2 [shape = 'f32[2,10]{1,0:T(2,128)}', space=vmem, size = 0x400, scoped, tag = 'scratch operand']
  %s0 = inlined_call_operand.vmem [shape: bf16[2,32], index: 0, kind: input, shape index: {}]
  %s1 = inlined_call_operand.vmem [shape: bf16[32,10], index: 1, kind: input, shape index: {}]
  %s2 = inlined_call_operand.vmem [shape: f32[1,10], index: 2, kind: input, shape index: {}]
  %s3 = inlined_call_operand.hbm [shape: f32[2,10], index: 3, kind: output, shape index: {}]
  %s4 = sld [smem:[#allocation0]]
  $region30: #{vivit_forward.25} parent=0
    _
  %s6 = ssub.s32 1, %s4
  %s7 = scalar_select 0, %s6, %s4
  $region1: #{vivit_forward.25} parent=0
    #allocation3 [shape = 'u8[1024]{0}', space=vmem, size = 0x400, scoped, tag = 'output window, operand 0, single buffered']
    #allocation4 [shape = 's32[1]{0}', space=sflag, size = 0x4, scoped, tag = 'scoped memory for vivit_forward.25']
    %8 = vsyncpa [#allocation4], 0
    // Predicated region
    $region2: #{vivit_forward.25} parent=1 // pred_check
      _
    $region3: #{vivit_forward.25} parent=1 // pred_check_branch
      %10 = sbr.rel (0) target = $region5
    $region4: #{vivit_forward.25} parent=1 // pred_region
      _
    $region5: #{vivit_forward.25} parent=1 // pred_fallthru
      _
    // Predicated region
    $region6: #{vivit_forward.25} parent=1 // pred_check
      _
    $region7: #{vivit_forward.25} parent=1 // pred_check_branch
      %12 = sbr.rel (0) target = $region9
    $region8: #{vivit_forward.25} parent=1 // pred_region
      _
    $region9: #{vivit_forward.25} parent=1 // pred_fallthru
      _
    // Predicated region
    $region10: #{vivit_forward.25} parent=1 // pred_check
      _
    $region11: #{vivit_forward.25} parent=1 // pred_check_branch
      %14 = sbr.rel (0) target = $region13
    $region12: #{vivit_forward.25} parent=1 // pred_region
      _
    $region13: #{vivit_forward.25} parent=1 // pred_fallthru
      _
    %p16 = scmp.eq.s32.totalorder 0, 0
    // Predicated region
    $region14: #{vivit_forward.25} parent=1 // pred_check
      %p17 = pneg %p16
    $region15: #{vivit_forward.25} parent=1 // pred_check_branch
      %19 = sbr.rel (%p17) target = $region17
    $region16: #{vivit_forward.25} parent=1 // pred_region
      %vm20 = vcmask 74752
      %21 = vst.msk [vmem:[#allocation2] sm:$0x3] %vm20, 0.0
    $region17: #{vivit_forward.25} parent=1 // pred_fallthru
      _
    %v22 = vld [vmem:[#allocation2] sm:$0x3]
    %v23 = vld [vmem:[%s0] sm:$0x1]
    %v24 = vld [vmem:[%s1] sm:$0xf]
    %v25 = vld [vmem:[%s1 + $0x4] sm:$0xf]
    %v26 = vld [vmem:[%s1 + $0x8] sm:$0xf]
    %v27 = vld [vmem:[%s1 + $0xc] sm:$0xf]
    %v32 = vunpack.c.l.b16 %v24
    %v33 = vunpack.c.l.b16 %v25
    %v34 = vunpack.c.l.b16 %v26
    %v35 = vunpack.c.l.b16 %v27
    %v36 = vpack.c.b16 %v33, %v32
    %v37 = vpack.c.b16 %v35, %v34
    %vm40 = vcmask 261120
    %v42 = vsel %vm40, %v23, 0
    %44 = vmatpush.bf16.msra.mxu0 0
    %45 = vmatpush.bf16.msra.mxu0 0
    %46 = vmatpush.bf16.msra.mxu0 0
    %47 = vmatpush.bf16.msra.mxu0 0
    %48 = vmatpush.bf16.msra.mxu0 0
    %49 = vmatpush.bf16.msra.mxu0 0
    %50 = vmatpush.bf16.msra.mxu0 %v37
    %51 = vmatpush.bf16.msra.mxu0 %v36
    %52 = vmatmul.bf16.gmra.mxu0 %v42
    %v53 = vpop.f32.mrf.mxu0
    %v54 = vadd.f32 0.0, %v53
    %v55 = vpop.f32.mrf.mxu0
    %56 = vdwg.mxu0
    %v57 = vadd.f32 %v22, %v54
    %vm58 = vcmask 74752
    %59 = vst.msk [vmem:[#allocation2] sm:$0x3] %vm58, %v57
    // Predicated region
    $region18: #{vivit_forward.25} parent=1 // pred_check
      %p60 = pneg %p16
    $region19: #{vivit_forward.25} parent=1 // pred_check_branch
      %62 = sbr.rel (%p60) target = $region21
    $region20: #{vivit_forward.25} parent=1 // pred_region
      %v63 = vld [vmem:[#allocation2] sm:$0x3]
      %v64 = vld [vmem:[%s2] sm:$0x1]
      %v66 = vperm.slane %v64, 0
      %v68 = vadd.f32 %v63, %v66
      %69 = vst.msk [vmem:[#allocation3] sm:$0x3] %vm58, %v68
    $region21: #{vivit_forward.25} parent=1 // pred_fallthru
      _
    // Predicated region
    $region22: #{vivit_forward.25} parent=1 // pred_check
      _
    $region23: #{vivit_forward.25} parent=1 // pred_check_branch
      %71 = sbr.rel (0) target = $region25
    $region24: #{vivit_forward.25} parent=1 // pred_region
      %73 = vsyncadd [#allocation4], 0
      %s75 = sshll.u32 [#allocation3], 4
      %s76 = int_to_ptr.vmem [resolvable:$true] %s75
      %s77 = sshll.u32 %s3, 4
      %s78 = int_to_ptr.hbm [resolvable:$true] %s77
      %80 = dma.vmem_to_hbm [thread:$0]  %s76, 32, %s78, [#allocation4]
    $region25: #{vivit_forward.25} parent=1 // pred_fallthru
      _
    // Predicated region
    $region26: #{vivit_forward.25} parent=1 // pred_check
      _
    $region27: #{vivit_forward.25} parent=1 // pred_check_branch
      %82 = sbr.rel (0) target = $region29
    $region28: #{vivit_forward.25} parent=1 // pred_region
      %84 = dma.done [#allocation4], 32
    $region29: #{vivit_forward.25} parent=1 // pred_fallthru
      _
    %85 = vsyncpa [#allocation4], 1

</llo_original>
